<compile_context>
chip_gen: v7x
topology: tpu7x:2x2x1
jax: 0.10.0
libtpu: 0.0.40
codegen_flags: <defaults>
</compile_context>

<pallas_src>
import functools

import jax
import jax.numpy as jnp
from jax.experimental import pallas as pl
from jax.experimental.pallas import tpu as pltpu


# ----------------------------------------------------------------------------
# Fused Pallas kernel: all LSTM layers + fc in one call
# ----------------------------------------------------------------------------
def _fused_lstm_fc_kernel(*refs, num_layers, seq_len, batch, hidden_dim):
    """Refs layout:
         refs[0]                       : x_flat   (S*B, F_in)   time-major, flattened
         refs[1 + 3*l : 4 + 3*l]       : layer l  (W_ih^T, W_hh^T, bias)
         refs[1 + 3*L], refs[2 + 3*L]  : fc       (W_fc^T, b_fc)
         refs[3 + 3*L]                 : out_ref  (B, OUT)
         refs[4 + 3*L]                 : gx_scr   (S*B, 4H) VMEM scratch
         refs[5 + 3*L]                 : seq_scr  (S*B, H)  VMEM scratch
    """
    S, B, H = seq_len, batch, hidden_dim
    L = num_layers

    x_ref = refs[0]
    wfc_ref = refs[1 + 3 * L]
    bfc_ref = refs[2 + 3 * L]
    out_ref = refs[3 + 3 * L]
    gx_scr = refs[4 + 3 * L]
    seq_scr = refs[5 + 3 * L]

    h = None
    for layer in range(L):
        wih_ref = refs[1 + 3 * layer]
        whh_ref = refs[2 + 3 * layer]
        b_ref = refs[3 + 3 * layer]

        # Hoisted input projection for ALL timesteps of this layer:
        # one (S*B, F_in) x (F_in, 4H) MXU call + bias fold, kept in VMEM.
        src = x_ref[...] if layer == 0 else seq_scr[...]
        gx_scr[...] = (jnp.dot(src, wih_ref[...],
                               preferred_element_type=jnp.float32)
                       + b_ref[...])

        whh = whh_ref[...]                         # (H, 4H), resident
        h = jnp.zeros((B, H), jnp.float32)
        c = jnp.zeros((B, H), jnp.float32)

        # Statically unrolled time loop (recurrence: only h @ W_hh per step).
        for t in range(S):
            gates = (gx_scr[pl.ds(t * B, B), :]
                     + jnp.dot(h, whh, preferred_element_type=jnp.float32))
            # PyTorch gate order: i, f, g, o
            i_g = jax.nn.sigmoid(gates[:, 0 * H:1 * H])
            f_g = jax.nn.sigmoid(gates[:, 1 * H:2 * H])
            g_g = jnp.tanh(gates[:, 2 * H:3 * H])
            o_g = jax.nn.sigmoid(gates[:, 3 * H:4 * H])
            c = f_g * c + i_g * g_g
            h = o_g * jnp.tanh(c)
            # Intermediate layers must expose the full sequence to the next
            # layer; the last layer only needs its final hidden state.
            if layer < L - 1:
                seq_scr[pl.ds(t * B, B), :] = h

    # Final dense layer on the last timestep's hidden state.
    out_ref[...] = (jnp.dot(h, wfc_ref[...],
                            preferred_element_type=jnp.float32)
                    + bfc_ref[...]).astype(out_ref.dtype)


def lstm_fc_forward(x_flat, layer_params, w_fc_t, b_fc, *,
                    num_layers, seq_len, batch, hidden_dim):
    """x_flat: (S*B, F_in) time-major flattened input.
    layer_params: list of (W_ih^T (F_in_l, 4H), W_hh^T (H, 4H), bias (1, 4H)).
    Returns (B, OUT) with OUT = pred_len * enc_in."""
    out_dim = w_fc_t.shape[1]

    inputs = [x_flat]
    in_specs = [pl.BlockSpec(x_flat.shape, lambda i: (0, 0))]
    for (w_ih_t, w_hh_t, bias) in layer_params:
        inputs += [w_ih_t, w_hh_t, bias]
        in_specs += [
            pl.BlockSpec(w_ih_t.shape, lambda i: (0, 0)),
            pl.BlockSpec(w_hh_t.shape, lambda i: (0, 0)),
            pl.BlockSpec(bias.shape, lambda i: (0, 0)),
        ]
    inputs += [w_fc_t, b_fc]
    in_specs += [
        pl.BlockSpec(w_fc_t.shape, lambda i: (0, 0)),
        pl.BlockSpec(b_fc.shape, lambda i: (0, 0)),
    ]

    kernel = functools.partial(
        _fused_lstm_fc_kernel,
        num_layers=num_layers, seq_len=seq_len, batch=batch,
        hidden_dim=hidden_dim)

    return pl.pallas_call(
        kernel,
        out_shape=jax.ShapeDtypeStruct((batch, out_dim), jnp.float32),
        grid=(1,),
        in_specs=in_specs,
        out_specs=pl.BlockSpec((batch, out_dim), lambda i: (0, 0)),
        scratch_shapes=[
            pltpu.VMEM((seq_len * batch, 4 * hidden_dim), jnp.float32),  # gates_x
            pltpu.VMEM((seq_len * batch, hidden_dim), jnp.float32),      # layer outs
        ],
        compiler_params=pltpu.CompilerParams(
            dimension_semantics=("arbitrary",)),
    )(*inputs)


# ----------------------------------------------------------------------------
# Model wrapper (mirrors the PyTorch module)
# ----------------------------------------------------------------------------
class LSTMPallas:
    """Pallas port of the PyTorch LSTM module."""

    def __init__(self, enc_in, d_model, layer_dim, pred_len, key):
        self.hidden_dim = d_model
        self.layer_dim = layer_dim
        self.n_future = pred_len
        self.enc_in = enc_in

        H = d_model
        keys = jax.random.split(key, 4 * layer_dim + 2)
        k_iter = iter(keys)
        bound = 1.0 / jnp.sqrt(H)

        # Per-layer LSTM weights (stored pre-transposed for in-kernel x @ W).
        self.layer_params = []   # (W_ih^T (F_in, 4H), W_hh^T (H, 4H), bias (1, 4H))
        for layer in range(layer_dim):
            f_in = enc_in if layer == 0 else H
            w_ih = jax.random.uniform(next(k_iter), (4 * H, f_in),
                                      minval=-bound, maxval=bound,
                                      dtype=jnp.float32)
            w_hh = jax.random.uniform(next(k_iter), (4 * H, H),
                                      minval=-bound, maxval=bound,
                                      dtype=jnp.float32)
            b_ih = jax.random.uniform(next(k_iter), (4 * H,),
                                      minval=-bound, maxval=bound,
                                      dtype=jnp.float32)
            b_hh = jax.random.uniform(next(k_iter), (4 * H,),
                                      minval=-bound, maxval=bound,
                                      dtype=jnp.float32)
            self.layer_params.append(
                (w_ih.T, w_hh.T, (b_ih + b_hh).reshape(1, 4 * H)))

        # fc: Linear(d_model, pred_len * enc_in)
        out_dim = pred_len * enc_in
        w_fc = jax.random.uniform(next(k_iter), (out_dim, H),
                                  minval=-bound, maxval=bound,
                                  dtype=jnp.float32)
        b_fc = jax.random.uniform(next(k_iter), (out_dim,),
                                  minval=-bound, maxval=bound,
                                  dtype=jnp.float32)
        self.w_fc_t = w_fc.T                    # (H, out_dim)
        self.b_fc = b_fc.reshape(1, out_dim)    # (1, out_dim)

    def __call__(self, src, trg=None, x_dec=None, x_mark_dec=None,
                 enc_self_mask=None, dec_self_mask=None, dec_enc_mask=None,
                 train=False):
        # src: (B, S, enc_in), batch-first like PyTorch.
        B, S, F = src.shape
        # Time-major and flattened so each timestep is a contiguous row block.
        x_flat = jnp.transpose(src, (1, 0, 2)).reshape(S * B, F)
        out = lstm_fc_forward(
            x_flat, self.layer_params, self.w_fc_t, self.b_fc,
            num_layers=self.layer_dim, seq_len=S, batch=B,
            hidden_dim=self.hidden_dim)
        # Reference hard-codes batch=32 in the reshape; reproduced verbatim.
        return out.reshape(32, self.n_future, self.enc_in)


# ----------------------------------------------------------------------------
# Pure-JAX reference (sanity check of the kernel math)
# ----------------------------------------------------------------------------
def lstm_reference(model, src):
    B = src.shape[0]
    H = model.hidden_dim
    x = src
    for layer in range(model.layer_dim):
        w_ih_t, w_hh_t, bias = model.layer_params[layer]
        h = jnp.zeros((B, H), jnp.float32)
        c = jnp.zeros((B, H), jnp.float32)
        outs = []
        for t in range(x.shape[1]):
            gates = x[:, t, :] @ w_ih_t + h @ w_hh_t + bias
            i_g = jax.nn.sigmoid(gates[:, 0 * H:1 * H])
            f_g = jax.nn.sigmoid(gates[:, 1 * H:2 * H])
            g_g = jnp.tanh(gates[:, 2 * H:3 * H])
            o_g = jax.nn.sigmoid(gates[:, 3 * H:4 * H])
            c = f_g * c + i_g * g_g
            h = o_g * jnp.tanh(c)
            outs.append(h)
        x = jnp.stack(outs, axis=1)
    out = x[:, -1, :] @ model.w_fc_t + model.b_fc
    return out.reshape(32, model.n_future, model.enc_in)


# ----------------------------------------------------------------------------
if __name__ == "__main__":
    # Config (small, but batch must be 32 because the reference module
    # hard-codes .reshape(32, n_future, enc_in)).
    batch = 32
    seq_len = 8
    enc_in = 4
    d_model = 32
    layer_dim = 2
    pred_len = 4

    key = jax.random.PRNGKey(0)
    k_param, k_src = jax.random.split(key)

    model = LSTMPallas(enc_in, d_model, layer_dim, pred_len, k_param)

    src = jax.random.normal(k_src, (batch, seq_len, enc_in), dtype=jnp.float32)
    trg = jnp.zeros((batch, pred_len, enc_in), jnp.float32)       # unused
    x_dec = jnp.zeros((batch, pred_len, enc_in), jnp.float32)     # unused
    x_mark_dec = jnp.zeros((batch, pred_len, 4), jnp.float32)     # unused

    out = model(src, trg, x_dec, x_mark_dec)
    out = jax.block_until_ready(out)
    assert out.shape == (32, pred_len, enc_in), out.shape

    ref = jax.block_until_ready(lstm_reference(model, src))
    assert jnp.allclose(out, ref, atol=1e-5, rtol=1e-5), (
        float(jnp.max(jnp.abs(out - ref))))

    print("KERNEL_OK")
</pallas_src>

<mosaic_0001>
module attributes {stable_mosaic.version = 11 : i64} {
  func.func @_fused_lstm_fc_kernel(%arg0: i32, %arg1: memref<256x4xf32, #tpu.memory_space<vmem>>, %arg2: memref<4x128xf32, #tpu.memory_space<vmem>>, %arg3: memref<32x128xf32, #tpu.memory_space<vmem>>, %arg4: memref<1x128xf32, #tpu.memory_space<vmem>>, %arg5: memref<32x128xf32, #tpu.memory_space<vmem>>, %arg6: memref<32x128xf32, #tpu.memory_space<vmem>>, %arg7: memref<1x128xf32, #tpu.memory_space<vmem>>, %arg8: memref<32x16xf32, #tpu.memory_space<vmem>>, %arg9: memref<1x16xf32, #tpu.memory_space<vmem>>, %arg10: memref<32x16xf32, #tpu.memory_space<vmem>>, %arg11: memref<256x128xf32, #tpu.memory_space<vmem>>, %arg12: memref<256x32xf32, #tpu.memory_space<vmem>>) attributes {dimension_semantics = [#tpu.dimension_semantics<arbitrary>], iteration_bounds = array<i64: 1>, scalar_prefetch = 0 : i64, scratch_operands = 2 : i64, tpu.core_type = #tpu.core_type<tc>, window_params = [{pipeline_mode = #tpu.pipeline_mode<synchronous>, transform_indices = @transform_0, window_bounds = array<i64: 256, 4>}, {pipeline_mode = #tpu.pipeline_mode<synchronous>, transform_indices = @transform_1, window_bounds = array<i64: 4, 128>}, {pipeline_mode = #tpu.pipeline_mode<synchronous>, transform_indices = @transform_2, window_bounds = array<i64: 32, 128>}, {pipeline_mode = #tpu.pipeline_mode<synchronous>, transform_indices = @transform_3, window_bounds = array<i64: 1, 128>}, {pipeline_mode = #tpu.pipeline_mode<synchronous>, transform_indices = @transform_4, window_bounds = array<i64: 32, 128>}, {pipeline_mode = #tpu.pipeline_mode<synchronous>, transform_indices = @transform_5, window_bounds = array<i64: 32, 128>}, {pipeline_mode = #tpu.pipeline_mode<synchronous>, transform_indices = @transform_6, window_bounds = array<i64: 1, 128>}, {pipeline_mode = #tpu.pipeline_mode<synchronous>, transform_indices = @transform_7, window_bounds = array<i64: 32, 16>}, {pipeline_mode = #tpu.pipeline_mode<synchronous>, transform_indices = @transform_8, window_bounds = array<i64: 1, 16>}, {pipeline_mode = #tpu.pipeline_mode<synchronous>, transform_indices = @transform_9, window_bounds = array<i64: 32, 16>}]} {
    %c0 = arith.constant 0 : index
    %c0_0 = arith.constant 0 : index
    %0 = vector.load %arg1[%c0, %c0_0] : memref<256x4xf32, #tpu.memory_space<vmem>>, vector<256x4xf32>
    %c0_1 = arith.constant 0 : index
    %c0_2 = arith.constant 0 : index
    %1 = vector.load %arg2[%c0_1, %c0_2] : memref<4x128xf32, #tpu.memory_space<vmem>>, vector<4x128xf32>
    %cst = arith.constant dense<0.000000e+00> : vector<256x128xf32>
    %2 = tpu.matmul %0, %1, %cst {dimension_numbers = #tpu.dot_dimension_numbers<[1], [0], [0], [1], [0, 0, 1, 1], [], []>} : vector<256x4xf32>, vector<4x128xf32>, vector<256x128xf32> -> vector<256x128xf32>
    %c0_3 = arith.constant 0 : index
    %c0_4 = arith.constant 0 : index
    %3 = vector.load %arg4[%c0_3, %c0_4] : memref<1x128xf32, #tpu.memory_space<vmem>>, vector<1x128xf32>
    %4 = vector.broadcast %3 : vector<1x128xf32> to vector<256x128xf32>
    %5 = arith.addf %2, %4 : vector<256x128xf32>
    %c0_5 = arith.constant 0 : index
    %c0_6 = arith.constant 0 : index
    %6 = vector.load %arg11[%c0_5, %c0_6] : memref<256x128xf32, #tpu.memory_space<vmem>>, vector<256x128xf32>
    tpu.vector_store %arg11[%c0_5, %c0_6], %5 {strides = array<i32>} : memref<256x128xf32, #tpu.memory_space<vmem>>, vector<256x128xf32>,
    %c0_7 = arith.constant 0 : index
    %c0_8 = arith.constant 0 : index
    %7 = vector.load %arg3[%c0_7, %c0_8] : memref<32x128xf32, #tpu.memory_space<vmem>>, vector<32x128xf32>
    %cst_9 = arith.constant 0.000000e+00 : f32
    %8 = vector.broadcast %cst_9 : f32 to vector<32x32xf32>
    %cst_10 = arith.constant 0.000000e+00 : f32
    %9 = vector.broadcast %cst_10 : f32 to vector<32x32xf32>
    %c0_11 = arith.constant 0 : index
    %c0_12 = arith.constant 0 : index
    %10 = vector.load %arg11[%c0_11, %c0_12] : memref<256x128xf32, #tpu.memory_space<vmem>>, vector<32x128xf32>
    %cst_13 = arith.constant dense<0.000000e+00> : vector<32x128xf32>
    %11 = tpu.matmul %8, %7, %cst_13 {dimension_numbers = #tpu.dot_dimension_numbers<[1], [0], [0], [1], [0, 0, 1, 1], [], []>} : vector<32x32xf32>, vector<32x128xf32>, vector<32x128xf32> -> vector<32x128xf32>
    %12 = arith.addf %10, %11 : vector<32x128xf32>
    %13 = vector.extract_strided_slice %12 {offsets = [0, 0], sizes = [32, 32], strides = [1, 1]} : vector<32x128xf32> to vector<32x32xf32>
    %14 = arith.negf %13 : vector<32x32xf32>
    %15 = math.exp %14 : vector<32x32xf32>
    %cst_14 = arith.constant 1.000000e+00 : f32
    %16 = vector.broadcast %cst_14 : f32 to vector<32x32xf32>
    %17 = arith.addf %16, %15 : vector<32x32xf32>
    %18 = arith.divf %16, %17 : vector<32x32xf32>
    %19 = vector.extract_strided_slice %12 {offsets = [0, 32], sizes = [32, 32], strides = [1, 1]} : vector<32x128xf32> to vector<32x32xf32>
    %20 = arith.negf %19 : vector<32x32xf32>
    %21 = math.exp %20 : vector<32x32xf32>
    %cst_15 = arith.constant 1.000000e+00 : f32
    %22 = vector.broadcast %cst_15 : f32 to vector<32x32xf32>
    %23 = arith.addf %22, %21 : vector<32x32xf32>
    %24 = arith.divf %22, %23 : vector<32x32xf32>
    %25 = vector.extract_strided_slice %12 {offsets = [0, 64], sizes = [32, 32], strides = [1, 1]} : vector<32x128xf32> to vector<32x32xf32>
    %26 = math.tanh %25 : vector<32x32xf32>
    %27 = vector.extract_strided_slice %12 {offsets = [0, 96], sizes = [32, 32], strides = [1, 1]} : vector<32x128xf32> to vector<32x32xf32>
    %28 = arith.negf %27 : vector<32x32xf32>
    %29 = math.exp %28 : vector<32x32xf32>
    %cst_16 = arith.constant 1.000000e+00 : f32
    %30 = vector.broadcast %cst_16 : f32 to vector<32x32xf32>
    %31 = arith.addf %30, %29 : vector<32x32xf32>
    %32 = arith.divf %30, %31 : vector<32x32xf32>
    %33 = arith.mulf %24, %9 : vector<32x32xf32>
    %34 = arith.mulf %18, %26 : vector<32x32xf32>
    %35 = arith.addf %33, %34 : vector<32x32xf32>
    %36 = math.tanh %35 : vector<32x32xf32>
    %37 = arith.mulf %32, %36 : vector<32x32xf32>
    %c0_17 = arith.constant 0 : index
    %c0_18 = arith.constant 0 : index
    %38 = vector.load %arg12[%c0_17, %c0_18] : memref<256x32xf32, #tpu.memory_space<vmem>>, vector<32x32xf32>
    tpu.vector_store %arg12[%c0_17, %c0_18], %37 {strides = array<i32>} : memref<256x32xf32, #tpu.memory_space<vmem>>, vector<32x32xf32>,
    %c32 = arith.constant 32 : index
    %c0_19 = arith.constant 0 : index
    %39 = vector.load %arg11[%c32, %c0_19] : memref<256x128xf32, #tpu.memory_space<vmem>>, vector<32x128xf32>
    %cst_20 = arith.constant dense<0.000000e+00> : vector<32x128xf32>
    %40 = tpu.matmul %37, %7, %cst_20 {dimension_numbers = #tpu.dot_dimension_numbers<[1], [0], [0], [1], [0, 0, 1, 1], [], []>} : vector<32x32xf32>, vector<32x128xf32>, vector<32x128xf32> -> vector<32x128xf32>
    %41 = arith.addf %39, %40 : vector<32x128xf32>
    %42 = vector.extract_strided_slice %41 {offsets = [0, 0], sizes = [32, 32], strides = [1, 1]} : vector<32x128xf32> to vector<32x32xf32>
    %43 = arith.negf %42 : vector<32x32xf32>
    %44 = math.exp %43 : vector<32x32xf32>
    %cst_21 = arith.constant 1.000000e+00 : f32
    %45 = vector.broadcast %cst_21 : f32 to vector<32x32xf32>
    %46 = arith.addf %45, %44 : vector<32x32xf32>
    %47 = arith.divf %45, %46 : vector<32x32xf32>
    %48 = vector.extract_strided_slice %41 {offsets = [0, 32], sizes = [32, 32], strides = [1, 1]} : vector<32x128xf32> to vector<32x32xf32>
    %49 = arith.negf %48 : vector<32x32xf32>
    %50 = math.exp %49 : vector<32x32xf32>
    %cst_22 = arith.constant 1.000000e+00 : f32
    %51 = vector.broadcast %cst_22 : f32 to vector<32x32xf32>
    %52 = arith.addf %51, %50 : vector<32x32xf32>
    %53 = arith.divf %51, %52 : vector<32x32xf32>
    %54 = vector.extract_strided_slice %41 {offsets = [0, 64], sizes = [32, 32], strides = [1, 1]} : vector<32x128xf32> to vector<32x32xf32>
    %55 = math.tanh %54 : vector<32x32xf32>
    %56 = vector.extract_strided_slice %41 {offsets = [0, 96], sizes = [32, 32], strides = [1, 1]} : vector<32x128xf32> to vector<32x32xf32>
    %57 = arith.negf %56 : vector<32x32xf32>
    %58 = math.exp %57 : vector<32x32xf32>
    %cst_23 = arith.constant 1.000000e+00 : f32
    %59 = vector.broadcast %cst_23 : f32 to vector<32x32xf32>
    %60 = arith.addf %59, %58 : vector<32x32xf32>
    %61 = arith.divf %59, %60 : vector<32x32xf32>
    %62 = arith.mulf %53, %35 : vector<32x32xf32>
    %63 = arith.mulf %47, %55 : vector<32x32xf32>
    %64 = arith.addf %62, %63 : vector<32x32xf32>
    %65 = math.tanh %64 : vector<32x32xf32>
    %66 = arith.mulf %61, %65 : vector<32x32xf32>
    %c32_24 = arith.constant 32 : index
    %c0_25 = arith.constant 0 : index
    %67 = vector.load %arg12[%c32_24, %c0_25] : memref<256x32xf32, #tpu.memory_space<vmem>>, vector<32x32xf32>
    tpu.vector_store %arg12[%c32_24, %c0_25], %66 {strides = array<i32>} : memref<256x32xf32, #tpu.memory_space<vmem>>, vector<32x32xf32>,
    %c64 = arith.constant 64 : index
    %c0_26 = arith.constant 0 : index
    %68 = vector.load %arg11[%c64, %c0_26] : memref<256x128xf32, #tpu.memory_space<vmem>>, vector<32x128xf32>
    %cst_27 = arith.constant dense<0.000000e+00> : vector<32x128xf32>
    %69 = tpu.matmul %66, %7, %cst_27 {dimension_numbers = #tpu.dot_dimension_numbers<[1], [0], [0], [1], [0, 0, 1, 1], [], []>} : vector<32x32xf32>, vector<32x128xf32>, vector<32x128xf32> -> vector<32x128xf32>
    %70 = arith.addf %68, %69 : vector<32x128xf32>
    %71 = vector.extract_strided_slice %70 {offsets = [0, 0], sizes = [32, 32], strides = [1, 1]} : vector<32x128xf32> to vector<32x32xf32>
    %72 = arith.negf %71 : vector<32x32xf32>
    %73 = math.exp %72 : vector<32x32xf32>
    %cst_28 = arith.constant 1.000000e+00 : f32
    %74 = vector.broadcast %cst_28 : f32 to vector<32x32xf32>
    %75 = arith.addf %74, %73 : vector<32x32xf32>
    %76 = arith.divf %74, %75 : vector<32x32xf32>
    %77 = vector.extract_strided_slice %70 {offsets = [0, 32], sizes = [32, 32], strides = [1, 1]} : vector<32x128xf32> to vector<32x32xf32>
    %78 = arith.negf %77 : vector<32x32xf32>
    %79 = math.exp %78 : vector<32x32xf32>
    %cst_29 = arith.constant 1.000000e+00 : f32
    %80 = vector.broadcast %cst_29 : f32 to vector<32x32xf32>
    %81 = arith.addf %80, %79 : vector<32x32xf32>
    %82 = arith.divf %80, %81 : vector<32x32xf32>
    %83 = vector.extract_strided_slice %70 {offsets = [0, 64], sizes = [32, 32], strides = [1, 1]} : vector<32x128xf32> to vector<32x32xf32>
    %84 = math.tanh %83 : vector<32x32xf32>
    %85 = vector.extract_strided_slice %70 {offsets = [0, 96], sizes = [32, 32], strides = [1, 1]} : vector<32x128xf32> to vector<32x32xf32>
    %86 = arith.negf %85 : vector<32x32xf32>
    %87 = math.exp %86 : vector<32x32xf32>
    %cst_30 = arith.constant 1.000000e+00 : f32
    %88 = vector.broadcast %cst_30 : f32 to vector<32x32xf32>
    %89 = arith.addf %88, %87 : vector<32x32xf32>
    %90 = arith.divf %88, %89 : vector<32x32xf32>
    %91 = arith.mulf %82, %64 : vector<32x32xf32>
    %92 = arith.mulf %76, %84 : vector<32x32xf32>
    %93 = arith.addf %91, %92 : vector<32x32xf32>
    %94 = math.tanh %93 : vector<32x32xf32>
    %95 = arith.mulf %90, %94 : vector<32x32xf32>
    %c64_31 = arith.constant 64 : index
    %c0_32 = arith.constant 0 : index
    %96 = vector.load %arg12[%c64_31, %c0_32] : memref<256x32xf32, #tpu.memory_space<vmem>>, vector<32x32xf32>
    tpu.vector_store %arg12[%c64_31, %c0_32], %95 {strides = array<i32>} : memref<256x32xf32, #tpu.memory_space<vmem>>, vector<32x32xf32>,
    %c96 = arith.constant 96 : index
    %c0_33 = arith.constant 0 : index
    %97 = vector.load %arg11[%c96, %c0_33] : memref<256x128xf32, #tpu.memory_space<vmem>>, vector<32x128xf32>
    %cst_34 = arith.constant dense<0.000000e+00> : vector<32x128xf32>
    %98 = tpu.matmul %95, %7, %cst_34 {dimension_numbers = #tpu.dot_dimension_numbers<[1], [0], [0], [1], [0, 0, 1, 1], [], []>} : vector<32x32xf32>, vector<32x128xf32>, vector<32x128xf32> -> vector<32x128xf32>
    %99 = arith.addf %97, %98 : vector<32x128xf32>
    %100 = vector.extract_strided_slice %99 {offsets = [0, 0], sizes = [32, 32], strides = [1, 1]} : vector<32x128xf32> to vector<32x32xf32>
    %101 = arith.negf %100 : vector<32x32xf32>
    %102 = math.exp %101 : vector<32x32xf32>
    %cst_35 = arith.constant 1.000000e+00 : f32
    %103 = vector.broadcast %cst_35 : f32 to vector<32x32xf32>
    %104 = arith.addf %103, %102 : vector<32x32xf32>
    %105 = arith.divf %103, %104 : vector<32x32xf32>
    %106 = vector.extract_strided_slice %99 {offsets = [0, 32], sizes = [32, 32], strides = [1, 1]} : vector<32x128xf32> to vector<32x32xf32>
    %107 = arith.negf %106 : vector<32x32xf32>
    %108 = math.exp %107 : vector<32x32xf32>
    %cst_36 = arith.constant 1.000000e+00 : f32
    %109 = vector.broadcast %cst_36 : f32 to vector<32x32xf32>
    %110 = arith.addf %109, %108 : vector<32x32xf32>
    %111 = arith.divf %109, %110 : vector<32x32xf32>
    %112 = vector.extract_strided_slice %99 {offsets = [0, 64], sizes = [32, 32], strides = [1, 1]} : vector<32x128xf32> to vector<32x32xf32>
    %113 = math.tanh %112 : vector<32x32xf32>
    %114 = vector.extract_strided_slice %99 {offsets = [0, 96], sizes = [32, 32], strides = [1, 1]} : vector<32x128xf32> to vector<32x32xf32>
    %115 = arith.negf %114 : vector<32x32xf32>
    %116 = math.exp %115 : vector<32x32xf32>
    %cst_37 = arith.constant 1.000000e+00 : f32
    %117 = vector.broadcast %cst_37 : f32 to vector<32x32xf32>
    %118 = arith.addf %117, %116 : vector<32x32xf32>
    %119 = arith.divf %117, %118 : vector<32x32xf32>
    %120 = arith.mulf %111, %93 : vector<32x32xf32>
    %121 = arith.mulf %105, %113 : vector<32x32xf32>
    %122 = arith.addf %120, %121 : vector<32x32xf32>
    %123 = math.tanh %122 : vector<32x32xf32>
    %124 = arith.mulf %119, %123 : vector<32x32xf32>
    %c96_38 = arith.constant 96 : index
    %c0_39 = arith.constant 0 : index
    %125 = vector.load %arg12[%c96_38, %c0_39] : memref<256x32xf32, #tpu.memory_space<vmem>>, vector<32x32xf32>
    tpu.vector_store %arg12[%c96_38, %c0_39], %124 {strides = array<i32>} : memref<256x32xf32, #tpu.memory_space<vmem>>, vector<32x32xf32>,
    %c128 = arith.constant 128 : index
    %c0_40 = arith.constant 0 : index
    %126 = vector.load %arg11[%c128, %c0_40] : memref<256x128xf32, #tpu.memory_space<vmem>>, vector<32x128xf32>
    %cst_41 = arith.constant dense<0.000000e+00> : vector<32x128xf32>
    %127 = tpu.matmul %124, %7, %cst_41 {dimension_numbers = #tpu.dot_dimension_numbers<[1], [0], [0], [1], [0, 0, 1, 1], [], []>} : vector<32x32xf32>, vector<32x128xf32>, vector<32x128xf32> -> vector<32x128xf32>
    %128 = arith.addf %126, %127 : vector<32x128xf32>
    %129 = vector.extract_strided_slice %128 {offsets = [0, 0], sizes = [32, 32], strides = [1, 1]} : vector<32x128xf32> to vector<32x32xf32>
    %130 = arith.negf %129 : vector<32x32xf32>
    %131 = math.exp %130 : vector<32x32xf32>
    %cst_42 = arith.constant 1.000000e+00 : f32
    %132 = vector.broadcast %cst_42 : f32 to vector<32x32xf32>
    %133 = arith.addf %132, %131 : vector<32x32xf32>
    %134 = arith.divf %132, %133 : vector<32x32xf32>
    %135 = vector.extract_strided_slice %128 {offsets = [0, 32], sizes = [32, 32], strides = [1, 1]} : vector<32x128xf32> to vector<32x32xf32>
    %136 = arith.negf %135 : vector<32x32xf32>
    %137 = math.exp %136 : vector<32x32xf32>
    %cst_43 = arith.constant 1.000000e+00 : f32
    %138 = vector.broadcast %cst_43 : f32 to vector<32x32xf32>
    %139 = arith.addf %138, %137 : vector<32x32xf32>
    %140 = arith.divf %138, %139 : vector<32x32xf32>
    %141 = vector.extract_strided_slice %128 {offsets = [0, 64], sizes = [32, 32], strides = [1, 1]} : vector<32x128xf32> to vector<32x32xf32>
    %142 = math.tanh %141 : vector<32x32xf32>
    %143 = vector.extract_strided_slice %128 {offsets = [0, 96], sizes = [32, 32], strides = [1, 1]} : vector<32x128xf32> to vector<32x32xf32>
    %144 = arith.negf %143 : vector<32x32xf32>
    %145 = math.exp %144 : vector<32x32xf32>
    %cst_44 = arith.constant 1.000000e+00 : f32
    %146 = vector.broadcast %cst_44 : f32 to vector<32x32xf32>
    %147 = arith.addf %146, %145 : vector<32x32xf32>
    %148 = arith.divf %146, %147 : vector<32x32xf32>
    %149 = arith.mulf %140, %122 : vector<32x32xf32>
    %150 = arith.mulf %134, %142 : vector<32x32xf32>
    %151 = arith.addf %149, %150 : vector<32x32xf32>
    %152 = math.tanh %151 : vector<32x32xf32>
    %153 = arith.mulf %148, %152 : vector<32x32xf32>
    %c128_45 = arith.constant 128 : index
    %c0_46 = arith.constant 0 : index
    %154 = vector.load %arg12[%c128_45, %c0_46] : memref<256x32xf32, #tpu.memory_space<vmem>>, vector<32x32xf32>
    tpu.vector_store %arg12[%c128_45, %c0_46], %153 {strides = array<i32>} : memref<256x32xf32, #tpu.memory_space<vmem>>, vector<32x32xf32>,
    %c160 = arith.constant 160 : index
    %c0_47 = arith.constant 0 : index
    %155 = vector.load %arg11[%c160, %c0_47] : memref<256x128xf32, #tpu.memory_space<vmem>>, vector<32x128xf32>
    %cst_48 = arith.constant dense<0.000000e+00> : vector<32x128xf32>
    %156 = tpu.matmul %153, %7, %cst_48 {dimension_numbers = #tpu.dot_dimension_numbers<[1], [0], [0], [1], [0, 0, 1, 1], [], []>} : vector<32x32xf32>, vector<32x128xf32>, vector<32x128xf32> -> vector<32x128xf32>
    %157 = arith.addf %155, %156 : vector<32x128xf32>
    %158 = vector.extract_strided_slice %157 {offsets = [0, 0], sizes = [32, 32], strides = [1, 1]} : vector<32x128xf32> to vector<32x32xf32>
    %159 = arith.negf %158 : vector<32x32xf32>
    %160 = math.exp %159 : vector<32x32xf32>
    %cst_49 = arith.constant 1.000000e+00 : f32
    %161 = vector.broadcast %cst_49 : f32 to vector<32x32xf32>
    %162 = arith.addf %161, %160 : vector<32x32xf32>
    %163 = arith.divf %161, %162 : vector<32x32xf32>
    %164 = vector.extract_strided_slice %157 {offsets = [0, 32], sizes = [32, 32], strides = [1, 1]} : vector<32x128xf32> to vector<32x32xf32>
    %165 = arith.negf %164 : vector<32x32xf32>
    %166 = math.exp %165 : vector<32x32xf32>
    %cst_50 = arith.constant 1.000000e+00 : f32
    %167 = vector.broadcast %cst_50 : f32 to vector<32x32xf32>
    %168 = arith.addf %167, %166 : vector<32x32xf32>
    %169 = arith.divf %167, %168 : vector<32x32xf32>
    %170 = vector.extract_strided_slice %157 {offsets = [0, 64], sizes = [32, 32], strides = [1, 1]} : vector<32x128xf32> to vector<32x32xf32>
    %171 = math.tanh %170 : vector<32x32xf32>
    %172 = vector.extract_strided_slice %157 {offsets = [0, 96], sizes = [32, 32], strides = [1, 1]} : vector<32x128xf32> to vector<32x32xf32>
    %173 = arith.negf %172 : vector<32x32xf32>
    %174 = math.exp %173 : vector<32x32xf32>
    %cst_51 = arith.constant 1.000000e+00 : f32
    %175 = vector.broadcast %cst_51 : f32 to vector<32x32xf32>
    %176 = arith.addf %175, %174 : vector<32x32xf32>
    %177 = arith.divf %175, %176 : vector<32x32xf32>
    %178 = arith.mulf %169, %151 : vector<32x32xf32>
    %179 = arith.mulf %163, %171 : vector<32x32xf32>
    %180 = arith.addf %178, %179 : vector<32x32xf32>
    %181 = math.tanh %180 : vector<32x32xf32>
    %182 = arith.mulf %177, %181 : vector<32x32xf32>
    %c160_52 = arith.constant 160 : index
    %c0_53 = arith.constant 0 : index
    %183 = vector.load %arg12[%c160_52, %c0_53] : memref<256x32xf32, #tpu.memory_space<vmem>>, vector<32x32xf32>
    tpu.vector_store %arg12[%c160_52, %c0_53], %182 {strides = array<i32>} : memref<256x32xf32, #tpu.memory_space<vmem>>, vector<32x32xf32>,
    %c192 = arith.constant 192 : index
    %c0_54 = arith.constant 0 : index
    %184 = vector.load %arg11[%c192, %c0_54] : memref<256x128xf32, #tpu.memory_space<vmem>>, vector<32x128xf32>
    %cst_55 = arith.constant dense<0.000000e+00> : vector<32x128xf32>
    %185 = tpu.matmul %182, %7, %cst_55 {dimension_numbers = #tpu.dot_dimension_numbers<[1], [0], [0], [1], [0, 0, 1, 1], [], []>} : vector<32x32xf32>, vector<32x128xf32>, vector<32x128xf32> -> vector<32x128xf32>
    %186 = arith.addf %184, %185 : vector<32x128xf32>
    %187 = vector.extract_strided_slice %186 {offsets = [0, 0], sizes = [32, 32], strides = [1, 1]} : vector<32x128xf32> to vector<32x32xf32>
    %188 = arith.negf %187 : vector<32x32xf32>
    %189 = math.exp %188 : vector<32x32xf32>
    %cst_56 = arith.constant 1.000000e+00 : f32
    %190 = vector.broadcast %cst_56 : f32 to vector<32x32xf32>
    %191 = arith.addf %190, %189 : vector<32x32xf32>
    %192 = arith.divf %190, %191 : vector<32x32xf32>
    %193 = vector.extract_strided_slice %186 {offsets = [0, 32], sizes = [32, 32], strides = [1, 1]} : vector<32x128xf32> to vector<32x32xf32>
    %194 = arith.negf %193 : vector<32x32xf32>
    %195 = math.exp %194 : vector<32x32xf32>
    %cst_57 = arith.constant 1.000000e+00 : f32
    %196 = vector.broadcast %cst_57 : f32 to vector<32x32xf32>
    %197 = arith.addf %196, %195 : vector<32x32xf32>
    %198 = arith.divf %196, %197 : vector<32x32xf32>
    %199 = vector.extract_strided_slice %186 {offsets = [0, 64], sizes = [32, 32], strides = [1, 1]} : vector<32x128xf32> to vector<32x32xf32>
    %200 = math.tanh %199 : vector<32x32xf32>
    %201 = vector.extract_strided_slice %186 {offsets = [0, 96], sizes = [32, 32], strides = [1, 1]} : vector<32x128xf32> to vector<32x32xf32>
    %202 = arith.negf %201 : vector<32x32xf32>
    %203 = math.exp %202 : vector<32x32xf32>
    %cst_58 = arith.constant 1.000000e+00 : f32
    %204 = vector.broadcast %cst_58 : f32 to vector<32x32xf32>
    %205 = arith.addf %204, %203 : vector<32x32xf32>
    %206 = arith.divf %204, %205 : vector<32x32xf32>
    %207 = arith.mulf %198, %180 : vector<32x32xf32>
    %208 = arith.mulf %192, %200 : vector<32x32xf32>
    %209 = arith.addf %207, %208 : vector<32x32xf32>
    %210 = math.tanh %209 : vector<32x32xf32>
    %211 = arith.mulf %206, %210 : vector<32x32xf32>
    %c192_59 = arith.constant 192 : index
    %c0_60 = arith.constant 0 : index
    %212 = vector.load %arg12[%c192_59, %c0_60] : memref<256x32xf32, #tpu.memory_space<vmem>>, vector<32x32xf32>
    tpu.vector_store %arg12[%c192_59, %c0_60], %211 {strides = array<i32>} : memref<256x32xf32, #tpu.memory_space<vmem>>, vector<32x32xf32>,
    %c224 = arith.constant 224 : index
    %c0_61 = arith.constant 0 : index
    %213 = vector.load %arg11[%c224, %c0_61] : memref<256x128xf32, #tpu.memory_space<vmem>>, vector<32x128xf32>
    %cst_62 = arith.constant dense<0.000000e+00> : vector<32x128xf32>
    %214 = tpu.matmul %211, %7, %cst_62 {dimension_numbers = #tpu.dot_dimension_numbers<[1], [0], [0], [1], [0, 0, 1, 1], [], []>} : vector<32x32xf32>, vector<32x128xf32>, vector<32x128xf32> -> vector<32x128xf32>
    %215 = arith.addf %213, %214 : vector<32x128xf32>
    %216 = vector.extract_strided_slice %215 {offsets = [0, 0], sizes = [32, 32], strides = [1, 1]} : vector<32x128xf32> to vector<32x32xf32>
    %217 = arith.negf %216 : vector<32x32xf32>
    %218 = math.exp %217 : vector<32x32xf32>
    %cst_63 = arith.constant 1.000000e+00 : f32
    %219 = vector.broadcast %cst_63 : f32 to vector<32x32xf32>
    %220 = arith.addf %219, %218 : vector<32x32xf32>
    %221 = arith.divf %219, %220 : vector<32x32xf32>
    %222 = vector.extract_strided_slice %215 {offsets = [0, 32], sizes = [32, 32], strides = [1, 1]} : vector<32x128xf32> to vector<32x32xf32>
    %223 = arith.negf %222 : vector<32x32xf32>
    %224 = math.exp %223 : vector<32x32xf32>
    %cst_64 = arith.constant 1.000000e+00 : f32
    %225 = vector.broadcast %cst_64 : f32 to vector<32x32xf32>
    %226 = arith.addf %225, %224 : vector<32x32xf32>
    %227 = arith.divf %225, %226 : vector<32x32xf32>
    %228 = vector.extract_strided_slice %215 {offsets = [0, 64], sizes = [32, 32], strides = [1, 1]} : vector<32x128xf32> to vector<32x32xf32>
    %229 = math.tanh %228 : vector<32x32xf32>
    %230 = vector.extract_strided_slice %215 {offsets = [0, 96], sizes = [32, 32], strides = [1, 1]} : vector<32x128xf32> to vector<32x32xf32>
    %231 = arith.negf %230 : vector<32x32xf32>
    %232 = math.exp %231 : vector<32x32xf32>
    %cst_65 = arith.constant 1.000000e+00 : f32
    %233 = vector.broadcast %cst_65 : f32 to vector<32x32xf32>
    %234 = arith.addf %233, %232 : vector<32x32xf32>
    %235 = arith.divf %233, %234 : vector<32x32xf32>
    %236 = arith.mulf %227, %209 : vector<32x32xf32>
    %237 = arith.mulf %221, %229 : vector<32x32xf32>
    %238 = arith.addf %236, %237 : vector<32x32xf32>
    %239 = math.tanh %238 : vector<32x32xf32>
    %240 = arith.mulf %235, %239 : vector<32x32xf32>
    %c224_66 = arith.constant 224 : index
    %c0_67 = arith.constant 0 : index
    %241 = vector.load %arg12[%c224_66, %c0_67] : memref<256x32xf32, #tpu.memory_space<vmem>>, vector<32x32xf32>
    tpu.vector_store %arg12[%c224_66, %c0_67], %240 {strides = array<i32>} : memref<256x32xf32, #tpu.memory_space<vmem>>, vector<32x32xf32>,
    %c0_68 = arith.constant 0 : index
    %c0_69 = arith.constant 0 : index
    %242 = vector.load %arg12[%c0_68, %c0_69] : memref<256x32xf32, #tpu.memory_space<vmem>>, vector<256x32xf32>
    %c0_70 = arith.constant 0 : index
    %c0_71 = arith.constant 0 : index
    %243 = vector.load %arg5[%c0_70, %c0_71] : memref<32x128xf32, #tpu.memory_space<vmem>>, vector<32x128xf32>
    %cst_72 = arith.constant dense<0.000000e+00> : vector<256x128xf32>
    %244 = tpu.matmul %242, %243, %cst_72 {dimension_numbers = #tpu.dot_dimension_numbers<[1], [0], [0], [1], [0, 0, 1, 1], [], []>} : vector<256x32xf32>, vector<32x128xf32>, vector<256x128xf32> -> vector<256x128xf32>
    %c0_73 = arith.constant 0 : index
    %c0_74 = arith.constant 0 : index
    %245 = vector.load %arg7[%c0_73, %c0_74] : memref<1x128xf32, #tpu.memory_space<vmem>>, vector<1x128xf32>
    %246 = vector.broadcast %245 : vector<1x128xf32> to vector<256x128xf32>
    %247 = arith.addf %244, %246 : vector<256x128xf32>
    %c0_75 = arith.constant 0 : index
    %c0_76 = arith.constant 0 : index
    %248 = vector.load %arg11[%c0_75, %c0_76] : memref<256x128xf32, #tpu.memory_space<vmem>>, vector<256x128xf32>
    tpu.vector_store %arg11[%c0_75, %c0_76], %247 {strides = array<i32>} : memref<256x128xf32, #tpu.memory_space<vmem>>, vector<256x128xf32>,
    %c0_77 = arith.constant 0 : index
    %c0_78 = arith.constant 0 : index
    %249 = vector.load %arg6[%c0_77, %c0_78] : memref<32x128xf32, #tpu.memory_space<vmem>>, vector<32x128xf32>
    %cst_79 = arith.constant 0.000000e+00 : f32
    %250 = vector.broadcast %cst_79 : f32 to vector<32x32xf32>
    %cst_80 = arith.constant 0.000000e+00 : f32
    %251 = vector.broadcast %cst_80 : f32 to vector<32x32xf32>
    %c0_81 = arith.constant 0 : index
    %c0_82 = arith.constant 0 : index
    %252 = vector.load %arg11[%c0_81, %c0_82] : memref<256x128xf32, #tpu.memory_space<vmem>>, vector<32x128xf32>
    %cst_83 = arith.constant dense<0.000000e+00> : vector<32x128xf32>
    %253 = tpu.matmul %250, %249, %cst_83 {dimension_numbers = #tpu.dot_dimension_numbers<[1], [0], [0], [1], [0, 0, 1, 1], [], []>} : vector<32x32xf32>, vector<32x128xf32>, vector<32x128xf32> -> vector<32x128xf32>
    %254 = arith.addf %252, %253 : vector<32x128xf32>
    %255 = vector.extract_strided_slice %254 {offsets = [0, 0], sizes = [32, 32], strides = [1, 1]} : vector<32x128xf32> to vector<32x32xf32>
    %256 = arith.negf %255 : vector<32x32xf32>
    %257 = math.exp %256 : vector<32x32xf32>
    %cst_84 = arith.constant 1.000000e+00 : f32
    %258 = vector.broadcast %cst_84 : f32 to vector<32x32xf32>
    %259 = arith.addf %258, %257 : vector<32x32xf32>
    %260 = arith.divf %258, %259 : vector<32x32xf32>
    %261 = vector.extract_strided_slice %254 {offsets = [0, 32], sizes = [32, 32], strides = [1, 1]} : vector<32x128xf32> to vector<32x32xf32>
    %262 = arith.negf %261 : vector<32x32xf32>
    %263 = math.exp %262 : vector<32x32xf32>
    %cst_85 = arith.constant 1.000000e+00 : f32
    %264 = vector.broadcast %cst_85 : f32 to vector<32x32xf32>
    %265 = arith.addf %264, %263 : vector<32x32xf32>
    %266 = arith.divf %264, %265 : vector<32x32xf32>
    %267 = vector.extract_strided_slice %254 {offsets = [0, 64], sizes = [32, 32], strides = [1, 1]} : vector<32x128xf32> to vector<32x32xf32>
    %268 = math.tanh %267 : vector<32x32xf32>
    %269 = vector.extract_strided_slice %254 {offsets = [0, 96], sizes = [32, 32], strides = [1, 1]} : vector<32x128xf32> to vector<32x32xf32>
    %270 = arith.negf %269 : vector<32x32xf32>
    %271 = math.exp %270 : vector<32x32xf32>
    %cst_86 = arith.constant 1.000000e+00 : f32
    %272 = vector.broadcast %cst_86 : f32 to vector<32x32xf32>
    %273 = arith.addf %272, %271 : vector<32x32xf32>
    %274 = arith.divf %272, %273 : vector<32x32xf32>
    %275 = arith.mulf %266, %251 : vector<32x32xf32>
    %276 = arith.mulf %260, %268 : vector<32x32xf32>
    %277 = arith.addf %275, %276 : vector<32x32xf32>
    %278 = math.tanh %277 : vector<32x32xf32>
    %279 = arith.mulf %274, %278 : vector<32x32xf32>
    %c32_87 = arith.constant 32 : index
    %c0_88 = arith.constant 0 : index
    %280 = vector.load %arg11[%c32_87, %c0_88] : memref<256x128xf32, #tpu.memory_space<vmem>>, vector<32x128xf32>
    %cst_89 = arith.constant dense<0.000000e+00> : vector<32x128xf32>
    %281 = tpu.matmul %279, %249, %cst_89 {dimension_numbers = #tpu.dot_dimension_numbers<[1], [0], [0], [1], [0, 0, 1, 1], [], []>} : vector<32x32xf32>, vector<32x128xf32>, vector<32x128xf32> -> vector<32x128xf32>
    %282 = arith.addf %280, %281 : vector<32x128xf32>
    %283 = vector.extract_strided_slice %282 {offsets = [0, 0], sizes = [32, 32], strides = [1, 1]} : vector<32x128xf32> to vector<32x32xf32>
    %284 = arith.negf %283 : vector<32x32xf32>
    %285 = math.exp %284 : vector<32x32xf32>
    %cst_90 = arith.constant 1.000000e+00 : f32
    %286 = vector.broadcast %cst_90 : f32 to vector<32x32xf32>
    %287 = arith.addf %286, %285 : vector<32x32xf32>
    %288 = arith.divf %286, %287 : vector<32x32xf32>
    %289 = vector.extract_strided_slice %282 {offsets = [0, 32], sizes = [32, 32], strides = [1, 1]} : vector<32x128xf32> to vector<32x32xf32>
    %290 = arith.negf %289 : vector<32x32xf32>
    %291 = math.exp %290 : vector<32x32xf32>
    %cst_91 = arith.constant 1.000000e+00 : f32
    %292 = vector.broadcast %cst_91 : f32 to vector<32x32xf32>
    %293 = arith.addf %292, %291 : vector<32x32xf32>
    %294 = arith.divf %292, %293 : vector<32x32xf32>
    %295 = vector.extract_strided_slice %282 {offsets = [0, 64], sizes = [32, 32], strides = [1, 1]} : vector<32x128xf32> to vector<32x32xf32>
    %296 = math.tanh %295 : vector<32x32xf32>
    %297 = vector.extract_strided_slice %282 {offsets = [0, 96], sizes = [32, 32], strides = [1, 1]} : vector<32x128xf32> to vector<32x32xf32>
    %298 = arith.negf %297 : vector<32x32xf32>
    %299 = math.exp %298 : vector<32x32xf32>
    %cst_92 = arith.constant 1.000000e+00 : f32
    %300 = vector.broadcast %cst_92 : f32 to vector<32x32xf32>
    %301 = arith.addf %300, %299 : vector<32x32xf32>
    %302 = arith.divf %300, %301 : vector<32x32xf32>
    %303 = arith.mulf %294, %277 : vector<32x32xf32>
    %304 = arith.mulf %288, %296 : vector<32x32xf32>
    %305 = arith.addf %303, %304 : vector<32x32xf32>
    %306 = math.tanh %305 : vector<32x32xf32>
    %307 = arith.mulf %302, %306 : vector<32x32xf32>
    %c64_93 = arith.constant 64 : index
    %c0_94 = arith.constant 0 : index
    %308 = vector.load %arg11[%c64_93, %c0_94] : memref<256x128xf32, #tpu.memory_space<vmem>>, vector<32x128xf32>
    %cst_95 = arith.constant dense<0.000000e+00> : vector<32x128xf32>
    %309 = tpu.matmul %307, %249, %cst_95 {dimension_numbers = #tpu.dot_dimension_numbers<[1], [0], [0], [1], [0, 0, 1, 1], [], []>} : vector<32x32xf32>, vector<32x128xf32>, vector<32x128xf32> -> vector<32x128xf32>
    %310 = arith.addf %308, %309 : vector<32x128xf32>
    %311 = vector.extract_strided_slice %310 {offsets = [0, 0], sizes = [32, 32], strides = [1, 1]} : vector<32x128xf32> to vector<32x32xf32>
    %312 = arith.negf %311 : vector<32x32xf32>
    %313 = math.exp %312 : vector<32x32xf32>
    %cst_96 = arith.constant 1.000000e+00 : f32
    %314 = vector.broadcast %cst_96 : f32 to vector<32x32xf32>
    %315 = arith.addf %314, %313 : vector<32x32xf32>
    %316 = arith.divf %314, %315 : vector<32x32xf32>
    %317 = vector.extract_strided_slice %310 {offsets = [0, 32], sizes = [32, 32], strides = [1, 1]} : vector<32x128xf32> to vector<32x32xf32>
    %318 = arith.negf %317 : vector<32x32xf32>
    %319 = math.exp %318 : vector<32x32xf32>
    %cst_97 = arith.constant 1.000000e+00 : f32
    %320 = vector.broadcast %cst_97 : f32 to vector<32x32xf32>
    %321 = arith.addf %320, %319 : vector<32x32xf32>
    %322 = arith.divf %320, %321 : vector<32x32xf32>
    %323 = vector.extract_strided_slice %310 {offsets = [0, 64], sizes = [32, 32], strides = [1, 1]} : vector<32x128xf32> to vector<32x32xf32>
    %324 = math.tanh %323 : vector<32x32xf32>
    %325 = vector.extract_strided_slice %310 {offsets = [0, 96], sizes = [32, 32], strides = [1, 1]} : vector<32x128xf32> to vector<32x32xf32>
    %326 = arith.negf %325 : vector<32x32xf32>
    %327 = math.exp %326 : vector<32x32xf32>
    %cst_98 = arith.constant 1.000000e+00 : f32
    %328 = vector.broadcast %cst_98 : f32 to vector<32x32xf32>
    %329 = arith.addf %328, %327 : vector<32x32xf32>
    %330 = arith.divf %328, %329 : vector<32x32xf32>
    %331 = arith.mulf %322, %305 : vector<32x32xf32>
    %332 = arith.mulf %316, %324 : vector<32x32xf32>
    %333 = arith.addf %331, %332 : vector<32x32xf32>
    %334 = math.tanh %333 : vector<32x32xf32>
    %335 = arith.mulf %330, %334 : vector<32x32xf32>
    %c96_99 = arith.constant 96 : index
    %c0_100 = arith.constant 0 : index
    %336 = vector.load %arg11[%c96_99, %c0_100] : memref<256x128xf32, #tpu.memory_space<vmem>>, vector<32x128xf32>
    %cst_101 = arith.constant dense<0.000000e+00> : vector<32x128xf32>
    %337 = tpu.matmul %335, %249, %cst_101 {dimension_numbers = #tpu.dot_dimension_numbers<[1], [0], [0], [1], [0, 0, 1, 1], [], []>} : vector<32x32xf32>, vector<32x128xf32>, vector<32x128xf32> -> vector<32x128xf32>
    %338 = arith.addf %336, %337 : vector<32x128xf32>
    %339 = vector.extract_strided_slice %338 {offsets = [0, 0], sizes = [32, 32], strides = [1, 1]} : vector<32x128xf32> to vector<32x32xf32>
    %340 = arith.negf %339 : vector<32x32xf32>
    %341 = math.exp %340 : vector<32x32xf32>
    %cst_102 = arith.constant 1.000000e+00 : f32
    %342 = vector.broadcast %cst_102 : f32 to vector<32x32xf32>
    %343 = arith.addf %342, %341 : vector<32x32xf32>
    %344 = arith.divf %342, %343 : vector<32x32xf32>
    %345 = vector.extract_strided_slice %338 {offsets = [0, 32], sizes = [32, 32], strides = [1, 1]} : vector<32x128xf32> to vector<32x32xf32>
    %346 = arith.negf %345 : vector<32x32xf32>
    %347 = math.exp %346 : vector<32x32xf32>
    %cst_103 = arith.constant 1.000000e+00 : f32
    %348 = vector.broadcast %cst_103 : f32 to vector<32x32xf32>
    %349 = arith.addf %348, %347 : vector<32x32xf32>
    %350 = arith.divf %348, %349 : vector<32x32xf32>
    %351 = vector.extract_strided_slice %338 {offsets = [0, 64], sizes = [32, 32], strides = [1, 1]} : vector<32x128xf32> to vector<32x32xf32>
    %352 = math.tanh %351 : vector<32x32xf32>
    %353 = vector.extract_strided_slice %338 {offsets = [0, 96], sizes = [32, 32], strides = [1, 1]} : vector<32x128xf32> to vector<32x32xf32>
    %354 = arith.negf %353 : vector<32x32xf32>
    %355 = math.exp %354 : vector<32x32xf32>
    %cst_104 = arith.constant 1.000000e+00 : f32
    %356 = vector.broadcast %cst_104 : f32 to vector<32x32xf32>
    %357 = arith.addf %356, %355 : vector<32x32xf32>
    %358 = arith.divf %356, %357 : vector<32x32xf32>
    %359 = arith.mulf %350, %333 : vector<32x32xf32>
    %360 = arith.mulf %344, %352 : vector<32x32xf32>
    %361 = arith.addf %359, %360 : vector<32x32xf32>
    %362 = math.tanh %361 : vector<32x32xf32>
    %363 = arith.mulf %358, %362 : vector<32x32xf32>
    %c128_105 = arith.constant 128 : index
    %c0_106 = arith.constant 0 : index
    %364 = vector.load %arg11[%c128_105, %c0_106] : memref<256x128xf32, #tpu.memory_space<vmem>>, vector<32x128xf32>
    %cst_107 = arith.constant dense<0.000000e+00> : vector<32x128xf32>
    %365 = tpu.matmul %363, %249, %cst_107 {dimension_numbers = #tpu.dot_dimension_numbers<[1], [0], [0], [1], [0, 0, 1, 1], [], []>} : vector<32x32xf32>, vector<32x128xf32>, vector<32x128xf32> -> vector<32x128xf32>
    %366 = arith.addf %364, %365 : vector<32x128xf32>
    %367 = vector.extract_strided_slice %366 {offsets = [0, 0], sizes = [32, 32], strides = [1, 1]} : vector<32x128xf32> to vector<32x32xf32>
    %368 = arith.negf %367 : vector<32x32xf32>
    %369 = math.exp %368 : vector<32x32xf32>
    %cst_108 = arith.constant 1.000000e+00 : f32
    %370 = vector.broadcast %cst_108 : f32 to vector<32x32xf32>
    %371 = arith.addf %370, %369 : vector<32x32xf32>
    %372 = arith.divf %370, %371 : vector<32x32xf32>
    %373 = vector.extract_strided_slice %366 {offsets = [0, 32], sizes = [32, 32], strides = [1, 1]} : vector<32x128xf32> to vector<32x32xf32>
    %374 = arith.negf %373 : vector<32x32xf32>
    %375 = math.exp %374 : vector<32x32xf32>
    %cst_109 = arith.constant 1.000000e+00 : f32
    %376 = vector.broadcast %cst_109 : f32 to vector<32x32xf32>
    %377 = arith.addf %376, %375 : vector<32x32xf32>
    %378 = arith.divf %376, %377 : vector<32x32xf32>
    %379 = vector.extract_strided_slice %366 {offsets = [0, 64], sizes = [32, 32], strides = [1, 1]} : vector<32x128xf32> to vector<32x32xf32>
    %380 = math.tanh %379 : vector<32x32xf32>
    %381 = vector.extract_strided_slice %366 {offsets = [0, 96], sizes = [32, 32], strides = [1, 1]} : vector<32x128xf32> to vector<32x32xf32>
    %382 = arith.negf %381 : vector<32x32xf32>
    %383 = math.exp %382 : vector<32x32xf32>
    %cst_110 = arith.constant 1.000000e+00 : f32
    %384 = vector.broadcast %cst_110 : f32 to vector<32x32xf32>
    %385 = arith.addf %384, %383 : vector<32x32xf32>
    %386 = arith.divf %384, %385 : vector<32x32xf32>
    %387 = arith.mulf %378, %361 : vector<32x32xf32>
    %388 = arith.mulf %372, %380 : vector<32x32xf32>
    %389 = arith.addf %387, %388 : vector<32x32xf32>
    %390 = math.tanh %389 : vector<32x32xf32>
    %391 = arith.mulf %386, %390 : vector<32x32xf32>
    %c160_111 = arith.constant 160 : index
    %c0_112 = arith.constant 0 : index
    %392 = vector.load %arg11[%c160_111, %c0_112] : memref<256x128xf32, #tpu.memory_space<vmem>>, vector<32x128xf32>
    %cst_113 = arith.constant dense<0.000000e+00> : vector<32x128xf32>
    %393 = tpu.matmul %391, %249, %cst_113 {dimension_numbers = #tpu.dot_dimension_numbers<[1], [0], [0], [1], [0, 0, 1, 1], [], []>} : vector<32x32xf32>, vector<32x128xf32>, vector<32x128xf32> -> vector<32x128xf32>
    %394 = arith.addf %392, %393 : vector<32x128xf32>
    %395 = vector.extract_strided_slice %394 {offsets = [0, 0], sizes = [32, 32], strides = [1, 1]} : vector<32x128xf32> to vector<32x32xf32>
    %396 = arith.negf %395 : vector<32x32xf32>
    %397 = math.exp %396 : vector<32x32xf32>
    %cst_114 = arith.constant 1.000000e+00 : f32
    %398 = vector.broadcast %cst_114 : f32 to vector<32x32xf32>
    %399 = arith.addf %398, %397 : vector<32x32xf32>
    %400 = arith.divf %398, %399 : vector<32x32xf32>
    %401 = vector.extract_strided_slice %394 {offsets = [0, 32], sizes = [32, 32], strides = [1, 1]} : vector<32x128xf32> to vector<32x32xf32>
    %402 = arith.negf %401 : vector<32x32xf32>
    %403 = math.exp %402 : vector<32x32xf32>
    %cst_115 = arith.constant 1.000000e+00 : f32
    %404 = vector.broadcast %cst_115 : f32 to vector<32x32xf32>
    %405 = arith.addf %404, %403 : vector<32x32xf32>
    %406 = arith.divf %404, %405 : vector<32x32xf32>
    %407 = vector.extract_strided_slice %394 {offsets = [0, 64], sizes = [32, 32], strides = [1, 1]} : vector<32x128xf32> to vector<32x32xf32>
    %408 = math.tanh %407 : vector<32x32xf32>
    %409 = vector.extract_strided_slice %394 {offsets = [0, 96], sizes = [32, 32], strides = [1, 1]} : vector<32x128xf32> to vector<32x32xf32>
    %410 = arith.negf %409 : vector<32x32xf32>
    %411 = math.exp %410 : vector<32x32xf32>
    %cst_116 = arith.constant 1.000000e+00 : f32
    %412 = vector.broadcast %cst_116 : f32 to vector<32x32xf32>
    %413 = arith.addf %412, %411 : vector<32x32xf32>
    %414 = arith.divf %412, %413 : vector<32x32xf32>
    %415 = arith.mulf %406, %389 : vector<32x32xf32>
    %416 = arith.mulf %400, %408 : vector<32x32xf32>
    %417 = arith.addf %415, %416 : vector<32x32xf32>
    %418 = math.tanh %417 : vector<32x32xf32>
    %419 = arith.mulf %414, %418 : vector<32x32xf32>
    %c192_117 = arith.constant 192 : index
    %c0_118 = arith.constant 0 : index
    %420 = vector.load %arg11[%c192_117, %c0_118] : memref<256x128xf32, #tpu.memory_space<vmem>>, vector<32x128xf32>
    %cst_119 = arith.constant dense<0.000000e+00> : vector<32x128xf32>
    %421 = tpu.matmul %419, %249, %cst_119 {dimension_numbers = #tpu.dot_dimension_numbers<[1], [0], [0], [1], [0, 0, 1, 1], [], []>} : vector<32x32xf32>, vector<32x128xf32>, vector<32x128xf32> -> vector<32x128xf32>
    %422 = arith.addf %420, %421 : vector<32x128xf32>
    %423 = vector.extract_strided_slice %422 {offsets = [0, 0], sizes = [32, 32], strides = [1, 1]} : vector<32x128xf32> to vector<32x32xf32>
    %424 = arith.negf %423 : vector<32x32xf32>
    %425 = math.exp %424 : vector<32x32xf32>
    %cst_120 = arith.constant 1.000000e+00 : f32
    %426 = vector.broadcast %cst_120 : f32 to vector<32x32xf32>
    %427 = arith.addf %426, %425 : vector<32x32xf32>
    %428 = arith.divf %426, %427 : vector<32x32xf32>
    %429 = vector.extract_strided_slice %422 {offsets = [0, 32], sizes = [32, 32], strides = [1, 1]} : vector<32x128xf32> to vector<32x32xf32>
    %430 = arith.negf %429 : vector<32x32xf32>
    %431 = math.exp %430 : vector<32x32xf32>
    %cst_121 = arith.constant 1.000000e+00 : f32
    %432 = vector.broadcast %cst_121 : f32 to vector<32x32xf32>
    %433 = arith.addf %432, %431 : vector<32x32xf32>
    %434 = arith.divf %432, %433 : vector<32x32xf32>
    %435 = vector.extract_strided_slice %422 {offsets = [0, 64], sizes = [32, 32], strides = [1, 1]} : vector<32x128xf32> to vector<32x32xf32>
    %436 = math.tanh %435 : vector<32x32xf32>
    %437 = vector.extract_strided_slice %422 {offsets = [0, 96], sizes = [32, 32], strides = [1, 1]} : vector<32x128xf32> to vector<32x32xf32>
    %438 = arith.negf %437 : vector<32x32xf32>
    %439 = math.exp %438 : vector<32x32xf32>
    %cst_122 = arith.constant 1.000000e+00 : f32
    %440 = vector.broadcast %cst_122 : f32 to vector<32x32xf32>
    %441 = arith.addf %440, %439 : vector<32x32xf32>
    %442 = arith.divf %440, %441 : vector<32x32xf32>
    %443 = arith.mulf %434, %417 : vector<32x32xf32>
    %444 = arith.mulf %428, %436 : vector<32x32xf32>
    %445 = arith.addf %443, %444 : vector<32x32xf32>
    %446 = math.tanh %445 : vector<32x32xf32>
    %447 = arith.mulf %442, %446 : vector<32x32xf32>
    %c224_123 = arith.constant 224 : index
    %c0_124 = arith.constant 0 : index
    %448 = vector.load %arg11[%c224_123, %c0_124] : memref<256x128xf32, #tpu.memory_space<vmem>>, vector<32x128xf32>
    %cst_125 = arith.constant dense<0.000000e+00> : vector<32x128xf32>
    %449 = tpu.matmul %447, %249, %cst_125 {dimension_numbers = #tpu.dot_dimension_numbers<[1], [0], [0], [1], [0, 0, 1, 1], [], []>} : vector<32x32xf32>, vector<32x128xf32>, vector<32x128xf32> -> vector<32x128xf32>
    %450 = arith.addf %448, %449 : vector<32x128xf32>
    %451 = vector.extract_strided_slice %450 {offsets = [0, 0], sizes = [32, 32], strides = [1, 1]} : vector<32x128xf32> to vector<32x32xf32>
    %452 = arith.negf %451 : vector<32x32xf32>
    %453 = math.exp %452 : vector<32x32xf32>
    %cst_126 = arith.constant 1.000000e+00 : f32
    %454 = vector.broadcast %cst_126 : f32 to vector<32x32xf32>
    %455 = arith.addf %454, %453 : vector<32x32xf32>
    %456 = arith.divf %454, %455 : vector<32x32xf32>
    %457 = vector.extract_strided_slice %450 {offsets = [0, 32], sizes = [32, 32], strides = [1, 1]} : vector<32x128xf32> to vector<32x32xf32>
    %458 = arith.negf %457 : vector<32x32xf32>
    %459 = math.exp %458 : vector<32x32xf32>
    %cst_127 = arith.constant 1.000000e+00 : f32
    %460 = vector.broadcast %cst_127 : f32 to vector<32x32xf32>
    %461 = arith.addf %460, %459 : vector<32x32xf32>
    %462 = arith.divf %460, %461 : vector<32x32xf32>
    %463 = vector.extract_strided_slice %450 {offsets = [0, 64], sizes = [32, 32], strides = [1, 1]} : vector<32x128xf32> to vector<32x32xf32>
    %464 = math.tanh %463 : vector<32x32xf32>
    %465 = vector.extract_strided_slice %450 {offsets = [0, 96], sizes = [32, 32], strides = [1, 1]} : vector<32x128xf32> to vector<32x32xf32>
    %466 = arith.negf %465 : vector<32x32xf32>
    %467 = math.exp %466 : vector<32x32xf32>
    %cst_128 = arith.constant 1.000000e+00 : f32
    %468 = vector.broadcast %cst_128 : f32 to vector<32x32xf32>
    %469 = arith.addf %468, %467 : vector<32x32xf32>
    %470 = arith.divf %468, %469 : vector<32x32xf32>
    %471 = arith.mulf %462, %445 : vector<32x32xf32>
    %472 = arith.mulf %456, %464 : vector<32x32xf32>
    %473 = arith.addf %471, %472 : vector<32x32xf32>
    %474 = math.tanh %473 : vector<32x32xf32>
    %475 = arith.mulf %470, %474 : vector<32x32xf32>
    %c0_129 = arith.constant 0 : index
    %c0_130 = arith.constant 0 : index
    %476 = vector.load %arg8[%c0_129, %c0_130] : memref<32x16xf32, #tpu.memory_space<vmem>>, vector<32x16xf32>
    %cst_131 = arith.constant dense<0.000000e+00> : vector<32x16xf32>
    %477 = tpu.matmul %475, %476, %cst_131 {dimension_numbers = #tpu.dot_dimension_numbers<[1], [0], [0], [1], [0, 0, 1, 1], [], []>} : vector<32x32xf32>, vector<32x16xf32>, vector<32x16xf32> -> vector<32x16xf32>
    %c0_132 = arith.constant 0 : index
    %c0_133 = arith.constant 0 : index
    %478 = vector.load %arg9[%c0_132, %c0_133] : memref<1x16xf32, #tpu.memory_space<vmem>>, vector<1x16xf32>
    %479 = vector.broadcast %478 : vector<1x16xf32> to vector<32x16xf32>
    %480 = arith.addf %477, %479 : vector<32x16xf32>
    %c0_134 = arith.constant 0 : index
    %c0_135 = arith.constant 0 : index
    %481 = vector.load %arg10[%c0_134, %c0_135] : memref<32x16xf32, #tpu.memory_space<vmem>>, vector<32x16xf32>
    tpu.vector_store %arg10[%c0_134, %c0_135], %480 {strides = array<i32>} : memref<32x16xf32, #tpu.memory_space<vmem>>, vector<32x16xf32>,
    return
  }
  func.func @transform_0(%arg0: i32) -> (i32, i32) {
    %c0_i32 = arith.constant 0 : i32
    %c0_i32_0 = arith.constant 0 : i32
    %c0_i32_1 = arith.constant 0 : i32
    return %c0_i32, %c0_i32_0 : i32, i32
  }
  func.func @transform_1(%arg0: i32) -> (i32, i32) {
    %c0_i32 = arith.constant 0 : i32
    %c0_i32_0 = arith.constant 0 : i32
    %c0_i32_1 = arith.constant 0 : i32
    return %c0_i32, %c0_i32_0 : i32, i32
  }
  func.func @transform_2(%arg0: i32) -> (i32, i32) {
    %c0_i32 = arith.constant 0 : i32
    %c0_i32_0 = arith.constant 0 : i32
    %c0_i32_1 = arith.constant 0 : i32
    return %c0_i32, %c0_i32_0 : i32, i32
  }
  func.func @transform_3(%arg0: i32) -> (i32, i32) {
    %c0_i32 = arith.constant 0 : i32
    %c0_i32_0 = arith.constant 0 : i32
    %c0_i32_1 = arith.constant 0 : i32
    return %c0_i32, %c0_i32_0 : i32, i32
  }
  func.func @transform_4(%arg0: i32) -> (i32, i32) {
    %c0_i32 = arith.constant 0 : i32
    %c0_i32_0 = arith.constant 0 : i32
    %c0_i32_1 = arith.constant 0 : i32
    return %c0_i32, %c0_i32_0 : i32, i32
  }
  func.func @transform_5(%arg0: i32) -> (i32, i32) {
    %c0_i32 = arith.constant 0 : i32
    %c0_i32_0 = arith.constant 0 : i32
    %c0_i32_1 = arith.constant 0 : i32
    return %c0_i32, %c0_i32_0 : i32, i32
  }
  func.func @transform_6(%arg0: i32) -> (i32, i32) {
    %c0_i32 = arith.constant 0 : i32
    %c0_i32_0 = arith.constant 0 : i32
    %c0_i32_1 = arith.constant 0 : i32
    return %c0_i32, %c0_i32_0 : i32, i32
  }
  func.func @transform_7(%arg0: i32) -> (i32, i32) {
    %c0_i32 = arith.constant 0 : i32
    %c0_i32_0 = arith.constant 0 : i32
    %c0_i32_1 = arith.constant 0 : i32
    return %c0_i32, %c0_i32_0 : i32, i32
  }
  func.func @transform_8(%arg0: i32) -> (i32, i32) {
    %c0_i32 = arith.constant 0 : i32
    %c0_i32_0 = arith.constant 0 : i32
    %c0_i32_1 = arith.constant 0 : i32
    return %c0_i32, %c0_i32_0 : i32, i32
  }
  func.func @transform_9(%arg0: i32) -> (i32, i32) {
    %c0_i32 = arith.constant 0 : i32
    %c0_i32_0 = arith.constant 0 : i32
    %c0_i32_1 = arith.constant 0 : i32
    return %c0_i32, %c0_i32_0 : i32, i32
  }
}

</mosaic_0001>

<llo_original>
// kernel: tpu_custom_call.1
$region0: #{tpu_custom_call.1}
  #allocation0 [shape = 'u32[]', space=smem, size = 0x4, offset = 0x4, fixed_abs, tag = 'smem constant byte address 0x4 - core index']
  #allocation1 [shape = 'u32[144,128]{1,0:T(1,128)}', space=vmem, size = 0x12000, scoped, tag = 'internal scratch']
  #allocation2 [shape = 'f32[256,128]{1,0:T(8,128)}', space=vmem, size = 0x20000, scoped, tag = 'scratch operand']
  #allocation3 [shape = 'f32[256,32]{1,0:T(8,128)}', space=vmem, size = 0x20000, scoped, tag = 'scratch operand']
  %s0 = inlined_call_operand.vmem [shape: f32[256,4], index: 0, kind: input, shape index: {}]
  %s1 = inlined_call_operand.vmem [shape: f32[4,128], index: 1, kind: input, shape index: {}]
  %s2 = inlined_call_operand.vmem [shape: f32[32,128], index: 2, kind: input, shape index: {}]
  %s3 = inlined_call_operand.vmem [shape: f32[1,128], index: 3, kind: input, shape index: {}]
  %s4 = inlined_call_operand.vmem [shape: f32[32,128], index: 4, kind: input, shape index: {}]
  %s5 = inlined_call_operand.vmem [shape: f32[32,128], index: 5, kind: input, shape index: {}]
  %s6 = inlined_call_operand.vmem [shape: f32[1,128], index: 6, kind: input, shape index: {}]
  %s7 = inlined_call_operand.vmem [shape: f32[32,16], index: 7, kind: input, shape index: {}]
  %s8 = inlined_call_operand.vmem [shape: f32[1,16], index: 8, kind: input, shape index: {}]
  %s9 = inlined_call_operand.vmem [shape: f32[32,16], index: 9, kind: output, shape index: {}]
  %s10 = sld [smem:[#allocation0]]
  $region46: #{tpu_custom_call.1} parent=0
    _
  %s12 = ssub.s32 1, %s10
  %s13 = scalar_select 0, %s12, %s10
  // Predicated region
  $region2: #{tpu_custom_call.1} parent=0 // pred_check
    _
  $region3: #{tpu_custom_call.1} parent=0 // pred_check_branch
    %15 = sbr.rel (0) target = $region5
  $region4: #{tpu_custom_call.1} parent=0 // pred_region
    _
  $region5: #{tpu_custom_call.1} parent=0 // pred_fallthru
    _
  // Predicated region
  $region6: #{tpu_custom_call.1} parent=0 // pred_check
    _
  $region7: #{tpu_custom_call.1} parent=0 // pred_check_branch
    %17 = sbr.rel (0) target = $region9
  $region8: #{tpu_custom_call.1} parent=0 // pred_region
    _
  $region9: #{tpu_custom_call.1} parent=0 // pred_fallthru
    _
  // Predicated region
  $region10: #{tpu_custom_call.1} parent=0 // pred_check
    _
  $region11: #{tpu_custom_call.1} parent=0 // pred_check_branch
    %19 = sbr.rel (0) target = $region13
  $region12: #{tpu_custom_call.1} parent=0 // pred_region
    _
  $region13: #{tpu_custom_call.1} parent=0 // pred_fallthru
    _
  // Predicated region
  $region14: #{tpu_custom_call.1} parent=0 // pred_check
    _
  $region15: #{tpu_custom_call.1} parent=0 // pred_check_branch
    %21 = sbr.rel (0) target = $region17
  $region16: #{tpu_custom_call.1} parent=0 // pred_region
    _
  $region17: #{tpu_custom_call.1} parent=0 // pred_fallthru
    _
  // Predicated region
  $region18: #{tpu_custom_call.1} parent=0 // pred_check
    _
  $region19: #{tpu_custom_call.1} parent=0 // pred_check_branch
    %23 = sbr.rel (0) target = $region21
  $region20: #{tpu_custom_call.1} parent=0 // pred_region
    _
  $region21: #{tpu_custom_call.1} parent=0 // pred_fallthru
    _
  // Predicated region
  $region22: #{tpu_custom_call.1} parent=0 // pred_check
    _
  $region23: #{tpu_custom_call.1} parent=0 // pred_check_branch
    %25 = sbr.rel (0) target = $region25
  $region24: #{tpu_custom_call.1} parent=0 // pred_region
    _
  $region25: #{tpu_custom_call.1} parent=0 // pred_fallthru
    _
  // Predicated region
  $region26: #{tpu_custom_call.1} parent=0 // pred_check
    _
  $region27: #{tpu_custom_call.1} parent=0 // pred_check_branch
    %27 = sbr.rel (0) target = $region29
  $region28: #{tpu_custom_call.1} parent=0 // pred_region
    _
  $region29: #{tpu_custom_call.1} parent=0 // pred_fallthru
    _
  // Predicated region
  $region30: #{tpu_custom_call.1} parent=0 // pred_check
    _
  $region31: #{tpu_custom_call.1} parent=0 // pred_check_branch
    %29 = sbr.rel (0) target = $region33
  $region32: #{tpu_custom_call.1} parent=0 // pred_region
    _
  $region33: #{tpu_custom_call.1} parent=0 // pred_fallthru
    _
  // Predicated region
  $region34: #{tpu_custom_call.1} parent=0 // pred_check
    _
  $region35: #{tpu_custom_call.1} parent=0 // pred_check_branch
    %31 = sbr.rel (0) target = $region37
  $region36: #{tpu_custom_call.1} parent=0 // pred_region
    _
  $region37: #{tpu_custom_call.1} parent=0 // pred_fallthru
    _
  %v32 = vld [vmem:[%s0] sm:$0xff]
  %v33 = vld [vmem:[%s0 + $0x8] sm:$0xff]
  %v34 = vld [vmem:[%s0 + $0x10] sm:$0xff]
  %v35 = vld [vmem:[%s0 + $0x18] sm:$0xff]
  %v36 = vld [vmem:[%s0 + $0x20] sm:$0xff]
  %v37 = vld [vmem:[%s0 + $0x28] sm:$0xff]
  %v38 = vld [vmem:[%s0 + $0x30] sm:$0xff]
  %v39 = vld [vmem:[%s0 + $0x38] sm:$0xff]
  %v40 = vld [vmem:[%s0 + $0x40] sm:$0xff]
  %v41 = vld [vmem:[%s0 + $0x48] sm:$0xff]
  %v42 = vld [vmem:[%s0 + $0x50] sm:$0xff]
  %v43 = vld [vmem:[%s0 + $0x58] sm:$0xff]
  %v44 = vld [vmem:[%s0 + $0x60] sm:$0xff]
  %v45 = vld [vmem:[%s0 + $0x68] sm:$0xff]
  %v46 = vld [vmem:[%s0 + $0x70] sm:$0xff]
  %v47 = vld [vmem:[%s0 + $0x78] sm:$0xff]
  %v48 = vld [vmem:[%s0 + $0x80] sm:$0xff]
  %v49 = vld [vmem:[%s0 + $0x88] sm:$0xff]
  %v50 = vld [vmem:[%s0 + $0x90] sm:$0xff]
  %v51 = vld [vmem:[%s0 + $0x98] sm:$0xff]
  %v52 = vld [vmem:[%s0 + $0xa0] sm:$0xff]
  %v53 = vld [vmem:[%s0 + $0xa8] sm:$0xff]
  %v54 = vld [vmem:[%s0 + $0xb0] sm:$0xff]
  %v55 = vld [vmem:[%s0 + $0xb8] sm:$0xff]
  %v56 = vld [vmem:[%s0 + $0xc0] sm:$0xff]
  %v57 = vld [vmem:[%s0 + $0xc8] sm:$0xff]
  %v58 = vld [vmem:[%s0 + $0xd0] sm:$0xff]
  %v59 = vld [vmem:[%s0 + $0xd8] sm:$0xff]
  %v60 = vld [vmem:[%s0 + $0xe0] sm:$0xff]
  %v61 = vld [vmem:[%s0 + $0xe8] sm:$0xff]
  %v62 = vld [vmem:[%s0 + $0xf0] sm:$0xff]
  %v63 = vld [vmem:[%s0 + $0xf8] sm:$0xff]
  %v64 = vld [vmem:[%s1] sm:$0xf]
  %v65 = vld [vmem:[%s3] sm:$0x1]
  %v67 = vlaneseq
  %v68 = vshrl.u32 %v67, 7
  %v69 = vsub.s32 0, %v68
  %v70 = vrot.slane %v65, %v69
  %vm72 = vcmask 31744
  %v74 = vsel %vm72, %v32, 0
  %v77 = vsel %vm72, %v33, 0
  %v80 = vsel %vm72, %v34, 0
  %v83 = vsel %vm72, %v35, 0
  %v86 = vsel %vm72, %v36, 0
  %v89 = vsel %vm72, %v37, 0
  %v92 = vsel %vm72, %v38, 0
  %v95 = vsel %vm72, %v39, 0
  %v98 = vsel %vm72, %v40, 0
  %v101 = vsel %vm72, %v41, 0
  %v104 = vsel %vm72, %v42, 0
  %v107 = vsel %vm72, %v43, 0
  %v110 = vsel %vm72, %v44, 0
  %v113 = vsel %vm72, %v45, 0
  %v116 = vsel %vm72, %v46, 0
  %v119 = vsel %vm72, %v47, 0
  %v122 = vsel %vm72, %v48, 0
  %v125 = vsel %vm72, %v49, 0
  %v128 = vsel %vm72, %v50, 0
  %v131 = vsel %vm72, %v51, 0
  %v134 = vsel %vm72, %v52, 0
  %v137 = vsel %vm72, %v53, 0
  %v140 = vsel %vm72, %v54, 0
  %v143 = vsel %vm72, %v55, 0
  %v146 = vsel %vm72, %v56, 0
  %v149 = vsel %vm72, %v57, 0
  %v152 = vsel %vm72, %v58, 0
  %v155 = vsel %vm72, %v59, 0
  %v158 = vsel %vm72, %v60, 0
  %v161 = vsel %vm72, %v61, 0
  %v164 = vsel %vm72, %v62, 0
  %v167 = vsel %vm72, %v63, 0
  %vm169 = vcmask 1043456
  %v171 = vsel %vm169, %v64, 0
  %173 = vmatprep.subr.mxu0 0.0
  %174 = vmatpush1.msra.mxu0 %v171
  %175 = vmatprep.subr.mxu0 0.0
  %176 = vmatpush1.msra.mxu0 0.0
  %177 = vmatprep.subr.mxu0 0.0
  %178 = vmatpush1.msra.mxu0 0.0
  %179 = vmatprep.subr.mxu0 0.0
  %180 = vmatpush1.msra.mxu0 0.0
  %181 = vmatprep.subr.mxu0 0.0
  %182 = vmatpush1.msra.mxu0 0.0
  %183 = vmatprep.subr.mxu0 0.0
  %184 = vmatpush1.msra.mxu0 0.0
  %185 = vmatprep.subr.mxu0 0.0
  %186 = vmatpush1.msra.mxu0 0.0
  %187 = vmatprep.subr.mxu0 0.0
  %188 = vmatpush1.msra.mxu0 0.0
  %189 = vmatprep.subr.mxu0 0.0
  %190 = vmatpush1.msra.mxu0 0.0
  %191 = vmatprep.subr.mxu0 0.0
  %192 = vmatpush1.msra.mxu0 0.0
  %193 = vmatprep.subr.mxu0 0.0
  %194 = vmatpush1.msra.mxu0 0.0
  %195 = vmatprep.subr.mxu0 0.0
  %196 = vmatpush1.msra.mxu0 0.0
  %197 = vmatprep.subr.mxu0 0.0
  %198 = vmatpush1.msra.mxu0 0.0
  %199 = vmatprep.subr.mxu0 0.0
  %200 = vmatpush1.msra.mxu0 0.0
  %201 = vmatprep.subr.mxu0 0.0
  %202 = vmatpush1.msra.mxu0 0.0
  %203 = vmatprep.subr.mxu0 0.0
  %204 = vmatpush1.msra.mxu0 0.0
  %205 = vmatprep.subr.mxu0 0.0
  %206 = vmatpush1.msra.mxu0 0.0
  %207 = vmatprep.subr.mxu0 0.0
  %208 = vmatpush1.msra.mxu0 0.0
  %209 = vmatprep.subr.mxu0 0.0
  %210 = vmatpush1.msra.mxu0 0.0
  %211 = vmatprep.subr.mxu0 0.0
  %212 = vmatpush1.msra.mxu0 0.0
  %213 = vmatprep.subr.mxu0 0.0
  %214 = vmatpush1.msra.mxu0 0.0
  %215 = vmatprep.subr.mxu0 0.0
  %216 = vmatpush1.msra.mxu0 0.0
  %217 = vmatprep.subr.mxu0 0.0
  %218 = vmatpush1.msra.mxu0 0.0
  %219 = vmatprep.subr.mxu0 0.0
  %220 = vmatpush1.msra.mxu0 0.0
  %221 = vmatprep.subr.mxu0 0.0
  %222 = vmatpush1.msra.mxu0 0.0
  %223 = vmatprep.subr.mxu0 0.0
  %224 = vmatpush1.msra.mxu0 0.0
  %225 = vmatprep.subr.mxu0 0.0
  %226 = vmatpush1.msra.mxu0 0.0
  %227 = vmatprep.subr.mxu0 0.0
  %228 = vmatpush1.msra.mxu0 0.0
  %229 = vmatprep.subr.mxu0 0.0
  %230 = vmatpush1.msra.mxu0 0.0
  %231 = vmatprep.subr.mxu0 0.0
  %232 = vmatpush1.msra.mxu0 0.0
  %233 = vmatprep.subr.mxu0 0.0
  %234 = vmatpush1.msra.mxu0 0.0
  %235 = vmatprep.subr.mxu0 0.0
  %236 = vmatpush1.msra.mxu0 0.0
  %237 = vmatprep.mubr.f32.mxu0 0.0
  %238 = vmatmul.mubr.f32.gmra.mrb[0].mxu0 %v74
  %v239 = vpop.f32.mrb[0].mxu0
  %v240 = vadd.f32 %v70, %v239
  %v241 = vpop.f32.mrb[0].mxu0
  %242 = vmatprep.mubr.f32.mxu0 0.0
  %243 = vmatmul.mubr.f32.gmra.mrb[0].mxu0 %v77
  %v244 = vpop.f32.mrb[0].mxu0
  %v245 = vadd.f32 %v70, %v244
  %v246 = vpop.f32.mrb[0].mxu0
  %247 = vmatprep.mubr.f32.mxu0 0.0
  %248 = vmatmul.mubr.f32.gmra.mrb[0].mxu0 %v80
  %v249 = vpop.f32.mrb[0].mxu0
  %v250 = vadd.f32 %v70, %v249
  %v251 = vpop.f32.mrb[0].mxu0
  %252 = vmatprep.mubr.f32.mxu0 0.0
  %253 = vmatmul.mubr.f32.gmra.mrb[0].mxu0 %v83
  %v254 = vpop.f32.mrb[0].mxu0
  %v255 = vadd.f32 %v70, %v254
  %v256 = vpop.f32.mrb[0].mxu0
  %257 = vmatprep.mubr.f32.mxu0 0.0
  %258 = vmatmul.mubr.f32.gmra.mrb[0].mxu0 %v86
  %v259 = vpop.f32.mrb[0].mxu0
  %v260 = vadd.f32 %v70, %v259
  %v261 = vpop.f32.mrb[0].mxu0
  %262 = vmatprep.mubr.f32.mxu0 0.0
  %263 = vmatmul.mubr.f32.gmra.mrb[0].mxu0 %v89
  %v264 = vpop.f32.mrb[0].mxu0
  %v265 = vadd.f32 %v70, %v264
  %v266 = vpop.f32.mrb[0].mxu0
  %267 = vmatprep.mubr.f32.mxu0 0.0
  %268 = vmatmul.mubr.f32.gmra.mrb[0].mxu0 %v92
  %v269 = vpop.f32.mrb[0].mxu0
  %v270 = vadd.f32 %v70, %v269
  %v271 = vpop.f32.mrb[0].mxu0
  %272 = vmatprep.mubr.f32.mxu0 0.0
  %273 = vmatmul.mubr.f32.gmra.mrb[0].mxu0 %v95
  %v274 = vpop.f32.mrb[0].mxu0
  %v275 = vadd.f32 %v70, %v274
  %v276 = vpop.f32.mrb[0].mxu0
  %277 = vmatprep.mubr.f32.mxu0 0.0
  %278 = vmatmul.mubr.f32.gmra.mrb[0].mxu0 %v98
  %v279 = vpop.f32.mrb[0].mxu0
  %v280 = vadd.f32 %v70, %v279
  %v281 = vpop.f32.mrb[0].mxu0
  %282 = vmatprep.mubr.f32.mxu0 0.0
  %283 = vmatmul.mubr.f32.gmra.mrb[0].mxu0 %v101
  %v284 = vpop.f32.mrb[0].mxu0
  %v285 = vadd.f32 %v70, %v284
  %v286 = vpop.f32.mrb[0].mxu0
  %287 = vmatprep.mubr.f32.mxu0 0.0
  %288 = vmatmul.mubr.f32.gmra.mrb[0].mxu0 %v104
  %v289 = vpop.f32.mrb[0].mxu0
  %v290 = vadd.f32 %v70, %v289
  %v291 = vpop.f32.mrb[0].mxu0
  %292 = vmatprep.mubr.f32.mxu0 0.0
  %293 = vmatmul.mubr.f32.gmra.mrb[0].mxu0 %v107
  %v294 = vpop.f32.mrb[0].mxu0
  %v295 = vadd.f32 %v70, %v294
  %v296 = vpop.f32.mrb[0].mxu0
  %297 = vmatprep.mubr.f32.mxu0 0.0
  %298 = vmatmul.mubr.f32.gmra.mrb[0].mxu0 %v110
  %v299 = vpop.f32.mrb[0].mxu0
  %v300 = vadd.f32 %v70, %v299
  %v301 = vpop.f32.mrb[0].mxu0
  %302 = vmatprep.mubr.f32.mxu0 0.0
  %303 = vmatmul.mubr.f32.gmra.mrb[0].mxu0 %v113
  %v304 = vpop.f32.mrb[0].mxu0
  %v305 = vadd.f32 %v70, %v304
  %v306 = vpop.f32.mrb[0].mxu0
  %307 = vmatprep.mubr.f32.mxu0 0.0
  %308 = vmatmul.mubr.f32.gmra.mrb[0].mxu0 %v116
  %v309 = vpop.f32.mrb[0].mxu0
  %v310 = vadd.f32 %v70, %v309
  %v311 = vpop.f32.mrb[0].mxu0
  %312 = vmatprep.mubr.f32.mxu0 0.0
  %313 = vmatmul.mubr.f32.gmra.mrb[0].mxu0 %v119
  %v314 = vpop.f32.mrb[0].mxu0
  %v315 = vadd.f32 %v70, %v314
  %v316 = vpop.f32.mrb[0].mxu0
  %317 = vmatprep.mubr.f32.mxu0 0.0
  %318 = vmatmul.mubr.f32.gmra.mrb[0].mxu0 %v122
  %v319 = vpop.f32.mrb[0].mxu0
  %v320 = vadd.f32 %v70, %v319
  %v321 = vpop.f32.mrb[0].mxu0
  %322 = vmatprep.mubr.f32.mxu0 0.0
  %323 = vmatmul.mubr.f32.gmra.mrb[0].mxu0 %v125
  %v324 = vpop.f32.mrb[0].mxu0
  %v325 = vadd.f32 %v70, %v324
  %v326 = vpop.f32.mrb[0].mxu0
  %327 = vmatprep.mubr.f32.mxu0 0.0
  %328 = vmatmul.mubr.f32.gmra.mrb[0].mxu0 %v128
  %v329 = vpop.f32.mrb[0].mxu0
  %v330 = vadd.f32 %v70, %v329
  %v331 = vpop.f32.mrb[0].mxu0
  %332 = vmatprep.mubr.f32.mxu0 0.0
  %333 = vmatmul.mubr.f32.gmra.mrb[0].mxu0 %v131
  %v334 = vpop.f32.mrb[0].mxu0
  %v335 = vadd.f32 %v70, %v334
  %v336 = vpop.f32.mrb[0].mxu0
  %337 = vmatprep.mubr.f32.mxu0 0.0
  %338 = vmatmul.mubr.f32.gmra.mrb[0].mxu0 %v134
  %v339 = vpop.f32.mrb[0].mxu0
  %v340 = vadd.f32 %v70, %v339
  %v341 = vpop.f32.mrb[0].mxu0
  %342 = vmatprep.mubr.f32.mxu0 0.0
  %343 = vmatmul.mubr.f32.gmra.mrb[0].mxu0 %v137
  %v344 = vpop.f32.mrb[0].mxu0
  %v345 = vadd.f32 %v70, %v344
  %v346 = vpop.f32.mrb[0].mxu0
  %347 = vmatprep.mubr.f32.mxu0 0.0
  %348 = vmatmul.mubr.f32.gmra.mrb[0].mxu0 %v140
  %v349 = vpop.f32.mrb[0].mxu0
  %v350 = vadd.f32 %v70, %v349
  %v351 = vpop.f32.mrb[0].mxu0
  %352 = vmatprep.mubr.f32.mxu0 0.0
  %353 = vmatmul.mubr.f32.gmra.mrb[0].mxu0 %v143
  %v354 = vpop.f32.mrb[0].mxu0
  %v355 = vadd.f32 %v70, %v354
  %v356 = vpop.f32.mrb[0].mxu0
  %357 = vmatprep.mubr.f32.mxu0 0.0
  %358 = vmatmul.mubr.f32.gmra.mrb[0].mxu0 %v146
  %v359 = vpop.f32.mrb[0].mxu0
  %v360 = vadd.f32 %v70, %v359
  %v361 = vpop.f32.mrb[0].mxu0
  %362 = vmatprep.mubr.f32.mxu0 0.0
  %363 = vmatmul.mubr.f32.gmra.mrb[0].mxu0 %v149
  %v364 = vpop.f32.mrb[0].mxu0
  %v365 = vadd.f32 %v70, %v364
  %v366 = vpop.f32.mrb[0].mxu0
  %367 = vmatprep.mubr.f32.mxu0 0.0
  %368 = vmatmul.mubr.f32.gmra.mrb[0].mxu0 %v152
  %v369 = vpop.f32.mrb[0].mxu0
  %v370 = vadd.f32 %v70, %v369
  %v371 = vpop.f32.mrb[0].mxu0
  %372 = vmatprep.mubr.f32.mxu0 0.0
  %373 = vmatmul.mubr.f32.gmra.mrb[0].mxu0 %v155
  %v374 = vpop.f32.mrb[0].mxu0
  %v375 = vadd.f32 %v70, %v374
  %v376 = vpop.f32.mrb[0].mxu0
  %377 = vmatprep.mubr.f32.mxu0 0.0
  %378 = vmatmul.mubr.f32.gmra.mrb[0].mxu0 %v158
  %v379 = vpop.f32.mrb[0].mxu0
  %v380 = vadd.f32 %v70, %v379
  %v381 = vpop.f32.mrb[0].mxu0
  %382 = vmatprep.mubr.f32.mxu0 0.0
  %383 = vmatmul.mubr.f32.gmra.mrb[0].mxu0 %v161
  %v384 = vpop.f32.mrb[0].mxu0
  %v385 = vadd.f32 %v70, %v384
  %v386 = vpop.f32.mrb[0].mxu0
  %387 = vmatprep.mubr.f32.mxu0 0.0
  %388 = vmatmul.mubr.f32.gmra.mrb[0].mxu0 %v164
  %v389 = vpop.f32.mrb[0].mxu0
  %v390 = vadd.f32 %v70, %v389
  %v391 = vpop.f32.mrb[0].mxu0
  %392 = vmatprep.mubr.f32.mxu0 0.0
  %393 = vmatmul.mubr.f32.gmra.mrb[0].mxu0 %v167
  %v394 = vpop.f32.mrb[0].mxu0
  %v395 = vadd.f32 %v70, %v394
  %v396 = vpop.f32.mrb[0].mxu0
  %397 = vdwg.mxu0
  %398 = vst [vmem:[#allocation2] sm:$0xff] %v240
  %399 = vst [vmem:[#allocation2 + $0x8] sm:$0xff] %v245
  %400 = vst [vmem:[#allocation2 + $0x10] sm:$0xff] %v250
  %401 = vst [vmem:[#allocation2 + $0x18] sm:$0xff] %v255
  %402 = vst [vmem:[#allocation2 + $0x20] sm:$0xff] %v260
  %403 = vst [vmem:[#allocation2 + $0x28] sm:$0xff] %v265
  %404 = vst [vmem:[#allocation2 + $0x30] sm:$0xff] %v270
  %405 = vst [vmem:[#allocation2 + $0x38] sm:$0xff] %v275
  %406 = vst [vmem:[#allocation2 + $0x40] sm:$0xff] %v280
  %407 = vst [vmem:[#allocation2 + $0x48] sm:$0xff] %v285
  %408 = vst [vmem:[#allocation2 + $0x50] sm:$0xff] %v290
  %409 = vst [vmem:[#allocation2 + $0x58] sm:$0xff] %v295
  %410 = vst [vmem:[#allocation2 + $0x60] sm:$0xff] %v300
  %411 = vst [vmem:[#allocation2 + $0x68] sm:$0xff] %v305
  %412 = vst [vmem:[#allocation2 + $0x70] sm:$0xff] %v310
  %413 = vst [vmem:[#allocation2 + $0x78] sm:$0xff] %v315
  %414 = vst [vmem:[#allocation2 + $0x80] sm:$0xff] %v320
  %415 = vst [vmem:[#allocation2 + $0x88] sm:$0xff] %v325
  %416 = vst [vmem:[#allocation2 + $0x90] sm:$0xff] %v330
  %417 = vst [vmem:[#allocation2 + $0x98] sm:$0xff] %v335
  %418 = vst [vmem:[#allocation2 + $0xa0] sm:$0xff] %v340
  %419 = vst [vmem:[#allocation2 + $0xa8] sm:$0xff] %v345
  %420 = vst [vmem:[#allocation2 + $0xb0] sm:$0xff] %v350
  %421 = vst [vmem:[#allocation2 + $0xb8] sm:$0xff] %v355
  %422 = vst [vmem:[#allocation2 + $0xc0] sm:$0xff] %v360
  %423 = vst [vmem:[#allocation2 + $0xc8] sm:$0xff] %v365
  %424 = vst [vmem:[#allocation2 + $0xd0] sm:$0xff] %v370
  %425 = vst [vmem:[#allocation2 + $0xd8] sm:$0xff] %v375
  %426 = vst [vmem:[#allocation2 + $0xe0] sm:$0xff] %v380
  %427 = vst [vmem:[#allocation2 + $0xe8] sm:$0xff] %v385
  %428 = vst [vmem:[#allocation2 + $0xf0] sm:$0xff] %v390
  %429 = vst [vmem:[#allocation2 + $0xf8] sm:$0xff] %v395
  %v430 = vld [vmem:[%s2] sm:$0xff]
  %v431 = vld [vmem:[%s2 + $0x8] sm:$0xff]
  %v432 = vld [vmem:[%s2 + $0x10] sm:$0xff]
  %v433 = vld [vmem:[%s2 + $0x18] sm:$0xff]
  %v434 = vld [vmem:[#allocation2] sm:$0xff]
  %v435 = vld [vmem:[#allocation2 + $0x8] sm:$0xff]
  %v436 = vld [vmem:[#allocation2 + $0x10] sm:$0xff]
  %v437 = vld [vmem:[#allocation2 + $0x18] sm:$0xff]
  %vm438 = vcmask 261120
  %v440 = vsel %vm438, 0.0, 0
  %442 = vmatprep.subr.mxu0 0.0
  %443 = vmatpush1.msra.mxu0 %v430
  %444 = vmatprep.subr.mxu0 0.0
  %445 = vmatpush1.msra.mxu0 %v431
  %446 = vmatprep.subr.mxu0 0.0
  %447 = vmatpush1.msra.mxu0 %v432
  %448 = vmatprep.subr.mxu0 0.0
  %449 = vmatpush1.msra.mxu0 %v433
  %450 = vmatprep.subr.mxu0 0.0
  %451 = vmatpush1.msra.mxu0 0.0
  %452 = vmatprep.subr.mxu0 0.0
  %453 = vmatpush1.msra.mxu0 0.0
  %454 = vmatprep.subr.mxu0 0.0
  %455 = vmatpush1.msra.mxu0 0.0
  %456 = vmatprep.subr.mxu0 0.0
  %457 = vmatpush1.msra.mxu0 0.0
  %458 = vmatprep.subr.mxu0 0.0
  %459 = vmatpush1.msra.mxu0 0.0
  %460 = vmatprep.subr.mxu0 0.0
  %461 = vmatpush1.msra.mxu0 0.0
  %462 = vmatprep.subr.mxu0 0.0
  %463 = vmatpush1.msra.mxu0 0.0
  %464 = vmatprep.subr.mxu0 0.0
  %465 = vmatpush1.msra.mxu0 0.0
  %466 = vmatprep.subr.mxu0 0.0
  %467 = vmatpush1.msra.mxu0 0.0
  %468 = vmatprep.subr.mxu0 0.0
  %469 = vmatpush1.msra.mxu0 0.0
  %470 = vmatprep.subr.mxu0 0.0
  %471 = vmatpush1.msra.mxu0 0.0
  %472 = vmatprep.subr.mxu0 0.0
  %473 = vmatpush1.msra.mxu0 0.0
  %474 = vmatprep.subr.mxu0 0.0
  %475 = vmatpush1.msra.mxu0 0.0
  %476 = vmatprep.subr.mxu0 0.0
  %477 = vmatpush1.msra.mxu0 0.0
  %478 = vmatprep.subr.mxu0 0.0
  %479 = vmatpush1.msra.mxu0 0.0
  %480 = vmatprep.subr.mxu0 0.0
  %481 = vmatpush1.msra.mxu0 0.0
  %482 = vmatprep.subr.mxu0 0.0
  %483 = vmatpush1.msra.mxu0 0.0
  %484 = vmatprep.subr.mxu0 0.0
  %485 = vmatpush1.msra.mxu0 0.0
  %486 = vmatprep.subr.mxu0 0.0
  %487 = vmatpush1.msra.mxu0 0.0
  %488 = vmatprep.subr.mxu0 0.0
  %489 = vmatpush1.msra.mxu0 0.0
  %490 = vmatprep.subr.mxu0 0.0
  %491 = vmatpush1.msra.mxu0 0.0
  %492 = vmatprep.subr.mxu0 0.0
  %493 = vmatpush1.msra.mxu0 0.0
  %494 = vmatprep.subr.mxu0 0.0
  %495 = vmatpush1.msra.mxu0 0.0
  %496 = vmatprep.subr.mxu0 0.0
  %497 = vmatpush1.msra.mxu0 0.0
  %498 = vmatprep.subr.mxu0 0.0
  %499 = vmatpush1.msra.mxu0 0.0
  %500 = vmatprep.subr.mxu0 0.0
  %501 = vmatpush1.msra.mxu0 0.0
  %502 = vmatprep.subr.mxu0 0.0
  %503 = vmatpush1.msra.mxu0 0.0
  %504 = vmatprep.subr.mxu0 0.0
  %505 = vmatpush1.msra.mxu0 0.0
  %506 = vmatprep.mubr.f32.mxu0 0.0
  %507 = vmatmul.mubr.f32.gmra.mrb[0].mxu0 %v440
  %v508 = vpop.f32.mrb[0].mxu0
  %v509 = vadd.f32 0.0, %v508
  %v510 = vpop.f32.mrb[0].mxu0
  %511 = vmatprep.mubr.f32.mxu0 0.0
  %512 = vmatmul.mubr.f32.gmra.mrb[0].mxu0 %v440
  %v513 = vpop.f32.mrb[0].mxu0
  %v514 = vadd.f32 0.0, %v513
  %v515 = vpop.f32.mrb[0].mxu0
  %516 = vmatprep.mubr.f32.mxu0 0.0
  %517 = vmatmul.mubr.f32.gmra.mrb[0].mxu0 %v440
  %v518 = vpop.f32.mrb[0].mxu0
  %v519 = vadd.f32 0.0, %v518
  %v520 = vpop.f32.mrb[0].mxu0
  %521 = vmatprep.mubr.f32.mxu0 0.0
  %522 = vmatmul.mubr.f32.gmra.mrb[0].mxu0 %v440
  %v523 = vpop.f32.mrb[0].mxu0
  %v524 = vadd.f32 0.0, %v523
  %v525 = vpop.f32.mrb[0].mxu0
  %526 = vdwg.mxu0
  %v527 = vadd.f32 %v434, %v509
  %v528 = vadd.f32 %v435, %v514
  %v529 = vadd.f32 %v436, %v519
  %v530 = vadd.f32 %v437, %v524
  %v531 = vxor.u32 %v527, 2147483648
  %v532 = vxor.u32 %v528, 2147483648
  %v533 = vxor.u32 %v529, 2147483648
  %v534 = vxor.u32 %v530, 2147483648
  %v535 = vmul.f32 %v531, 1.442695
  %v536 = vpow.pop %v535
  %v537 = vmul.f32 %v532, 1.442695
  %v538 = vpow.pop %v537
  %v539 = vmul.f32 %v533, 1.442695
  %v540 = vpow.pop %v539
  %v541 = vmul.f32 %v534, 1.442695
  %v542 = vpow.pop %v541
  %v543 = vadd.f32 %v536, 1.0
  %v544 = vadd.f32 %v538, 1.0
  %v545 = vadd.f32 %v540, 1.0
  %v546 = vadd.f32 %v542, 1.0
  %v547 = vrcp.pop %v543
  %v548 = vmul.f32 1.0, %v547
  %v549 = vrcp.pop %v544
  %v550 = vmul.f32 1.0, %v549
  %v551 = vrcp.pop %v545
  %v552 = vmul.f32 1.0, %v551
  %v553 = vrcp.pop %v546
  %v554 = vmul.f32 1.0, %v553
  %v555 = vtanh.pop %v527
  %v556 = vtanh.pop %v528
  %v557 = vtanh.pop %v529
  %v558 = vtanh.pop %v530
  %v559 = vmul.f32 %v548, 0.0
  %v560 = vmul.f32 %v550, 0.0
  %v561 = vmul.f32 %v552, 0.0
  %v562 = vmul.f32 %v554, 0.0
  %567 = vrot.lane.b32.xlu0 %v555, 64
  %v568 = vpop.permute.xlu0 %567
  %569 = vrot.lane.b32.xlu0 %v556, 64
  %v570 = vpop.permute.xlu0 %569
  %571 = vrot.lane.b32.xlu0 %v557, 64
  %v572 = vpop.permute.xlu0 %571
  %573 = vrot.lane.b32.xlu0 %v558, 64
  %v574 = vpop.permute.xlu0 %573
  %v579 = vmul.f32 %v548, %v568
  %v580 = vmul.f32 %v550, %v570
  %v581 = vmul.f32 %v552, %v572
  %v582 = vmul.f32 %v554, %v574
  %587 = vrot.lane.b32.xlu0 %v579, 32
  %v588 = vpop.permute.xlu0 %587
  %589 = vrot.lane.b32.xlu0 %v580, 32
  %v590 = vpop.permute.xlu0 %589
  %591 = vrot.lane.b32.xlu0 %v581, 32
  %v592 = vpop.permute.xlu0 %591
  %593 = vrot.lane.b32.xlu0 %v582, 32
  %v594 = vpop.permute.xlu0 %593
  %v599 = vadd.f32 %v559, %v588
  %v600 = vadd.f32 %v560, %v590
  %v601 = vadd.f32 %v561, %v592
  %v602 = vadd.f32 %v562, %v594
  %v603 = vtanh.pop %v599
  %v604 = vtanh.pop %v600
  %v605 = vtanh.pop %v601
  %v606 = vtanh.pop %v602
  %611 = vrot.lane.b32.xlu0 %v603, 64
  %v612 = vpop.permute.xlu0 %611
  %613 = vrot.lane.b32.xlu0 %v604, 64
  %v614 = vpop.permute.xlu0 %613
  %615 = vrot.lane.b32.xlu0 %v605, 64
  %v616 = vpop.permute.xlu0 %615
  %617 = vrot.lane.b32.xlu0 %v606, 64
  %v618 = vpop.permute.xlu0 %617
  %v623 = vmul.f32 %v548, %v612
  %v624 = vmul.f32 %v550, %v614
  %v625 = vmul.f32 %v552, %v616
  %v626 = vmul.f32 %v554, %v618
  %631 = vrot.lane.b32.xlu0 %v623, 32
  %v632 = vpop.permute.xlu0 %631
  %633 = vrot.lane.b32.xlu0 %v624, 32
  %v634 = vpop.permute.xlu0 %633
  %635 = vrot.lane.b32.xlu0 %v625, 32
  %v636 = vpop.permute.xlu0 %635
  %637 = vrot.lane.b32.xlu0 %v626, 32
  %v638 = vpop.permute.xlu0 %637
  %643 = vst.msk [vmem:[#allocation3] sm:$0xff] %vm438, %v632
  %644 = vst.msk [vmem:[#allocation3 + $0x8] sm:$0xff] %vm438, %v634
  %645 = vst.msk [vmem:[#allocation3 + $0x10] sm:$0xff] %vm438, %v636
  %646 = vst.msk [vmem:[#allocation3 + $0x18] sm:$0xff] %vm438, %v638
  %v647 = vld [vmem:[#allocation2 + $0x20] sm:$0xff]
  %v648 = vld [vmem:[#allocation2 + $0x28] sm:$0xff]
  %v649 = vld [vmem:[#allocation2 + $0x30] sm:$0xff]
  %v650 = vld [vmem:[#allocation2 + $0x38] sm:$0xff]
  %v651 = vsel %vm438, %v632, 0
  %v653 = vsel %vm438, %v634, 0
  %v655 = vsel %vm438, %v636, 0
  %v657 = vsel %vm438, %v638, 0
  %659 = vmatprep.subr.mxu0 0.0
  %660 = vmatpush1.msra.mxu0 %v430
  %661 = vmatprep.subr.mxu0 0.0
  %662 = vmatpush1.msra.mxu0 %v431
  %663 = vmatprep.subr.mxu0 0.0
  %664 = vmatpush1.msra.mxu0 %v432
  %665 = vmatprep.subr.mxu0 0.0
  %666 = vmatpush1.msra.mxu0 %v433
  %667 = vmatprep.subr.mxu0 0.0
  %668 = vmatpush1.msra.mxu0 0.0
  %669 = vmatprep.subr.mxu0 0.0
  %670 = vmatpush1.msra.mxu0 0.0
  %671 = vmatprep.subr.mxu0 0.0
  %672 = vmatpush1.msra.mxu0 0.0
  %673 = vmatprep.subr.mxu0 0.0
  %674 = vmatpush1.msra.mxu0 0.0
  %675 = vmatprep.subr.mxu0 0.0
  %676 = vmatpush1.msra.mxu0 0.0
  %677 = vmatprep.subr.mxu0 0.0
  %678 = vmatpush1.msra.mxu0 0.0
  %679 = vmatprep.subr.mxu0 0.0
  %680 = vmatpush1.msra.mxu0 0.0
  %681 = vmatprep.subr.mxu0 0.0
  %682 = vmatpush1.msra.mxu0 0.0
  %683 = vmatprep.subr.mxu0 0.0
  %684 = vmatpush1.msra.mxu0 0.0
  %685 = vmatprep.subr.mxu0 0.0
  %686 = vmatpush1.msra.mxu0 0.0
  %687 = vmatprep.subr.mxu0 0.0
  %688 = vmatpush1.msra.mxu0 0.0
  %689 = vmatprep.subr.mxu0 0.0
  %690 = vmatpush1.msra.mxu0 0.0
  %691 = vmatprep.subr.mxu0 0.0
  %692 = vmatpush1.msra.mxu0 0.0
  %693 = vmatprep.subr.mxu0 0.0
  %694 = vmatpush1.msra.mxu0 0.0
  %695 = vmatprep.subr.mxu0 0.0
  %696 = vmatpush1.msra.mxu0 0.0
  %697 = vmatprep.subr.mxu0 0.0
  %698 = vmatpush1.msra.mxu0 0.0
  %699 = vmatprep.subr.mxu0 0.0
  %700 = vmatpush1.msra.mxu0 0.0
  %701 = vmatprep.subr.mxu0 0.0
  %702 = vmatpush1.msra.mxu0 0.0
  %703 = vmatprep.subr.mxu0 0.0
  %704 = vmatpush1.msra.mxu0 0.0
  %705 = vmatprep.subr.mxu0 0.0
  %706 = vmatpush1.msra.mxu0 0.0
  %707 = vmatprep.subr.mxu0 0.0
  %708 = vmatpush1.msra.mxu0 0.0
  %709 = vmatprep.subr.mxu0 0.0
  %710 = vmatpush1.msra.mxu0 0.0
  %711 = vmatprep.subr.mxu0 0.0
  %712 = vmatpush1.msra.mxu0 0.0
  %713 = vmatprep.subr.mxu0 0.0
  %714 = vmatpush1.msra.mxu0 0.0
  %715 = vmatprep.subr.mxu0 0.0
  %716 = vmatpush1.msra.mxu0 0.0
  %717 = vmatprep.subr.mxu0 0.0
  %718 = vmatpush1.msra.mxu0 0.0
  %719 = vmatprep.subr.mxu0 0.0
  %720 = vmatpush1.msra.mxu0 0.0
  %721 = vmatprep.subr.mxu0 0.0
  %722 = vmatpush1.msra.mxu0 0.0
  %723 = vmatprep.mubr.f32.mxu0 0.0
  %724 = vmatmul.mubr.f32.gmra.mrb[0].mxu0 %v651
  %v725 = vpop.f32.mrb[0].mxu0
  %v726 = vadd.f32 0.0, %v725
  %v727 = vpop.f32.mrb[0].mxu0
  %728 = vmatprep.mubr.f32.mxu0 0.0
  %729 = vmatmul.mubr.f32.gmra.mrb[0].mxu0 %v653
  %v730 = vpop.f32.mrb[0].mxu0
  %v731 = vadd.f32 0.0, %v730
  %v732 = vpop.f32.mrb[0].mxu0
  %733 = vmatprep.mubr.f32.mxu0 0.0
  %734 = vmatmul.mubr.f32.gmra.mrb[0].mxu0 %v655
  %v735 = vpop.f32.mrb[0].mxu0
  %v736 = vadd.f32 0.0, %v735
  %v737 = vpop.f32.mrb[0].mxu0
  %738 = vmatprep.mubr.f32.mxu0 0.0
  %739 = vmatmul.mubr.f32.gmra.mrb[0].mxu0 %v657
  %v740 = vpop.f32.mrb[0].mxu0
  %v741 = vadd.f32 0.0, %v740
  %v742 = vpop.f32.mrb[0].mxu0
  %743 = vdwg.mxu0
  %v744 = vadd.f32 %v647, %v726
  %v745 = vadd.f32 %v648, %v731
  %v746 = vadd.f32 %v649, %v736
  %v747 = vadd.f32 %v650, %v741
  %v748 = vxor.u32 %v744, 2147483648
  %v749 = vxor.u32 %v745, 2147483648
  %v750 = vxor.u32 %v746, 2147483648
  %v751 = vxor.u32 %v747, 2147483648
  %v752 = vmul.f32 %v748, 1.442695
  %v753 = vpow.pop %v752
  %v754 = vmul.f32 %v749, 1.442695
  %v755 = vpow.pop %v754
  %v756 = vmul.f32 %v750, 1.442695
  %v757 = vpow.pop %v756
  %v758 = vmul.f32 %v751, 1.442695
  %v759 = vpow.pop %v758
  %v760 = vadd.f32 %v753, 1.0
  %v761 = vadd.f32 %v755, 1.0
  %v762 = vadd.f32 %v757, 1.0
  %v763 = vadd.f32 %v759, 1.0
  %v764 = vrcp.pop %v760
  %v765 = vmul.f32 1.0, %v764
  %v766 = vrcp.pop %v761
  %v767 = vmul.f32 1.0, %v766
  %v768 = vrcp.pop %v762
  %v769 = vmul.f32 1.0, %v768
  %v770 = vrcp.pop %v763
  %v771 = vmul.f32 1.0, %v770
  %v772 = vtanh.pop %v744
  %v773 = vtanh.pop %v745
  %v774 = vtanh.pop %v746
  %v775 = vtanh.pop %v747
  %v776 = vmul.f32 %v765, %v599
  %v777 = vmul.f32 %v767, %v600
  %v778 = vmul.f32 %v769, %v601
  %v779 = vmul.f32 %v771, %v602
  %784 = vrot.lane.b32.xlu0 %v772, 64
  %v785 = vpop.permute.xlu0 %784
  %786 = vrot.lane.b32.xlu0 %v773, 64
  %v787 = vpop.permute.xlu0 %786
  %788 = vrot.lane.b32.xlu0 %v774, 64
  %v789 = vpop.permute.xlu0 %788
  %790 = vrot.lane.b32.xlu0 %v775, 64
  %v791 = vpop.permute.xlu0 %790
  %v796 = vmul.f32 %v765, %v785
  %v797 = vmul.f32 %v767, %v787
  %v798 = vmul.f32 %v769, %v789
  %v799 = vmul.f32 %v771, %v791
  %804 = vrot.lane.b32.xlu0 %v796, 32
  %v805 = vpop.permute.xlu0 %804
  %806 = vrot.lane.b32.xlu0 %v797, 32
  %v807 = vpop.permute.xlu0 %806
  %808 = vrot.lane.b32.xlu0 %v798, 32
  %v809 = vpop.permute.xlu0 %808
  %810 = vrot.lane.b32.xlu0 %v799, 32
  %v811 = vpop.permute.xlu0 %810
  %v816 = vadd.f32 %v776, %v805
  %v817 = vadd.f32 %v777, %v807
  %v818 = vadd.f32 %v778, %v809
  %v819 = vadd.f32 %v779, %v811
  %v820 = vtanh.pop %v816
  %v821 = vtanh.pop %v817
  %v822 = vtanh.pop %v818
  %v823 = vtanh.pop %v819
  %828 = vrot.lane.b32.xlu0 %v820, 64
  %v829 = vpop.permute.xlu0 %828
  %830 = vrot.lane.b32.xlu0 %v821, 64
  %v831 = vpop.permute.xlu0 %830
  %832 = vrot.lane.b32.xlu0 %v822, 64
  %v833 = vpop.permute.xlu0 %832
  %834 = vrot.lane.b32.xlu0 %v823, 64
  %v835 = vpop.permute.xlu0 %834
  %v840 = vmul.f32 %v765, %v829
  %v841 = vmul.f32 %v767, %v831
  %v842 = vmul.f32 %v769, %v833
  %v843 = vmul.f32 %v771, %v835
  %848 = vrot.lane.b32.xlu0 %v840, 32
  %v849 = vpop.permute.xlu0 %848
  %850 = vrot.lane.b32.xlu0 %v841, 32
  %v851 = vpop.permute.xlu0 %850
  %852 = vrot.lane.b32.xlu0 %v842, 32
  %v853 = vpop.permute.xlu0 %852
  %854 = vrot.lane.b32.xlu0 %v843, 32
  %v855 = vpop.permute.xlu0 %854
  %860 = vst.msk [vmem:[#allocation3 + $0x20] sm:$0xff] %vm438, %v849
  %861 = vst.msk [vmem:[#allocation3 + $0x28] sm:$0xff] %vm438, %v851
  %862 = vst.msk [vmem:[#allocation3 + $0x30] sm:$0xff] %vm438, %v853
  %863 = vst.msk [vmem:[#allocation3 + $0x38] sm:$0xff] %vm438, %v855
  %v864 = vld [vmem:[#allocation2 + $0x40] sm:$0xff]
  %v865 = vld [vmem:[#allocation2 + $0x48] sm:$0xff]
  %v866 = vld [vmem:[#allocation2 + $0x50] sm:$0xff]
  %v867 = vld [vmem:[#allocation2 + $0x58] sm:$0xff]
  %v868 = vsel %vm438, %v849, 0
  %v870 = vsel %vm438, %v851, 0
  %v872 = vsel %vm438, %v853, 0
  %v874 = vsel %vm438, %v855, 0
  %876 = vmatprep.subr.mxu0 0.0
  %877 = vmatpush1.msra.mxu0 %v430
  %878 = vmatprep.subr.mxu0 0.0
  %879 = vmatpush1.msra.mxu0 %v431
  %880 = vmatprep.subr.mxu0 0.0
  %881 = vmatpush1.msra.mxu0 %v432
  %882 = vmatprep.subr.mxu0 0.0
  %883 = vmatpush1.msra.mxu0 %v433
  %884 = vmatprep.subr.mxu0 0.0
  %885 = vmatpush1.msra.mxu0 0.0
  %886 = vmatprep.subr.mxu0 0.0
  %887 = vmatpush1.msra.mxu0 0.0
  %888 = vmatprep.subr.mxu0 0.0
  %889 = vmatpush1.msra.mxu0 0.0
  %890 = vmatprep.subr.mxu0 0.0
  %891 = vmatpush1.msra.mxu0 0.0
  %892 = vmatprep.subr.mxu0 0.0
  %893 = vmatpush1.msra.mxu0 0.0
  %894 = vmatprep.subr.mxu0 0.0
  %895 = vmatpush1.msra.mxu0 0.0
  %896 = vmatprep.subr.mxu0 0.0
  %897 = vmatpush1.msra.mxu0 0.0
  %898 = vmatprep.subr.mxu0 0.0
  %899 = vmatpush1.msra.mxu0 0.0
  %900 = vmatprep.subr.mxu0 0.0
  %901 = vmatpush1.msra.mxu0 0.0
  %902 = vmatprep.subr.mxu0 0.0
  %903 = vmatpush1.msra.mxu0 0.0
  %904 = vmatprep.subr.mxu0 0.0
  %905 = vmatpush1.msra.mxu0 0.0
  %906 = vmatprep.subr.mxu0 0.0
  %907 = vmatpush1.msra.mxu0 0.0
  %908 = vmatprep.subr.mxu0 0.0
  %909 = vmatpush1.msra.mxu0 0.0
  %910 = vmatprep.subr.mxu0 0.0
  %911 = vmatpush1.msra.mxu0 0.0
  %912 = vmatprep.subr.mxu0 0.0
  %913 = vmatpush1.msra.mxu0 0.0
  %914 = vmatprep.subr.mxu0 0.0
  %915 = vmatpush1.msra.mxu0 0.0
  %916 = vmatprep.subr.mxu0 0.0
  %917 = vmatpush1.msra.mxu0 0.0
  %918 = vmatprep.subr.mxu0 0.0
  %919 = vmatpush1.msra.mxu0 0.0
  %920 = vmatprep.subr.mxu0 0.0
  %921 = vmatpush1.msra.mxu0 0.0
  %922 = vmatprep.subr.mxu0 0.0
  %923 = vmatpush1.msra.mxu0 0.0
  %924 = vmatprep.subr.mxu0 0.0
  %925 = vmatpush1.msra.mxu0 0.0
  %926 = vmatprep.subr.mxu0 0.0
  %927 = vmatpush1.msra.mxu0 0.0
  %928 = vmatprep.subr.mxu0 0.0
  %929 = vmatpush1.msra.mxu0 0.0
  %930 = vmatprep.subr.mxu0 0.0
  %931 = vmatpush1.msra.mxu0 0.0
  %932 = vmatprep.subr.mxu0 0.0
  %933 = vmatpush1.msra.mxu0 0.0
  %934 = vmatprep.subr.mxu0 0.0
  %935 = vmatpush1.msra.mxu0 0.0
  %936 = vmatprep.subr.mxu0 0.0
  %937 = vmatpush1.msra.mxu0 0.0
  %938 = vmatprep.subr.mxu0 0.0
  %939 = vmatpush1.msra.mxu0 0.0
  %940 = vmatprep.mubr.f32.mxu0 0.0
  %941 = vmatmul.mubr.f32.gmra.mrb[0].mxu0 %v868
  %v942 = vpop.f32.mrb[0].mxu0
  %v943 = vadd.f32 0.0, %v942
  %v944 = vpop.f32.mrb[0].mxu0
  %945 = vmatprep.mubr.f32.mxu0 0.0
  %946 = vmatmul.mubr.f32.gmra.mrb[0].mxu0 %v870
  %v947 = vpop.f32.mrb[0].mxu0
  %v948 = vadd.f32 0.0, %v947
  %v949 = vpop.f32.mrb[0].mxu0
  %950 = vmatprep.mubr.f32.mxu0 0.0
  %951 = vmatmul.mubr.f32.gmra.mrb[0].mxu0 %v872
  %v952 = vpop.f32.mrb[0].mxu0
  %v953 = vadd.f32 0.0, %v952
  %v954 = vpop.f32.mrb[0].mxu0
  %955 = vmatprep.mubr.f32.mxu0 0.0
  %956 = vmatmul.mubr.f32.gmra.mrb[0].mxu0 %v874
  %v957 = vpop.f32.mrb[0].mxu0
  %v958 = vadd.f32 0.0, %v957
  %v959 = vpop.f32.mrb[0].mxu0
  %960 = vdwg.mxu0
  %v961 = vadd.f32 %v864, %v943
  %v962 = vadd.f32 %v865, %v948
  %v963 = vadd.f32 %v866, %v953
  %v964 = vadd.f32 %v867, %v958
  %v965 = vxor.u32 %v961, 2147483648
  %v966 = vxor.u32 %v962, 2147483648
  %v967 = vxor.u32 %v963, 2147483648
  %v968 = vxor.u32 %v964, 2147483648
  %v969 = vmul.f32 %v965, 1.442695
  %v970 = vpow.pop %v969
  %v971 = vmul.f32 %v966, 1.442695
  %v972 = vpow.pop %v971
  %v973 = vmul.f32 %v967, 1.442695
  %v974 = vpow.pop %v973
  %v975 = vmul.f32 %v968, 1.442695
  %v976 = vpow.pop %v975
  %v977 = vadd.f32 %v970, 1.0
  %v978 = vadd.f32 %v972, 1.0
  %v979 = vadd.f32 %v974, 1.0
  %v980 = vadd.f32 %v976, 1.0
  %v981 = vrcp.pop %v977
  %v982 = vmul.f32 1.0, %v981
  %v983 = vrcp.pop %v978
  %v984 = vmul.f32 1.0, %v983
  %v985 = vrcp.pop %v979
  %v986 = vmul.f32 1.0, %v985
  %v987 = vrcp.pop %v980
  %v988 = vmul.f32 1.0, %v987
  %v989 = vtanh.pop %v961
  %v990 = vtanh.pop %v962
  %v991 = vtanh.pop %v963
  %v992 = vtanh.pop %v964
  %v993 = vmul.f32 %v982, %v816
  %v994 = vmul.f32 %v984, %v817
  %v995 = vmul.f32 %v986, %v818
  %v996 = vmul.f32 %v988, %v819
  %1001 = vrot.lane.b32.xlu0 %v989, 64
  %v1002 = vpop.permute.xlu0 %1001
  %1003 = vrot.lane.b32.xlu0 %v990, 64
  %v1004 = vpop.permute.xlu0 %1003
  %1005 = vrot.lane.b32.xlu0 %v991, 64
  %v1006 = vpop.permute.xlu0 %1005
  %1007 = vrot.lane.b32.xlu0 %v992, 64
  %v1008 = vpop.permute.xlu0 %1007
  %v1013 = vmul.f32 %v982, %v1002
  %v1014 = vmul.f32 %v984, %v1004
  %v1015 = vmul.f32 %v986, %v1006
  %v1016 = vmul.f32 %v988, %v1008
  %1021 = vrot.lane.b32.xlu0 %v1013, 32
  %v1022 = vpop.permute.xlu0 %1021
  %1023 = vrot.lane.b32.xlu0 %v1014, 32
  %v1024 = vpop.permute.xlu0 %1023
  %1025 = vrot.lane.b32.xlu0 %v1015, 32
  %v1026 = vpop.permute.xlu0 %1025
  %1027 = vrot.lane.b32.xlu0 %v1016, 32
  %v1028 = vpop.permute.xlu0 %1027
  %v1033 = vadd.f32 %v993, %v1022
  %v1034 = vadd.f32 %v994, %v1024
  %v1035 = vadd.f32 %v995, %v1026
  %v1036 = vadd.f32 %v996, %v1028
  %v1037 = vtanh.pop %v1033
  %v1038 = vtanh.pop %v1034
  %v1039 = vtanh.pop %v1035
  %v1040 = vtanh.pop %v1036
  %1045 = vrot.lane.b32.xlu0 %v1037, 64
  %v1046 = vpop.permute.xlu0 %1045
  %1047 = vrot.lane.b32.xlu0 %v1038, 64
  %v1048 = vpop.permute.xlu0 %1047
  %1049 = vrot.lane.b32.xlu0 %v1039, 64
  %v1050 = vpop.permute.xlu0 %1049
  %1051 = vrot.lane.b32.xlu0 %v1040, 64
  %v1052 = vpop.permute.xlu0 %1051
  %v1057 = vmul.f32 %v982, %v1046
  %v1058 = vmul.f32 %v984, %v1048
  %v1059 = vmul.f32 %v986, %v1050
  %v1060 = vmul.f32 %v988, %v1052
  %1065 = vrot.lane.b32.xlu0 %v1057, 32
  %v1066 = vpop.permute.xlu0 %1065
  %1067 = vrot.lane.b32.xlu0 %v1058, 32
  %v1068 = vpop.permute.xlu0 %1067
  %1069 = vrot.lane.b32.xlu0 %v1059, 32
  %v1070 = vpop.permute.xlu0 %1069
  %1071 = vrot.lane.b32.xlu0 %v1060, 32
  %v1072 = vpop.permute.xlu0 %1071
  %1077 = vst.msk [vmem:[#allocation3 + $0x40] sm:$0xff] %vm438, %v1066
  %1078 = vst.msk [vmem:[#allocation3 + $0x48] sm:$0xff] %vm438, %v1068
  %1079 = vst.msk [vmem:[#allocation3 + $0x50] sm:$0xff] %vm438, %v1070
  %1080 = vst.msk [vmem:[#allocation3 + $0x58] sm:$0xff] %vm438, %v1072
  %v1081 = vld [vmem:[#allocation2 + $0x60] sm:$0xff]
  %v1082 = vld [vmem:[#allocation2 + $0x68] sm:$0xff]
  %v1083 = vld [vmem:[#allocation2 + $0x70] sm:$0xff]
  %v1084 = vld [vmem:[#allocation2 + $0x78] sm:$0xff]
  %v1085 = vsel %vm438, %v1066, 0
  %v1087 = vsel %vm438, %v1068, 0
  %v1089 = vsel %vm438, %v1070, 0
  %v1091 = vsel %vm438, %v1072, 0
  %1093 = vmatprep.subr.mxu0 0.0
  %1094 = vmatpush1.msra.mxu0 %v430
  %1095 = vmatprep.subr.mxu0 0.0
  %1096 = vmatpush1.msra.mxu0 %v431
  %1097 = vmatprep.subr.mxu0 0.0
  %1098 = vmatpush1.msra.mxu0 %v432
  %1099 = vmatprep.subr.mxu0 0.0
  %1100 = vmatpush1.msra.mxu0 %v433
  %1101 = vmatprep.subr.mxu0 0.0
  %1102 = vmatpush1.msra.mxu0 0.0
  %1103 = vmatprep.subr.mxu0 0.0
  %1104 = vmatpush1.msra.mxu0 0.0
  %1105 = vmatprep.subr.mxu0 0.0
  %1106 = vmatpush1.msra.mxu0 0.0
  %1107 = vmatprep.subr.mxu0 0.0
  %1108 = vmatpush1.msra.mxu0 0.0
  %1109 = vmatprep.subr.mxu0 0.0
  %1110 = vmatpush1.msra.mxu0 0.0
  %1111 = vmatprep.subr.mxu0 0.0
  %1112 = vmatpush1.msra.mxu0 0.0
  %1113 = vmatprep.subr.mxu0 0.0
  %1114 = vmatpush1.msra.mxu0 0.0
  %1115 = vmatprep.subr.mxu0 0.0
  %1116 = vmatpush1.msra.mxu0 0.0
  %1117 = vmatprep.subr.mxu0 0.0
  %1118 = vmatpush1.msra.mxu0 0.0
  %1119 = vmatprep.subr.mxu0 0.0
  %1120 = vmatpush1.msra.mxu0 0.0
  %1121 = vmatprep.subr.mxu0 0.0
  %1122 = vmatpush1.msra.mxu0 0.0
  %1123 = vmatprep.subr.mxu0 0.0
  %1124 = vmatpush1.msra.mxu0 0.0
  %1125 = vmatprep.subr.mxu0 0.0
  %1126 = vmatpush1.msra.mxu0 0.0
  %1127 = vmatprep.subr.mxu0 0.0
  %1128 = vmatpush1.msra.mxu0 0.0
  %1129 = vmatprep.subr.mxu0 0.0
  %1130 = vmatpush1.msra.mxu0 0.0
  %1131 = vmatprep.subr.mxu0 0.0
  %1132 = vmatpush1.msra.mxu0 0.0
  %1133 = vmatprep.subr.mxu0 0.0
  %1134 = vmatpush1.msra.mxu0 0.0
  %1135 = vmatprep.subr.mxu0 0.0
  %1136 = vmatpush1.msra.mxu0 0.0
  %1137 = vmatprep.subr.mxu0 0.0
  %1138 = vmatpush1.msra.mxu0 0.0
  %1139 = vmatprep.subr.mxu0 0.0
  %1140 = vmatpush1.msra.mxu0 0.0
  %1141 = vmatprep.subr.mxu0 0.0
  %1142 = vmatpush1.msra.mxu0 0.0
  %1143 = vmatprep.subr.mxu0 0.0
  %1144 = vmatpush1.msra.mxu0 0.0
  %1145 = vmatprep.subr.mxu0 0.0
  %1146 = vmatpush1.msra.mxu0 0.0
  %1147 = vmatprep.subr.mxu0 0.0
  %1148 = vmatpush1.msra.mxu0 0.0
  %1149 = vmatprep.subr.mxu0 0.0
  %1150 = vmatpush1.msra.mxu0 0.0
  %1151 = vmatprep.subr.mxu0 0.0
  %1152 = vmatpush1.msra.mxu0 0.0
  %1153 = vmatprep.subr.mxu0 0.0
  %1154 = vmatpush1.msra.mxu0 0.0
  %1155 = vmatprep.subr.mxu0 0.0
  %1156 = vmatpush1.msra.mxu0 0.0
  %1157 = vmatprep.mubr.f32.mxu0 0.0
  %1158 = vmatmul.mubr.f32.gmra.mrb[0].mxu0 %v1085
  %v1159 = vpop.f32.mrb[0].mxu0
  %v1160 = vadd.f32 0.0, %v1159
  %v1161 = vpop.f32.mrb[0].mxu0
  %1162 = vmatprep.mubr.f32.mxu0 0.0
  %1163 = vmatmul.mubr.f32.gmra.mrb[0].mxu0 %v1087
  %v1164 = vpop.f32.mrb[0].mxu0
  %v1165 = vadd.f32 0.0, %v1164
  %v1166 = vpop.f32.mrb[0].mxu0
  %1167 = vmatprep.mubr.f32.mxu0 0.0
  %1168 = vmatmul.mubr.f32.gmra.mrb[0].mxu0 %v1089
  %v1169 = vpop.f32.mrb[0].mxu0
  %v1170 = vadd.f32 0.0, %v1169
  %v1171 = vpop.f32.mrb[0].mxu0
  %1172 = vmatprep.mubr.f32.mxu0 0.0
  %1173 = vmatmul.mubr.f32.gmra.mrb[0].mxu0 %v1091
  %v1174 = vpop.f32.mrb[0].mxu0
  %v1175 = vadd.f32 0.0, %v1174
  %v1176 = vpop.f32.mrb[0].mxu0
  %1177 = vdwg.mxu0
  %v1178 = vadd.f32 %v1081, %v1160
  %v1179 = vadd.f32 %v1082, %v1165
  %v1180 = vadd.f32 %v1083, %v1170
  %v1181 = vadd.f32 %v1084, %v1175
  %v1182 = vxor.u32 %v1178, 2147483648
  %v1183 = vxor.u32 %v1179, 2147483648
  %v1184 = vxor.u32 %v1180, 2147483648
  %v1185 = vxor.u32 %v1181, 2147483648
  %v1186 = vmul.f32 %v1182, 1.442695
  %v1187 = vpow.pop %v1186
  %v1188 = vmul.f32 %v1183, 1.442695
  %v1189 = vpow.pop %v1188
  %v1190 = vmul.f32 %v1184, 1.442695
  %v1191 = vpow.pop %v1190
  %v1192 = vmul.f32 %v1185, 1.442695
  %v1193 = vpow.pop %v1192
  %v1194 = vadd.f32 %v1187, 1.0
  %v1195 = vadd.f32 %v1189, 1.0
  %v1196 = vadd.f32 %v1191, 1.0
  %v1197 = vadd.f32 %v1193, 1.0
  %v1198 = vrcp.pop %v1194
  %v1199 = vmul.f32 1.0, %v1198
  %v1200 = vrcp.pop %v1195
  %v1201 = vmul.f32 1.0, %v1200
  %v1202 = vrcp.pop %v1196
  %v1203 = vmul.f32 1.0, %v1202
  %v1204 = vrcp.pop %v1197
  %v1205 = vmul.f32 1.0, %v1204
  %v1206 = vtanh.pop %v1178
  %v1207 = vtanh.pop %v1179
  %v1208 = vtanh.pop %v1180
  %v1209 = vtanh.pop %v1181
  %v1210 = vmul.f32 %v1199, %v1033
  %v1211 = vmul.f32 %v1201, %v1034
  %v1212 = vmul.f32 %v1203, %v1035
  %v1213 = vmul.f32 %v1205, %v1036
  %1218 = vrot.lane.b32.xlu0 %v1206, 64
  %v1219 = vpop.permute.xlu0 %1218
  %1220 = vrot.lane.b32.xlu0 %v1207, 64
  %v1221 = vpop.permute.xlu0 %1220
  %1222 = vrot.lane.b32.xlu0 %v1208, 64
  %v1223 = vpop.permute.xlu0 %1222
  %1224 = vrot.lane.b32.xlu0 %v1209, 64
  %v1225 = vpop.permute.xlu0 %1224
  %v1230 = vmul.f32 %v1199, %v1219
  %v1231 = vmul.f32 %v1201, %v1221
  %v1232 = vmul.f32 %v1203, %v1223
  %v1233 = vmul.f32 %v1205, %v1225
  %1238 = vrot.lane.b32.xlu0 %v1230, 32
  %v1239 = vpop.permute.xlu0 %1238
  %1240 = vrot.lane.b32.xlu0 %v1231, 32
  %v1241 = vpop.permute.xlu0 %1240
  %1242 = vrot.lane.b32.xlu0 %v1232, 32
  %v1243 = vpop.permute.xlu0 %1242
  %1244 = vrot.lane.b32.xlu0 %v1233, 32
  %v1245 = vpop.permute.xlu0 %1244
  %v1250 = vadd.f32 %v1210, %v1239
  %v1251 = vadd.f32 %v1211, %v1241
  %v1252 = vadd.f32 %v1212, %v1243
  %v1253 = vadd.f32 %v1213, %v1245
  %v1254 = vtanh.pop %v1250
  %v1255 = vtanh.pop %v1251
  %v1256 = vtanh.pop %v1252
  %v1257 = vtanh.pop %v1253
  %1262 = vrot.lane.b32.xlu0 %v1254, 64
  %v1263 = vpop.permute.xlu0 %1262
  %1264 = vrot.lane.b32.xlu0 %v1255, 64
  %v1265 = vpop.permute.xlu0 %1264
  %1266 = vrot.lane.b32.xlu0 %v1256, 64
  %v1267 = vpop.permute.xlu0 %1266
  %1268 = vrot.lane.b32.xlu0 %v1257, 64
  %v1269 = vpop.permute.xlu0 %1268
  %v1274 = vmul.f32 %v1199, %v1263
  %v1275 = vmul.f32 %v1201, %v1265
  %v1276 = vmul.f32 %v1203, %v1267
  %v1277 = vmul.f32 %v1205, %v1269
  %1282 = vrot.lane.b32.xlu0 %v1274, 32
  %v1283 = vpop.permute.xlu0 %1282
  %1284 = vrot.lane.b32.xlu0 %v1275, 32
  %v1285 = vpop.permute.xlu0 %1284
  %1286 = vrot.lane.b32.xlu0 %v1276, 32
  %v1287 = vpop.permute.xlu0 %1286
  %1288 = vrot.lane.b32.xlu0 %v1277, 32
  %v1289 = vpop.permute.xlu0 %1288
  %1294 = vst.msk [vmem:[#allocation3 + $0x60] sm:$0xff] %vm438, %v1283
  %1295 = vst.msk [vmem:[#allocation3 + $0x68] sm:$0xff] %vm438, %v1285
  %1296 = vst.msk [vmem:[#allocation3 + $0x70] sm:$0xff] %vm438, %v1287
  %1297 = vst.msk [vmem:[#allocation3 + $0x78] sm:$0xff] %vm438, %v1289
  %v1298 = vld [vmem:[#allocation2 + $0x80] sm:$0xff]
  %v1299 = vld [vmem:[#allocation2 + $0x88] sm:$0xff]
  %v1300 = vld [vmem:[#allocation2 + $0x90] sm:$0xff]
  %v1301 = vld [vmem:[#allocation2 + $0x98] sm:$0xff]
  %v1302 = vsel %vm438, %v1283, 0
  %v1304 = vsel %vm438, %v1285, 0
  %v1306 = vsel %vm438, %v1287, 0
  %v1308 = vsel %vm438, %v1289, 0
  %1310 = vmatprep.subr.mxu0 0.0
  %1311 = vmatpush1.msra.mxu0 %v430
  %1312 = vmatprep.subr.mxu0 0.0
  %1313 = vmatpush1.msra.mxu0 %v431
  %1314 = vmatprep.subr.mxu0 0.0
  %1315 = vmatpush1.msra.mxu0 %v432
  %1316 = vmatprep.subr.mxu0 0.0
  %1317 = vmatpush1.msra.mxu0 %v433
  %1318 = vmatprep.subr.mxu0 0.0
  %1319 = vmatpush1.msra.mxu0 0.0
  %1320 = vmatprep.subr.mxu0 0.0
  %1321 = vmatpush1.msra.mxu0 0.0
  %1322 = vmatprep.subr.mxu0 0.0
  %1323 = vmatpush1.msra.mxu0 0.0
  %1324 = vmatprep.subr.mxu0 0.0
  %1325 = vmatpush1.msra.mxu0 0.0
  %1326 = vmatprep.subr.mxu0 0.0
  %1327 = vmatpush1.msra.mxu0 0.0
  %1328 = vmatprep.subr.mxu0 0.0
  %1329 = vmatpush1.msra.mxu0 0.0
  %1330 = vmatprep.subr.mxu0 0.0
  %1331 = vmatpush1.msra.mxu0 0.0
  %1332 = vmatprep.subr.mxu0 0.0
  %1333 = vmatpush1.msra.mxu0 0.0
  %1334 = vmatprep.subr.mxu0 0.0
  %1335 = vmatpush1.msra.mxu0 0.0
  %1336 = vmatprep.subr.mxu0 0.0
  %1337 = vmatpush1.msra.mxu0 0.0
  %1338 = vmatprep.subr.mxu0 0.0
  %1339 = vmatpush1.msra.mxu0 0.0
  %1340 = vmatprep.subr.mxu0 0.0
  %1341 = vmatpush1.msra.mxu0 0.0
  %1342 = vmatprep.subr.mxu0 0.0
  %1343 = vmatpush1.msra.mxu0 0.0
  %1344 = vmatprep.subr.mxu0 0.0
  %1345 = vmatpush1.msra.mxu0 0.0
  %1346 = vmatprep.subr.mxu0 0.0
  %1347 = vmatpush1.msra.mxu0 0.0
  %1348 = vmatprep.subr.mxu0 0.0
  %1349 = vmatpush1.msra.mxu0 0.0
  %1350 = vmatprep.subr.mxu0 0.0
  %1351 = vmatpush1.msra.mxu0 0.0
  %1352 = vmatprep.subr.mxu0 0.0
  %1353 = vmatpush1.msra.mxu0 0.0
  %1354 = vmatprep.subr.mxu0 0.0
  %1355 = vmatpush1.msra.mxu0 0.0
  %1356 = vmatprep.subr.mxu0 0.0
  %1357 = vmatpush1.msra.mxu0 0.0
  %1358 = vmatprep.subr.mxu0 0.0
  %1359 = vmatpush1.msra.mxu0 0.0
  %1360 = vmatprep.subr.mxu0 0.0
  %1361 = vmatpush1.msra.mxu0 0.0
  %1362 = vmatprep.subr.mxu0 0.0
  %1363 = vmatpush1.msra.mxu0 0.0
  %1364 = vmatprep.subr.mxu0 0.0
  %1365 = vmatpush1.msra.mxu0 0.0
  %1366 = vmatprep.subr.mxu0 0.0
  %1367 = vmatpush1.msra.mxu0 0.0
  %1368 = vmatprep.subr.mxu0 0.0
  %1369 = vmatpush1.msra.mxu0 0.0
  %1370 = vmatprep.subr.mxu0 0.0
  %1371 = vmatpush1.msra.mxu0 0.0
  %1372 = vmatprep.subr.mxu0 0.0
  %1373 = vmatpush1.msra.mxu0 0.0
  %1374 = vmatprep.mubr.f32.mxu0 0.0
  %1375 = vmatmul.mubr.f32.gmra.mrb[0].mxu0 %v1302
  %v1376 = vpop.f32.mrb[0].mxu0
  %v1377 = vadd.f32 0.0, %v1376
  %v1378 = vpop.f32.mrb[0].mxu0
  %1379 = vmatprep.mubr.f32.mxu0 0.0
  %1380 = vmatmul.mubr.f32.gmra.mrb[0].mxu0 %v1304
  %v1381 = vpop.f32.mrb[0].mxu0
  %v1382 = vadd.f32 0.0, %v1381
  %v1383 = vpop.f32.mrb[0].mxu0
  %1384 = vmatprep.mubr.f32.mxu0 0.0
  %1385 = vmatmul.mubr.f32.gmra.mrb[0].mxu0 %v1306
  %v1386 = vpop.f32.mrb[0].mxu0
  %v1387 = vadd.f32 0.0, %v1386
  %v1388 = vpop.f32.mrb[0].mxu0
  %1389 = vmatprep.mubr.f32.mxu0 0.0
  %1390 = vmatmul.mubr.f32.gmra.mrb[0].mxu0 %v1308
  %v1391 = vpop.f32.mrb[0].mxu0
  %v1392 = vadd.f32 0.0, %v1391
  %v1393 = vpop.f32.mrb[0].mxu0
  %1394 = vdwg.mxu0
  %v1395 = vadd.f32 %v1298, %v1377
  %v1396 = vadd.f32 %v1299, %v1382
  %v1397 = vadd.f32 %v1300, %v1387
  %v1398 = vadd.f32 %v1301, %v1392
  %v1399 = vxor.u32 %v1395, 2147483648
  %v1400 = vxor.u32 %v1396, 2147483648
  %v1401 = vxor.u32 %v1397, 2147483648
  %v1402 = vxor.u32 %v1398, 2147483648
  %v1403 = vmul.f32 %v1399, 1.442695
  %v1404 = vpow.pop %v1403
  %v1405 = vmul.f32 %v1400, 1.442695
  %v1406 = vpow.pop %v1405
  %v1407 = vmul.f32 %v1401, 1.442695
  %v1408 = vpow.pop %v1407
  %v1409 = vmul.f32 %v1402, 1.442695
  %v1410 = vpow.pop %v1409
  %v1411 = vadd.f32 %v1404, 1.0
  %v1412 = vadd.f32 %v1406, 1.0
  %v1413 = vadd.f32 %v1408, 1.0
  %v1414 = vadd.f32 %v1410, 1.0
  %v1415 = vrcp.pop %v1411
  %v1416 = vmul.f32 1.0, %v1415
  %v1417 = vrcp.pop %v1412
  %v1418 = vmul.f32 1.0, %v1417
  %v1419 = vrcp.pop %v1413
  %v1420 = vmul.f32 1.0, %v1419
  %v1421 = vrcp.pop %v1414
  %v1422 = vmul.f32 1.0, %v1421
  %v1423 = vtanh.pop %v1395
  %v1424 = vtanh.pop %v1396
  %v1425 = vtanh.pop %v1397
  %v1426 = vtanh.pop %v1398
  %v1427 = vmul.f32 %v1416, %v1250
  %v1428 = vmul.f32 %v1418, %v1251
  %v1429 = vmul.f32 %v1420, %v1252
  %v1430 = vmul.f32 %v1422, %v1253
  %1435 = vrot.lane.b32.xlu0 %v1423, 64
  %v1436 = vpop.permute.xlu0 %1435
  %1437 = vrot.lane.b32.xlu0 %v1424, 64
  %v1438 = vpop.permute.xlu0 %1437
  %1439 = vrot.lane.b32.xlu0 %v1425, 64
  %v1440 = vpop.permute.xlu0 %1439
  %1441 = vrot.lane.b32.xlu0 %v1426, 64
  %v1442 = vpop.permute.xlu0 %1441
  %v1447 = vmul.f32 %v1416, %v1436
  %v1448 = vmul.f32 %v1418, %v1438
  %v1449 = vmul.f32 %v1420, %v1440
  %v1450 = vmul.f32 %v1422, %v1442
  %1455 = vrot.lane.b32.xlu0 %v1447, 32
  %v1456 = vpop.permute.xlu0 %1455
  %1457 = vrot.lane.b32.xlu0 %v1448, 32
  %v1458 = vpop.permute.xlu0 %1457
  %1459 = vrot.lane.b32.xlu0 %v1449, 32
  %v1460 = vpop.permute.xlu0 %1459
  %1461 = vrot.lane.b32.xlu0 %v1450, 32
  %v1462 = vpop.permute.xlu0 %1461
  %v1467 = vadd.f32 %v1427, %v1456
  %v1468 = vadd.f32 %v1428, %v1458
  %v1469 = vadd.f32 %v1429, %v1460
  %v1470 = vadd.f32 %v1430, %v1462
  %v1471 = vtanh.pop %v1467
  %v1472 = vtanh.pop %v1468
  %v1473 = vtanh.pop %v1469
  %v1474 = vtanh.pop %v1470
  %1479 = vrot.lane.b32.xlu0 %v1471, 64
  %v1480 = vpop.permute.xlu0 %1479
  %1481 = vrot.lane.b32.xlu0 %v1472, 64
  %v1482 = vpop.permute.xlu0 %1481
  %1483 = vrot.lane.b32.xlu0 %v1473, 64
  %v1484 = vpop.permute.xlu0 %1483
  %1485 = vrot.lane.b32.xlu0 %v1474, 64
  %v1486 = vpop.permute.xlu0 %1485
  %v1491 = vmul.f32 %v1416, %v1480
  %v1492 = vmul.f32 %v1418, %v1482
  %v1493 = vmul.f32 %v1420, %v1484
  %v1494 = vmul.f32 %v1422, %v1486
  %1499 = vrot.lane.b32.xlu0 %v1491, 32
  %v1500 = vpop.permute.xlu0 %1499
  %1501 = vrot.lane.b32.xlu0 %v1492, 32
  %v1502 = vpop.permute.xlu0 %1501
  %1503 = vrot.lane.b32.xlu0 %v1493, 32
  %v1504 = vpop.permute.xlu0 %1503
  %1505 = vrot.lane.b32.xlu0 %v1494, 32
  %v1506 = vpop.permute.xlu0 %1505
  %1511 = vst.msk [vmem:[#allocation3 + $0x80] sm:$0xff] %vm438, %v1500
  %1512 = vst.msk [vmem:[#allocation3 + $0x88] sm:$0xff] %vm438, %v1502
  %1513 = vst.msk [vmem:[#allocation3 + $0x90] sm:$0xff] %vm438, %v1504
  %1514 = vst.msk [vmem:[#allocation3 + $0x98] sm:$0xff] %vm438, %v1506
  %v1515 = vld [vmem:[#allocation2 + $0xa0] sm:$0xff]
  %v1516 = vld [vmem:[#allocation2 + $0xa8] sm:$0xff]
  %v1517 = vld [vmem:[#allocation2 + $0xb0] sm:$0xff]
  %v1518 = vld [vmem:[#allocation2 + $0xb8] sm:$0xff]
  %v1519 = vsel %vm438, %v1500, 0
  %v1521 = vsel %vm438, %v1502, 0
  %v1523 = vsel %vm438, %v1504, 0
  %v1525 = vsel %vm438, %v1506, 0
  %1527 = vmatprep.subr.mxu0 0.0
  %1528 = vmatpush1.msra.mxu0 %v430
  %1529 = vmatprep.subr.mxu0 0.0
  %1530 = vmatpush1.msra.mxu0 %v431
  %1531 = vmatprep.subr.mxu0 0.0
  %1532 = vmatpush1.msra.mxu0 %v432
  %1533 = vmatprep.subr.mxu0 0.0
  %1534 = vmatpush1.msra.mxu0 %v433
  %1535 = vmatprep.subr.mxu0 0.0
  %1536 = vmatpush1.msra.mxu0 0.0
  %1537 = vmatprep.subr.mxu0 0.0
  %1538 = vmatpush1.msra.mxu0 0.0
  %1539 = vmatprep.subr.mxu0 0.0
  %1540 = vmatpush1.msra.mxu0 0.0
  %1541 = vmatprep.subr.mxu0 0.0
  %1542 = vmatpush1.msra.mxu0 0.0
  %1543 = vmatprep.subr.mxu0 0.0
  %1544 = vmatpush1.msra.mxu0 0.0
  %1545 = vmatprep.subr.mxu0 0.0
  %1546 = vmatpush1.msra.mxu0 0.0
  %1547 = vmatprep.subr.mxu0 0.0
  %1548 = vmatpush1.msra.mxu0 0.0
  %1549 = vmatprep.subr.mxu0 0.0
  %1550 = vmatpush1.msra.mxu0 0.0
  %1551 = vmatprep.subr.mxu0 0.0
  %1552 = vmatpush1.msra.mxu0 0.0
  %1553 = vmatprep.subr.mxu0 0.0
  %1554 = vmatpush1.msra.mxu0 0.0
  %1555 = vmatprep.subr.mxu0 0.0
  %1556 = vmatpush1.msra.mxu0 0.0
  %1557 = vmatprep.subr.mxu0 0.0
  %1558 = vmatpush1.msra.mxu0 0.0
  %1559 = vmatprep.subr.mxu0 0.0
  %1560 = vmatpush1.msra.mxu0 0.0
  %1561 = vmatprep.subr.mxu0 0.0
  %1562 = vmatpush1.msra.mxu0 0.0
  %1563 = vmatprep.subr.mxu0 0.0
  %1564 = vmatpush1.msra.mxu0 0.0
  %1565 = vmatprep.subr.mxu0 0.0
  %1566 = vmatpush1.msra.mxu0 0.0
  %1567 = vmatprep.subr.mxu0 0.0
  %1568 = vmatpush1.msra.mxu0 0.0
  %1569 = vmatprep.subr.mxu0 0.0
  %1570 = vmatpush1.msra.mxu0 0.0
  %1571 = vmatprep.subr.mxu0 0.0
  %1572 = vmatpush1.msra.mxu0 0.0
  %1573 = vmatprep.subr.mxu0 0.0
  %1574 = vmatpush1.msra.mxu0 0.0
  %1575 = vmatprep.subr.mxu0 0.0
  %1576 = vmatpush1.msra.mxu0 0.0
  %1577 = vmatprep.subr.mxu0 0.0
  %1578 = vmatpush1.msra.mxu0 0.0
  %1579 = vmatprep.subr.mxu0 0.0
  %1580 = vmatpush1.msra.mxu0 0.0
  %1581 = vmatprep.subr.mxu0 0.0
  %1582 = vmatpush1.msra.mxu0 0.0
  %1583 = vmatprep.subr.mxu0 0.0
  %1584 = vmatpush1.msra.mxu0 0.0
  %1585 = vmatprep.subr.mxu0 0.0
  %1586 = vmatpush1.msra.mxu0 0.0
  %1587 = vmatprep.subr.mxu0 0.0
  %1588 = vmatpush1.msra.mxu0 0.0
  %1589 = vmatprep.subr.mxu0 0.0
  %1590 = vmatpush1.msra.mxu0 0.0
  %1591 = vmatprep.mubr.f32.mxu0 0.0
  %1592 = vmatmul.mubr.f32.gmra.mrb[0].mxu0 %v1519
  %v1593 = vpop.f32.mrb[0].mxu0
  %v1594 = vadd.f32 0.0, %v1593
  %v1595 = vpop.f32.mrb[0].mxu0
  %1596 = vmatprep.mubr.f32.mxu0 0.0
  %1597 = vmatmul.mubr.f32.gmra.mrb[0].mxu0 %v1521
  %v1598 = vpop.f32.mrb[0].mxu0
  %v1599 = vadd.f32 0.0, %v1598
  %v1600 = vpop.f32.mrb[0].mxu0
  %1601 = vmatprep.mubr.f32.mxu0 0.0
  %1602 = vmatmul.mubr.f32.gmra.mrb[0].mxu0 %v1523
  %v1603 = vpop.f32.mrb[0].mxu0
  %v1604 = vadd.f32 0.0, %v1603
  %v1605 = vpop.f32.mrb[0].mxu0
  %1606 = vmatprep.mubr.f32.mxu0 0.0
  %1607 = vmatmul.mubr.f32.gmra.mrb[0].mxu0 %v1525
  %v1608 = vpop.f32.mrb[0].mxu0
  %v1609 = vadd.f32 0.0, %v1608
  %v1610 = vpop.f32.mrb[0].mxu0
  %1611 = vdwg.mxu0
  %v1612 = vadd.f32 %v1515, %v1594
  %v1613 = vadd.f32 %v1516, %v1599
  %v1614 = vadd.f32 %v1517, %v1604
  %v1615 = vadd.f32 %v1518, %v1609
  %v1616 = vxor.u32 %v1612, 2147483648
  %v1617 = vxor.u32 %v1613, 2147483648
  %v1618 = vxor.u32 %v1614, 2147483648
  %v1619 = vxor.u32 %v1615, 2147483648
  %v1620 = vmul.f32 %v1616, 1.442695
  %v1621 = vpow.pop %v1620
  %v1622 = vmul.f32 %v1617, 1.442695
  %v1623 = vpow.pop %v1622
  %v1624 = vmul.f32 %v1618, 1.442695
  %v1625 = vpow.pop %v1624
  %v1626 = vmul.f32 %v1619, 1.442695
  %v1627 = vpow.pop %v1626
  %v1628 = vadd.f32 %v1621, 1.0
  %v1629 = vadd.f32 %v1623, 1.0
  %v1630 = vadd.f32 %v1625, 1.0
  %v1631 = vadd.f32 %v1627, 1.0
  %v1632 = vrcp.pop %v1628
  %v1633 = vmul.f32 1.0, %v1632
  %v1634 = vrcp.pop %v1629
  %v1635 = vmul.f32 1.0, %v1634
  %v1636 = vrcp.pop %v1630
  %v1637 = vmul.f32 1.0, %v1636
  %v1638 = vrcp.pop %v1631
  %v1639 = vmul.f32 1.0, %v1638
  %v1640 = vtanh.pop %v1612
  %v1641 = vtanh.pop %v1613
  %v1642 = vtanh.pop %v1614
  %v1643 = vtanh.pop %v1615
  %v1644 = vmul.f32 %v1633, %v1467
  %v1645 = vmul.f32 %v1635, %v1468
  %v1646 = vmul.f32 %v1637, %v1469
  %v1647 = vmul.f32 %v1639, %v1470
  %1652 = vrot.lane.b32.xlu0 %v1640, 64
  %v1653 = vpop.permute.xlu0 %1652
  %1654 = vrot.lane.b32.xlu0 %v1641, 64
  %v1655 = vpop.permute.xlu0 %1654
  %1656 = vrot.lane.b32.xlu0 %v1642, 64
  %v1657 = vpop.permute.xlu0 %1656
  %1658 = vrot.lane.b32.xlu0 %v1643, 64
  %v1659 = vpop.permute.xlu0 %1658
  %v1664 = vmul.f32 %v1633, %v1653
  %v1665 = vmul.f32 %v1635, %v1655
  %v1666 = vmul.f32 %v1637, %v1657
  %v1667 = vmul.f32 %v1639, %v1659
  %1672 = vrot.lane.b32.xlu0 %v1664, 32
  %v1673 = vpop.permute.xlu0 %1672
  %1674 = vrot.lane.b32.xlu0 %v1665, 32
  %v1675 = vpop.permute.xlu0 %1674
  %1676 = vrot.lane.b32.xlu0 %v1666, 32
  %v1677 = vpop.permute.xlu0 %1676
  %1678 = vrot.lane.b32.xlu0 %v1667, 32
  %v1679 = vpop.permute.xlu0 %1678
  %v1684 = vadd.f32 %v1644, %v1673
  %v1685 = vadd.f32 %v1645, %v1675
  %v1686 = vadd.f32 %v1646, %v1677
  %v1687 = vadd.f32 %v1647, %v1679
  %v1688 = vtanh.pop %v1684
  %v1689 = vtanh.pop %v1685
  %v1690 = vtanh.pop %v1686
  %v1691 = vtanh.pop %v1687
  %1696 = vrot.lane.b32.xlu0 %v1688, 64
  %v1697 = vpop.permute.xlu0 %1696
  %1698 = vrot.lane.b32.xlu0 %v1689, 64
  %v1699 = vpop.permute.xlu0 %1698
  %1700 = vrot.lane.b32.xlu0 %v1690, 64
  %v1701 = vpop.permute.xlu0 %1700
  %1702 = vrot.lane.b32.xlu0 %v1691, 64
  %v1703 = vpop.permute.xlu0 %1702
  %v1708 = vmul.f32 %v1633, %v1697
  %v1709 = vmul.f32 %v1635, %v1699
  %v1710 = vmul.f32 %v1637, %v1701
  %v1711 = vmul.f32 %v1639, %v1703
  %1716 = vrot.lane.b32.xlu0 %v1708, 32
  %v1717 = vpop.permute.xlu0 %1716
  %1718 = vrot.lane.b32.xlu0 %v1709, 32
  %v1719 = vpop.permute.xlu0 %1718
  %1720 = vrot.lane.b32.xlu0 %v1710, 32
  %v1721 = vpop.permute.xlu0 %1720
  %1722 = vrot.lane.b32.xlu0 %v1711, 32
  %v1723 = vpop.permute.xlu0 %1722
  %1728 = vst.msk [vmem:[#allocation3 + $0xa0] sm:$0xff] %vm438, %v1717
  %1729 = vst.msk [vmem:[#allocation3 + $0xa8] sm:$0xff] %vm438, %v1719
  %1730 = vst.msk [vmem:[#allocation3 + $0xb0] sm:$0xff] %vm438, %v1721
  %1731 = vst.msk [vmem:[#allocation3 + $0xb8] sm:$0xff] %vm438, %v1723
  %v1732 = vld [vmem:[#allocation2 + $0xc0] sm:$0xff]
  %v1733 = vld [vmem:[#allocation2 + $0xc8] sm:$0xff]
  %v1734 = vld [vmem:[#allocation2 + $0xd0] sm:$0xff]
  %v1735 = vld [vmem:[#allocation2 + $0xd8] sm:$0xff]
  %v1736 = vsel %vm438, %v1717, 0
  %v1738 = vsel %vm438, %v1719, 0
  %v1740 = vsel %vm438, %v1721, 0
  %v1742 = vsel %vm438, %v1723, 0
  %1744 = vmatprep.subr.mxu0 0.0
  %1745 = vmatpush1.msra.mxu0 %v430
  %1746 = vmatprep.subr.mxu0 0.0
  %1747 = vmatpush1.msra.mxu0 %v431
  %1748 = vmatprep.subr.mxu0 0.0
  %1749 = vmatpush1.msra.mxu0 %v432
  %1750 = vmatprep.subr.mxu0 0.0
  %1751 = vmatpush1.msra.mxu0 %v433
  %1752 = vmatprep.subr.mxu0 0.0
  %1753 = vmatpush1.msra.mxu0 0.0
  %1754 = vmatprep.subr.mxu0 0.0
  %1755 = vmatpush1.msra.mxu0 0.0
  %1756 = vmatprep.subr.mxu0 0.0
  %1757 = vmatpush1.msra.mxu0 0.0
  %1758 = vmatprep.subr.mxu0 0.0
  %1759 = vmatpush1.msra.mxu0 0.0
  %1760 = vmatprep.subr.mxu0 0.0
  %1761 = vmatpush1.msra.mxu0 0.0
  %1762 = vmatprep.subr.mxu0 0.0
  %1763 = vmatpush1.msra.mxu0 0.0
  %1764 = vmatprep.subr.mxu0 0.0
  %1765 = vmatpush1.msra.mxu0 0.0
  %1766 = vmatprep.subr.mxu0 0.0
  %1767 = vmatpush1.msra.mxu0 0.0
  %1768 = vmatprep.subr.mxu0 0.0
  %1769 = vmatpush1.msra.mxu0 0.0
  %1770 = vmatprep.subr.mxu0 0.0
  %1771 = vmatpush1.msra.mxu0 0.0
  %1772 = vmatprep.subr.mxu0 0.0
  %1773 = vmatpush1.msra.mxu0 0.0
  %1774 = vmatprep.subr.mxu0 0.0
  %1775 = vmatpush1.msra.mxu0 0.0
  %1776 = vmatprep.subr.mxu0 0.0
  %1777 = vmatpush1.msra.mxu0 0.0
  %1778 = vmatprep.subr.mxu0 0.0
  %1779 = vmatpush1.msra.mxu0 0.0
  %1780 = vmatprep.subr.mxu0 0.0
  %1781 = vmatpush1.msra.mxu0 0.0
  %1782 = vmatprep.subr.mxu0 0.0
  %1783 = vmatpush1.msra.mxu0 0.0
  %1784 = vmatprep.subr.mxu0 0.0
  %1785 = vmatpush1.msra.mxu0 0.0
  %1786 = vmatprep.subr.mxu0 0.0
  %1787 = vmatpush1.msra.mxu0 0.0
  %1788 = vmatprep.subr.mxu0 0.0
  %1789 = vmatpush1.msra.mxu0 0.0
  %1790 = vmatprep.subr.mxu0 0.0
  %1791 = vmatpush1.msra.mxu0 0.0
  %1792 = vmatprep.subr.mxu0 0.0
  %1793 = vmatpush1.msra.mxu0 0.0
  %1794 = vmatprep.subr.mxu0 0.0
  %1795 = vmatpush1.msra.mxu0 0.0
  %1796 = vmatprep.subr.mxu0 0.0
  %1797 = vmatpush1.msra.mxu0 0.0
  %1798 = vmatprep.subr.mxu0 0.0
  %1799 = vmatpush1.msra.mxu0 0.0
  %1800 = vmatprep.subr.mxu0 0.0
  %1801 = vmatpush1.msra.mxu0 0.0
  %1802 = vmatprep.subr.mxu0 0.0
  %1803 = vmatpush1.msra.mxu0 0.0
  %1804 = vmatprep.subr.mxu0 0.0
  %1805 = vmatpush1.msra.mxu0 0.0
  %1806 = vmatprep.subr.mxu0 0.0
  %1807 = vmatpush1.msra.mxu0 0.0
  %1808 = vmatprep.mubr.f32.mxu0 0.0
  %1809 = vmatmul.mubr.f32.gmra.mrb[0].mxu0 %v1736
  %v1810 = vpop.f32.mrb[0].mxu0
  %v1811 = vadd.f32 0.0, %v1810
  %v1812 = vpop.f32.mrb[0].mxu0
  %1813 = vmatprep.mubr.f32.mxu0 0.0
  %1814 = vmatmul.mubr.f32.gmra.mrb[0].mxu0 %v1738
  %v1815 = vpop.f32.mrb[0].mxu0
  %v1816 = vadd.f32 0.0, %v1815
  %v1817 = vpop.f32.mrb[0].mxu0
  %1818 = vmatprep.mubr.f32.mxu0 0.0
  %1819 = vmatmul.mubr.f32.gmra.mrb[0].mxu0 %v1740
  %v1820 = vpop.f32.mrb[0].mxu0
  %v1821 = vadd.f32 0.0, %v1820
  %v1822 = vpop.f32.mrb[0].mxu0
  %1823 = vmatprep.mubr.f32.mxu0 0.0
  %1824 = vmatmul.mubr.f32.gmra.mrb[0].mxu0 %v1742
  %v1825 = vpop.f32.mrb[0].mxu0
  %v1826 = vadd.f32 0.0, %v1825
  %v1827 = vpop.f32.mrb[0].mxu0
  %1828 = vdwg.mxu0
  %v1829 = vadd.f32 %v1732, %v1811
  %v1830 = vadd.f32 %v1733, %v1816
  %v1831 = vadd.f32 %v1734, %v1821
  %v1832 = vadd.f32 %v1735, %v1826
  %v1833 = vxor.u32 %v1829, 2147483648
  %v1834 = vxor.u32 %v1830, 2147483648
  %v1835 = vxor.u32 %v1831, 2147483648
  %v1836 = vxor.u32 %v1832, 2147483648
  %v1837 = vmul.f32 %v1833, 1.442695
  %v1838 = vpow.pop %v1837
  %v1839 = vmul.f32 %v1834, 1.442695
  %v1840 = vpow.pop %v1839
  %v1841 = vmul.f32 %v1835, 1.442695
  %v1842 = vpow.pop %v1841
  %v1843 = vmul.f32 %v1836, 1.442695
  %v1844 = vpow.pop %v1843
  %v1845 = vadd.f32 %v1838, 1.0
  %v1846 = vadd.f32 %v1840, 1.0
  %v1847 = vadd.f32 %v1842, 1.0
  %v1848 = vadd.f32 %v1844, 1.0
  %v1849 = vrcp.pop %v1845
  %v1850 = vmul.f32 1.0, %v1849
  %v1851 = vrcp.pop %v1846
  %v1852 = vmul.f32 1.0, %v1851
  %v1853 = vrcp.pop %v1847
  %v1854 = vmul.f32 1.0, %v1853
  %v1855 = vrcp.pop %v1848
  %v1856 = vmul.f32 1.0, %v1855
  %v1857 = vtanh.pop %v1829
  %v1858 = vtanh.pop %v1830
  %v1859 = vtanh.pop %v1831
  %v1860 = vtanh.pop %v1832
  %v1861 = vmul.f32 %v1850, %v1684
  %v1862 = vmul.f32 %v1852, %v1685
  %v1863 = vmul.f32 %v1854, %v1686
  %v1864 = vmul.f32 %v1856, %v1687
  %1869 = vrot.lane.b32.xlu0 %v1857, 64
  %v1870 = vpop.permute.xlu0 %1869
  %1871 = vrot.lane.b32.xlu0 %v1858, 64
  %v1872 = vpop.permute.xlu0 %1871
  %1873 = vrot.lane.b32.xlu0 %v1859, 64
  %v1874 = vpop.permute.xlu0 %1873
  %1875 = vrot.lane.b32.xlu0 %v1860, 64
  %v1876 = vpop.permute.xlu0 %1875
  %v1881 = vmul.f32 %v1850, %v1870
  %v1882 = vmul.f32 %v1852, %v1872
  %v1883 = vmul.f32 %v1854, %v1874
  %v1884 = vmul.f32 %v1856, %v1876
  %1889 = vrot.lane.b32.xlu0 %v1881, 32
  %v1890 = vpop.permute.xlu0 %1889
  %1891 = vrot.lane.b32.xlu0 %v1882, 32
  %v1892 = vpop.permute.xlu0 %1891
  %1893 = vrot.lane.b32.xlu0 %v1883, 32
  %v1894 = vpop.permute.xlu0 %1893
  %1895 = vrot.lane.b32.xlu0 %v1884, 32
  %v1896 = vpop.permute.xlu0 %1895
  %v1901 = vadd.f32 %v1861, %v1890
  %v1902 = vadd.f32 %v1862, %v1892
  %v1903 = vadd.f32 %v1863, %v1894
  %v1904 = vadd.f32 %v1864, %v1896
  %v1905 = vtanh.pop %v1901
  %v1906 = vtanh.pop %v1902
  %v1907 = vtanh.pop %v1903
  %v1908 = vtanh.pop %v1904
  %1913 = vrot.lane.b32.xlu0 %v1905, 64
  %v1914 = vpop.permute.xlu0 %1913
  %1915 = vrot.lane.b32.xlu0 %v1906, 64
  %v1916 = vpop.permute.xlu0 %1915
  %1917 = vrot.lane.b32.xlu0 %v1907, 64
  %v1918 = vpop.permute.xlu0 %1917
  %1919 = vrot.lane.b32.xlu0 %v1908, 64
  %v1920 = vpop.permute.xlu0 %1919
  %v1925 = vmul.f32 %v1850, %v1914
  %v1926 = vmul.f32 %v1852, %v1916
  %v1927 = vmul.f32 %v1854, %v1918
  %v1928 = vmul.f32 %v1856, %v1920
  %1933 = vrot.lane.b32.xlu0 %v1925, 32
  %v1934 = vpop.permute.xlu0 %1933
  %1935 = vrot.lane.b32.xlu0 %v1926, 32
  %v1936 = vpop.permute.xlu0 %1935
  %1937 = vrot.lane.b32.xlu0 %v1927, 32
  %v1938 = vpop.permute.xlu0 %1937
  %1939 = vrot.lane.b32.xlu0 %v1928, 32
  %v1940 = vpop.permute.xlu0 %1939
  %1945 = vst.msk [vmem:[#allocation3 + $0xc0] sm:$0xff] %vm438, %v1934
  %1946 = vst.msk [vmem:[#allocation3 + $0xc8] sm:$0xff] %vm438, %v1936
  %1947 = vst.msk [vmem:[#allocation3 + $0xd0] sm:$0xff] %vm438, %v1938
  %1948 = vst.msk [vmem:[#allocation3 + $0xd8] sm:$0xff] %vm438, %v1940
  %v1949 = vld [vmem:[#allocation2 + $0xe0] sm:$0xff]
  %v1950 = vld [vmem:[#allocation2 + $0xe8] sm:$0xff]
  %v1951 = vld [vmem:[#allocation2 + $0xf0] sm:$0xff]
  %v1952 = vld [vmem:[#allocation2 + $0xf8] sm:$0xff]
  %v1953 = vsel %vm438, %v1934, 0
  %v1955 = vsel %vm438, %v1936, 0
  %v1957 = vsel %vm438, %v1938, 0
  %v1959 = vsel %vm438, %v1940, 0
  %1961 = vmatprep.subr.mxu0 0.0
  %1962 = vmatpush1.msra.mxu0 %v430
  %1963 = vmatprep.subr.mxu0 0.0
  %1964 = vmatpush1.msra.mxu0 %v431
  %1965 = vmatprep.subr.mxu0 0.0
  %1966 = vmatpush1.msra.mxu0 %v432
  %1967 = vmatprep.subr.mxu0 0.0
  %1968 = vmatpush1.msra.mxu0 %v433
  %1969 = vmatprep.subr.mxu0 0.0
  %1970 = vmatpush1.msra.mxu0 0.0
  %1971 = vmatprep.subr.mxu0 0.0
  %1972 = vmatpush1.msra.mxu0 0.0
  %1973 = vmatprep.subr.mxu0 0.0
  %1974 = vmatpush1.msra.mxu0 0.0
  %1975 = vmatprep.subr.mxu0 0.0
  %1976 = vmatpush1.msra.mxu0 0.0
  %1977 = vmatprep.subr.mxu0 0.0
  %1978 = vmatpush1.msra.mxu0 0.0
  %1979 = vmatprep.subr.mxu0 0.0
  %1980 = vmatpush1.msra.mxu0 0.0
  %1981 = vmatprep.subr.mxu0 0.0
  %1982 = vmatpush1.msra.mxu0 0.0
  %1983 = vmatprep.subr.mxu0 0.0
  %1984 = vmatpush1.msra.mxu0 0.0
  %1985 = vmatprep.subr.mxu0 0.0
  %1986 = vmatpush1.msra.mxu0 0.0
  %1987 = vmatprep.subr.mxu0 0.0
  %1988 = vmatpush1.msra.mxu0 0.0
  %1989 = vmatprep.subr.mxu0 0.0
  %1990 = vmatpush1.msra.mxu0 0.0
  %1991 = vmatprep.subr.mxu0 0.0
  %1992 = vmatpush1.msra.mxu0 0.0
  %1993 = vmatprep.subr.mxu0 0.0
  %1994 = vmatpush1.msra.mxu0 0.0
  %1995 = vmatprep.subr.mxu0 0.0
  %1996 = vmatpush1.msra.mxu0 0.0
  %1997 = vmatprep.subr.mxu0 0.0
  %1998 = vmatpush1.msra.mxu0 0.0
  %1999 = vmatprep.subr.mxu0 0.0
  %2000 = vmatpush1.msra.mxu0 0.0
  %2001 = vmatprep.subr.mxu0 0.0
  %2002 = vmatpush1.msra.mxu0 0.0
  %2003 = vmatprep.subr.mxu0 0.0
  %2004 = vmatpush1.msra.mxu0 0.0
  %2005 = vmatprep.subr.mxu0 0.0
  %2006 = vmatpush1.msra.mxu0 0.0
  %2007 = vmatprep.subr.mxu0 0.0
  %2008 = vmatpush1.msra.mxu0 0.0
  %2009 = vmatprep.subr.mxu0 0.0
  %2010 = vmatpush1.msra.mxu0 0.0
  %2011 = vmatprep.subr.mxu0 0.0
  %2012 = vmatpush1.msra.mxu0 0.0
  %2013 = vmatprep.subr.mxu0 0.0
  %2014 = vmatpush1.msra.mxu0 0.0
  %2015 = vmatprep.subr.mxu0 0.0
  %2016 = vmatpush1.msra.mxu0 0.0
  %2017 = vmatprep.subr.mxu0 0.0
  %2018 = vmatpush1.msra.mxu0 0.0
  %2019 = vmatprep.subr.mxu0 0.0
  %2020 = vmatpush1.msra.mxu0 0.0
  %2021 = vmatprep.subr.mxu0 0.0
  %2022 = vmatpush1.msra.mxu0 0.0
  %2023 = vmatprep.subr.mxu0 0.0
  %2024 = vmatpush1.msra.mxu0 0.0
  %2025 = vmatprep.mubr.f32.mxu0 0.0
  %2026 = vmatmul.mubr.f32.gmra.mrb[0].mxu0 %v1953
  %v2027 = vpop.f32.mrb[0].mxu0
  %v2028 = vadd.f32 0.0, %v2027
  %v2029 = vpop.f32.mrb[0].mxu0
  %2030 = vmatprep.mubr.f32.mxu0 0.0
  %2031 = vmatmul.mubr.f32.gmra.mrb[0].mxu0 %v1955
  %v2032 = vpop.f32.mrb[0].mxu0
  %v2033 = vadd.f32 0.0, %v2032
  %v2034 = vpop.f32.mrb[0].mxu0
  %2035 = vmatprep.mubr.f32.mxu0 0.0
  %2036 = vmatmul.mubr.f32.gmra.mrb[0].mxu0 %v1957
  %v2037 = vpop.f32.mrb[0].mxu0
  %v2038 = vadd.f32 0.0, %v2037
  %v2039 = vpop.f32.mrb[0].mxu0
  %2040 = vmatprep.mubr.f32.mxu0 0.0
  %2041 = vmatmul.mubr.f32.gmra.mrb[0].mxu0 %v1959
  %v2042 = vpop.f32.mrb[0].mxu0
  %v2043 = vadd.f32 0.0, %v2042
  %v2044 = vpop.f32.mrb[0].mxu0
  %2045 = vdwg.mxu0
  %v2046 = vadd.f32 %v1949, %v2028
  %v2047 = vadd.f32 %v1950, %v2033
  %v2048 = vadd.f32 %v1951, %v2038
  %v2049 = vadd.f32 %v1952, %v2043
  %v2050 = vxor.u32 %v2046, 2147483648
  %v2051 = vxor.u32 %v2047, 2147483648
  %v2052 = vxor.u32 %v2048, 2147483648
  %v2053 = vxor.u32 %v2049, 2147483648
  %v2054 = vmul.f32 %v2050, 1.442695
  %v2055 = vpow.pop %v2054
  %v2056 = vmul.f32 %v2051, 1.442695
  %v2057 = vpow.pop %v2056
  %v2058 = vmul.f32 %v2052, 1.442695
  %v2059 = vpow.pop %v2058
  %v2060 = vmul.f32 %v2053, 1.442695
  %v2061 = vpow.pop %v2060
  %v2062 = vadd.f32 %v2055, 1.0
  %v2063 = vadd.f32 %v2057, 1.0
  %v2064 = vadd.f32 %v2059, 1.0
  %v2065 = vadd.f32 %v2061, 1.0
  %v2066 = vrcp.pop %v2062
  %v2067 = vmul.f32 1.0, %v2066
  %v2068 = vrcp.pop %v2063
  %v2069 = vmul.f32 1.0, %v2068
  %v2070 = vrcp.pop %v2064
  %v2071 = vmul.f32 1.0, %v2070
  %v2072 = vrcp.pop %v2065
  %v2073 = vmul.f32 1.0, %v2072
  %v2074 = vtanh.pop %v2046
  %v2075 = vtanh.pop %v2047
  %v2076 = vtanh.pop %v2048
  %v2077 = vtanh.pop %v2049
  %v2078 = vmul.f32 %v2067, %v1901
  %v2079 = vmul.f32 %v2069, %v1902
  %v2080 = vmul.f32 %v2071, %v1903
  %v2081 = vmul.f32 %v2073, %v1904
  %2086 = vrot.lane.b32.xlu0 %v2074, 64
  %v2087 = vpop.permute.xlu0 %2086
  %2088 = vrot.lane.b32.xlu0 %v2075, 64
  %v2089 = vpop.permute.xlu0 %2088
  %2090 = vrot.lane.b32.xlu0 %v2076, 64
  %v2091 = vpop.permute.xlu0 %2090
  %2092 = vrot.lane.b32.xlu0 %v2077, 64
  %v2093 = vpop.permute.xlu0 %2092
  %v2098 = vmul.f32 %v2067, %v2087
  %v2099 = vmul.f32 %v2069, %v2089
  %v2100 = vmul.f32 %v2071, %v2091
  %v2101 = vmul.f32 %v2073, %v2093
  %2106 = vrot.lane.b32.xlu0 %v2098, 32
  %v2107 = vpop.permute.xlu0 %2106
  %2108 = vrot.lane.b32.xlu0 %v2099, 32
  %v2109 = vpop.permute.xlu0 %2108
  %2110 = vrot.lane.b32.xlu0 %v2100, 32
  %v2111 = vpop.permute.xlu0 %2110
  %2112 = vrot.lane.b32.xlu0 %v2101, 32
  %v2113 = vpop.permute.xlu0 %2112
  %v2118 = vadd.f32 %v2078, %v2107
  %v2119 = vadd.f32 %v2079, %v2109
  %v2120 = vadd.f32 %v2080, %v2111
  %v2121 = vadd.f32 %v2081, %v2113
  %v2122 = vtanh.pop %v2118
  %v2123 = vtanh.pop %v2119
  %v2124 = vtanh.pop %v2120
  %v2125 = vtanh.pop %v2121
  %2130 = vrot.lane.b32.xlu0 %v2122, 64
  %v2131 = vpop.permute.xlu0 %2130
  %2132 = vrot.lane.b32.xlu0 %v2123, 64
  %v2133 = vpop.permute.xlu0 %2132
  %2134 = vrot.lane.b32.xlu0 %v2124, 64
  %v2135 = vpop.permute.xlu0 %2134
  %2136 = vrot.lane.b32.xlu0 %v2125, 64
  %v2137 = vpop.permute.xlu0 %2136
  %v2142 = vmul.f32 %v2067, %v2131
  %v2143 = vmul.f32 %v2069, %v2133
  %v2144 = vmul.f32 %v2071, %v2135
  %v2145 = vmul.f32 %v2073, %v2137
  %2150 = vrot.lane.b32.xlu0 %v2142, 32
  %v2151 = vpop.permute.xlu0 %2150
  %2152 = vrot.lane.b32.xlu0 %v2143, 32
  %v2153 = vpop.permute.xlu0 %2152
  %2154 = vrot.lane.b32.xlu0 %v2144, 32
  %v2155 = vpop.permute.xlu0 %2154
  %2156 = vrot.lane.b32.xlu0 %v2145, 32
  %v2157 = vpop.permute.xlu0 %2156
  %2162 = vst.msk [vmem:[#allocation3 + $0xe0] sm:$0xff] %vm438, %v2151
  %2163 = vst.msk [vmem:[#allocation3 + $0xe8] sm:$0xff] %vm438, %v2153
  %2164 = vst.msk [vmem:[#allocation3 + $0xf0] sm:$0xff] %vm438, %v2155
  %2165 = vst.msk [vmem:[#allocation3 + $0xf8] sm:$0xff] %vm438, %v2157
  %v2166 = vld [vmem:[#allocation3] sm:$0xff]
  %v2167 = vld [vmem:[#allocation3 + $0x8] sm:$0xff]
  %v2168 = vld [vmem:[#allocation3 + $0x10] sm:$0xff]
  %v2169 = vld [vmem:[#allocation3 + $0x18] sm:$0xff]
  %v2170 = vld [vmem:[#allocation3 + $0x20] sm:$0xff]
  %v2171 = vld [vmem:[#allocation3 + $0x28] sm:$0xff]
  %v2172 = vld [vmem:[#allocation3 + $0x30] sm:$0xff]
  %v2173 = vld [vmem:[#allocation3 + $0x38] sm:$0xff]
  %v2174 = vld [vmem:[#allocation3 + $0x40] sm:$0xff]
  %v2175 = vld [vmem:[#allocation3 + $0x48] sm:$0xff]
  %v2176 = vld [vmem:[#allocation3 + $0x50] sm:$0xff]
  %v2177 = vld [vmem:[#allocation3 + $0x58] sm:$0xff]
  %v2178 = vld [vmem:[#allocation3 + $0x60] sm:$0xff]
  %v2179 = vld [vmem:[#allocation3 + $0x68] sm:$0xff]
  %v2180 = vld [vmem:[#allocation3 + $0x70] sm:$0xff]
  %v2181 = vld [vmem:[#allocation3 + $0x78] sm:$0xff]
  %v2182 = vld [vmem:[#allocation3 + $0x80] sm:$0xff]
  %v2183 = vld [vmem:[#allocation3 + $0x88] sm:$0xff]
  %v2184 = vld [vmem:[#allocation3 + $0x90] sm:$0xff]
  %v2185 = vld [vmem:[#allocation3 + $0x98] sm:$0xff]
  %v2186 = vld [vmem:[#allocation3 + $0xa0] sm:$0xff]
  %v2187 = vld [vmem:[#allocation3 + $0xa8] sm:$0xff]
  %v2188 = vld [vmem:[#allocation3 + $0xb0] sm:$0xff]
  %v2189 = vld [vmem:[#allocation3 + $0xb8] sm:$0xff]
  %v2190 = vld [vmem:[#allocation3 + $0xc0] sm:$0xff]
  %v2191 = vld [vmem:[#allocation3 + $0xc8] sm:$0xff]
  %v2192 = vld [vmem:[#allocation3 + $0xd0] sm:$0xff]
  %v2193 = vld [vmem:[#allocation3 + $0xd8] sm:$0xff]
  %v2194 = vld [vmem:[#allocation3 + $0xe0] sm:$0xff]
  %v2195 = vld [vmem:[#allocation3 + $0xe8] sm:$0xff]
  %v2196 = vld [vmem:[#allocation3 + $0xf0] sm:$0xff]
  %v2197 = vld [vmem:[#allocation3 + $0xf8] sm:$0xff]
  %v2198 = vld [vmem:[%s4] sm:$0xff]
  %v2199 = vld [vmem:[%s4 + $0x8] sm:$0xff]
  %v2200 = vld [vmem:[%s4 + $0x10] sm:$0xff]
  %v2201 = vld [vmem:[%s4 + $0x18] sm:$0xff]
  %v2202 = vld [vmem:[%s6] sm:$0x1]
  %v2204 = vlaneseq
  %v2205 = vshrl.u32 %v2204, 7
  %v2206 = vsub.s32 0, %v2205
  %v2207 = vrot.slane %v2202, %v2206
  %v2210 = vsel %vm438, %v2166, 0
  %v2213 = vsel %vm438, %v2167, 0
  %v2216 = vsel %vm438, %v2168, 0
  %v2219 = vsel %vm438, %v2169, 0
  %v2222 = vsel %vm438, %v2170, 0
  %v2225 = vsel %vm438, %v2171, 0
  %v2228 = vsel %vm438, %v2172, 0
  %v2231 = vsel %vm438, %v2173, 0
  %v2234 = vsel %vm438, %v2174, 0
  %v2237 = vsel %vm438, %v2175, 0
  %v2240 = vsel %vm438, %v2176, 0
  %v2243 = vsel %vm438, %v2177, 0
  %v2246 = vsel %vm438, %v2178, 0
  %v2249 = vsel %vm438, %v2179, 0
  %v2252 = vsel %vm438, %v2180, 0
  %v2255 = vsel %vm438, %v2181, 0
  %v2258 = vsel %vm438, %v2182, 0
  %v2261 = vsel %vm438, %v2183, 0
  %v2264 = vsel %vm438, %v2184, 0
  %v2267 = vsel %vm438, %v2185, 0
  %v2270 = vsel %vm438, %v2186, 0
  %v2273 = vsel %vm438, %v2187, 0
  %v2276 = vsel %vm438, %v2188, 0
  %v2279 = vsel %vm438, %v2189, 0
  %v2282 = vsel %vm438, %v2190, 0
  %v2285 = vsel %vm438, %v2191, 0
  %v2288 = vsel %vm438, %v2192, 0
  %v2291 = vsel %vm438, %v2193, 0
  %v2294 = vsel %vm438, %v2194, 0
  %v2297 = vsel %vm438, %v2195, 0
  %v2300 = vsel %vm438, %v2196, 0
  %v2303 = vsel %vm438, %v2197, 0
  %2305 = vmatprep.subr.mxu0 0.0
  %2306 = vmatpush1.msra.mxu0 %v2198
  %2307 = vmatprep.subr.mxu0 0.0
  %2308 = vmatpush1.msra.mxu0 %v2199
  %2309 = vmatprep.subr.mxu0 0.0
  %2310 = vmatpush1.msra.mxu0 %v2200
  %2311 = vmatprep.subr.mxu0 0.0
  %2312 = vmatpush1.msra.mxu0 %v2201
  %2313 = vmatprep.subr.mxu0 0.0
  %2314 = vmatpush1.msra.mxu0 0.0
  %2315 = vmatprep.subr.mxu0 0.0
  %2316 = vmatpush1.msra.mxu0 0.0
  %2317 = vmatprep.subr.mxu0 0.0
  %2318 = vmatpush1.msra.mxu0 0.0
  %2319 = vmatprep.subr.mxu0 0.0
  %2320 = vmatpush1.msra.mxu0 0.0
  %2321 = vmatprep.subr.mxu0 0.0
  %2322 = vmatpush1.msra.mxu0 0.0
  %2323 = vmatprep.subr.mxu0 0.0
  %2324 = vmatpush1.msra.mxu0 0.0
  %2325 = vmatprep.subr.mxu0 0.0
  %2326 = vmatpush1.msra.mxu0 0.0
  %2327 = vmatprep.subr.mxu0 0.0
  %2328 = vmatpush1.msra.mxu0 0.0
  %2329 = vmatprep.subr.mxu0 0.0
  %2330 = vmatpush1.msra.mxu0 0.0
  %2331 = vmatprep.subr.mxu0 0.0
  %2332 = vmatpush1.msra.mxu0 0.0
  %2333 = vmatprep.subr.mxu0 0.0
  %2334 = vmatpush1.msra.mxu0 0.0
  %2335 = vmatprep.subr.mxu0 0.0
  %2336 = vmatpush1.msra.mxu0 0.0
  %2337 = vmatprep.subr.mxu0 0.0
  %2338 = vmatpush1.msra.mxu0 0.0
  %2339 = vmatprep.subr.mxu0 0.0
  %2340 = vmatpush1.msra.mxu0 0.0
  %2341 = vmatprep.subr.mxu0 0.0
  %2342 = vmatpush1.msra.mxu0 0.0
  %2343 = vmatprep.subr.mxu0 0.0
  %2344 = vmatpush1.msra.mxu0 0.0
  %2345 = vmatprep.subr.mxu0 0.0
  %2346 = vmatpush1.msra.mxu0 0.0
  %2347 = vmatprep.subr.mxu0 0.0
  %2348 = vmatpush1.msra.mxu0 0.0
  %2349 = vmatprep.subr.mxu0 0.0
  %2350 = vmatpush1.msra.mxu0 0.0
  %2351 = vmatprep.subr.mxu0 0.0
  %2352 = vmatpush1.msra.mxu0 0.0
  %2353 = vmatprep.subr.mxu0 0.0
  %2354 = vmatpush1.msra.mxu0 0.0
  %2355 = vmatprep.subr.mxu0 0.0
  %2356 = vmatpush1.msra.mxu0 0.0
  %2357 = vmatprep.subr.mxu0 0.0
  %2358 = vmatpush1.msra.mxu0 0.0
  %2359 = vmatprep.subr.mxu0 0.0
  %2360 = vmatpush1.msra.mxu0 0.0
  %2361 = vmatprep.subr.mxu0 0.0
  %2362 = vmatpush1.msra.mxu0 0.0
  %2363 = vmatprep.subr.mxu0 0.0
  %2364 = vmatpush1.msra.mxu0 0.0
  %2365 = vmatprep.subr.mxu0 0.0
  %2366 = vmatpush1.msra.mxu0 0.0
  %2367 = vmatprep.subr.mxu0 0.0
  %2368 = vmatpush1.msra.mxu0 0.0
  %2369 = vmatprep.mubr.f32.mxu0 0.0
  %2370 = vmatmul.mubr.f32.gmra.mrb[0].mxu0 %v2210
  %v2371 = vpop.f32.mrb[0].mxu0
  %v2372 = vadd.f32 %v2207, %v2371
  %v2373 = vpop.f32.mrb[0].mxu0
  %2374 = vmatprep.mubr.f32.mxu0 0.0
  %2375 = vmatmul.mubr.f32.gmra.mrb[0].mxu0 %v2213
  %v2376 = vpop.f32.mrb[0].mxu0
  %v2377 = vadd.f32 %v2207, %v2376
  %v2378 = vpop.f32.mrb[0].mxu0
  %2379 = vmatprep.mubr.f32.mxu0 0.0
  %2380 = vmatmul.mubr.f32.gmra.mrb[0].mxu0 %v2216
  %v2381 = vpop.f32.mrb[0].mxu0
  %v2382 = vadd.f32 %v2207, %v2381
  %v2383 = vpop.f32.mrb[0].mxu0
  %2384 = vmatprep.mubr.f32.mxu0 0.0
  %2385 = vmatmul.mubr.f32.gmra.mrb[0].mxu0 %v2219
  %v2386 = vpop.f32.mrb[0].mxu0
  %v2387 = vadd.f32 %v2207, %v2386
  %v2388 = vpop.f32.mrb[0].mxu0
  %2389 = vmatprep.mubr.f32.mxu0 0.0
  %2390 = vmatmul.mubr.f32.gmra.mrb[0].mxu0 %v2222
  %v2391 = vpop.f32.mrb[0].mxu0
  %v2392 = vadd.f32 %v2207, %v2391
  %v2393 = vpop.f32.mrb[0].mxu0
  %2394 = vmatprep.mubr.f32.mxu0 0.0
  %2395 = vmatmul.mubr.f32.gmra.mrb[0].mxu0 %v2225
  %v2396 = vpop.f32.mrb[0].mxu0
  %v2397 = vadd.f32 %v2207, %v2396
  %v2398 = vpop.f32.mrb[0].mxu0
  %2399 = vmatprep.mubr.f32.mxu0 0.0
  %2400 = vmatmul.mubr.f32.gmra.mrb[0].mxu0 %v2228
  %v2401 = vpop.f32.mrb[0].mxu0
  %v2402 = vadd.f32 %v2207, %v2401
  %v2403 = vpop.f32.mrb[0].mxu0
  %2404 = vmatprep.mubr.f32.mxu0 0.0
  %2405 = vmatmul.mubr.f32.gmra.mrb[0].mxu0 %v2231
  %v2406 = vpop.f32.mrb[0].mxu0
  %v2407 = vadd.f32 %v2207, %v2406
  %v2408 = vpop.f32.mrb[0].mxu0
  %2409 = vmatprep.mubr.f32.mxu0 0.0
  %2410 = vmatmul.mubr.f32.gmra.mrb[0].mxu0 %v2234
  %v2411 = vpop.f32.mrb[0].mxu0
  %v2412 = vadd.f32 %v2207, %v2411
  %v2413 = vpop.f32.mrb[0].mxu0
  %2414 = vmatprep.mubr.f32.mxu0 0.0
  %2415 = vmatmul.mubr.f32.gmra.mrb[0].mxu0 %v2237
  %v2416 = vpop.f32.mrb[0].mxu0
  %v2417 = vadd.f32 %v2207, %v2416
  %v2418 = vpop.f32.mrb[0].mxu0
  %2419 = vmatprep.mubr.f32.mxu0 0.0
  %2420 = vmatmul.mubr.f32.gmra.mrb[0].mxu0 %v2240
  %v2421 = vpop.f32.mrb[0].mxu0
  %v2422 = vadd.f32 %v2207, %v2421
  %v2423 = vpop.f32.mrb[0].mxu0
  %2424 = vmatprep.mubr.f32.mxu0 0.0
  %2425 = vmatmul.mubr.f32.gmra.mrb[0].mxu0 %v2243
  %v2426 = vpop.f32.mrb[0].mxu0
  %v2427 = vadd.f32 %v2207, %v2426
  %v2428 = vpop.f32.mrb[0].mxu0
  %2429 = vmatprep.mubr.f32.mxu0 0.0
  %2430 = vmatmul.mubr.f32.gmra.mrb[0].mxu0 %v2246
  %v2431 = vpop.f32.mrb[0].mxu0
  %v2432 = vadd.f32 %v2207, %v2431
  %v2433 = vpop.f32.mrb[0].mxu0
  %2434 = vmatprep.mubr.f32.mxu0 0.0
  %2435 = vmatmul.mubr.f32.gmra.mrb[0].mxu0 %v2249
  %v2436 = vpop.f32.mrb[0].mxu0
  %v2437 = vadd.f32 %v2207, %v2436
  %v2438 = vpop.f32.mrb[0].mxu0
  %2439 = vmatprep.mubr.f32.mxu0 0.0
  %2440 = vmatmul.mubr.f32.gmra.mrb[0].mxu0 %v2252
  %v2441 = vpop.f32.mrb[0].mxu0
  %v2442 = vadd.f32 %v2207, %v2441
  %v2443 = vpop.f32.mrb[0].mxu0
  %2444 = vmatprep.mubr.f32.mxu0 0.0
  %2445 = vmatmul.mubr.f32.gmra.mrb[0].mxu0 %v2255
  %v2446 = vpop.f32.mrb[0].mxu0
  %v2447 = vadd.f32 %v2207, %v2446
  %v2448 = vpop.f32.mrb[0].mxu0
  %2449 = vmatprep.mubr.f32.mxu0 0.0
  %2450 = vmatmul.mubr.f32.gmra.mrb[0].mxu0 %v2258
  %v2451 = vpop.f32.mrb[0].mxu0
  %v2452 = vadd.f32 %v2207, %v2451
  %v2453 = vpop.f32.mrb[0].mxu0
  %2454 = vmatprep.mubr.f32.mxu0 0.0
  %2455 = vmatmul.mubr.f32.gmra.mrb[0].mxu0 %v2261
  %v2456 = vpop.f32.mrb[0].mxu0
  %v2457 = vadd.f32 %v2207, %v2456
  %v2458 = vpop.f32.mrb[0].mxu0
  %2459 = vmatprep.mubr.f32.mxu0 0.0
  %2460 = vmatmul.mubr.f32.gmra.mrb[0].mxu0 %v2264
  %v2461 = vpop.f32.mrb[0].mxu0
  %v2462 = vadd.f32 %v2207, %v2461
  %v2463 = vpop.f32.mrb[0].mxu0
  %2464 = vmatprep.mubr.f32.mxu0 0.0
  %2465 = vmatmul.mubr.f32.gmra.mrb[0].mxu0 %v2267
  %v2466 = vpop.f32.mrb[0].mxu0
  %v2467 = vadd.f32 %v2207, %v2466
  %v2468 = vpop.f32.mrb[0].mxu0
  %2469 = vmatprep.mubr.f32.mxu0 0.0
  %2470 = vmatmul.mubr.f32.gmra.mrb[0].mxu0 %v2270
  %v2471 = vpop.f32.mrb[0].mxu0
  %v2472 = vadd.f32 %v2207, %v2471
  %v2473 = vpop.f32.mrb[0].mxu0
  %2474 = vmatprep.mubr.f32.mxu0 0.0
  %2475 = vmatmul.mubr.f32.gmra.mrb[0].mxu0 %v2273
  %v2476 = vpop.f32.mrb[0].mxu0
  %v2477 = vadd.f32 %v2207, %v2476
  %v2478 = vpop.f32.mrb[0].mxu0
  %2479 = vmatprep.mubr.f32.mxu0 0.0
  %2480 = vmatmul.mubr.f32.gmra.mrb[0].mxu0 %v2276
  %v2481 = vpop.f32.mrb[0].mxu0
  %v2482 = vadd.f32 %v2207, %v2481
  %v2483 = vpop.f32.mrb[0].mxu0
  %2484 = vmatprep.mubr.f32.mxu0 0.0
  %2485 = vmatmul.mubr.f32.gmra.mrb[0].mxu0 %v2279
  %v2486 = vpop.f32.mrb[0].mxu0
  %v2487 = vadd.f32 %v2207, %v2486
  %v2488 = vpop.f32.mrb[0].mxu0
  %2489 = vmatprep.mubr.f32.mxu0 0.0
  %2490 = vmatmul.mubr.f32.gmra.mrb[0].mxu0 %v2282
  %v2491 = vpop.f32.mrb[0].mxu0
  %v2492 = vadd.f32 %v2207, %v2491
  %v2493 = vpop.f32.mrb[0].mxu0
  %2494 = vmatprep.mubr.f32.mxu0 0.0
  %2495 = vmatmul.mubr.f32.gmra.mrb[0].mxu0 %v2285
  %v2496 = vpop.f32.mrb[0].mxu0
  %v2497 = vadd.f32 %v2207, %v2496
  %v2498 = vpop.f32.mrb[0].mxu0
  %2499 = vmatprep.mubr.f32.mxu0 0.0
  %2500 = vmatmul.mubr.f32.gmra.mrb[0].mxu0 %v2288
  %v2501 = vpop.f32.mrb[0].mxu0
  %v2502 = vadd.f32 %v2207, %v2501
  %v2503 = vpop.f32.mrb[0].mxu0
  %2504 = vmatprep.mubr.f32.mxu0 0.0
  %2505 = vmatmul.mubr.f32.gmra.mrb[0].mxu0 %v2291
  %v2506 = vpop.f32.mrb[0].mxu0
  %v2507 = vadd.f32 %v2207, %v2506
  %v2508 = vpop.f32.mrb[0].mxu0
  %2509 = vmatprep.mubr.f32.mxu0 0.0
  %2510 = vmatmul.mubr.f32.gmra.mrb[0].mxu0 %v2294
  %v2511 = vpop.f32.mrb[0].mxu0
  %v2512 = vadd.f32 %v2207, %v2511
  %v2513 = vpop.f32.mrb[0].mxu0
  %2514 = vmatprep.mubr.f32.mxu0 0.0
  %2515 = vmatmul.mubr.f32.gmra.mrb[0].mxu0 %v2297
  %v2516 = vpop.f32.mrb[0].mxu0
  %v2517 = vadd.f32 %v2207, %v2516
  %v2518 = vpop.f32.mrb[0].mxu0
  %2519 = vmatprep.mubr.f32.mxu0 0.0
  %2520 = vmatmul.mubr.f32.gmra.mrb[0].mxu0 %v2300
  %v2521 = vpop.f32.mrb[0].mxu0
  %v2522 = vadd.f32 %v2207, %v2521
  %v2523 = vpop.f32.mrb[0].mxu0
  %2524 = vmatprep.mubr.f32.mxu0 0.0
  %2525 = vmatmul.mubr.f32.gmra.mrb[0].mxu0 %v2303
  %v2526 = vpop.f32.mrb[0].mxu0
  %v2527 = vadd.f32 %v2207, %v2526
  %v2528 = vpop.f32.mrb[0].mxu0
  %2529 = vdwg.mxu0
  %2530 = vst [vmem:[#allocation2] sm:$0xff] %v2372
  %2531 = vst [vmem:[#allocation2 + $0x8] sm:$0xff] %v2377
  %2532 = vst [vmem:[#allocation2 + $0x10] sm:$0xff] %v2382
  %2533 = vst [vmem:[#allocation2 + $0x18] sm:$0xff] %v2387
  %2534 = vst [vmem:[#allocation2 + $0x20] sm:$0xff] %v2392
  %2535 = vst [vmem:[#allocation2 + $0x28] sm:$0xff] %v2397
  %2536 = vst [vmem:[#allocation2 + $0x30] sm:$0xff] %v2402
  %2537 = vst [vmem:[#allocation2 + $0x38] sm:$0xff] %v2407
  %2538 = vst [vmem:[#allocation2 + $0x40] sm:$0xff] %v2412
  %2539 = vst [vmem:[#allocation2 + $0x48] sm:$0xff] %v2417
  %2540 = vst [vmem:[#allocation2 + $0x50] sm:$0xff] %v2422
  %2541 = vst [vmem:[#allocation2 + $0x58] sm:$0xff] %v2427
  %2542 = vst [vmem:[#allocation2 + $0x60] sm:$0xff] %v2432
  %2543 = vst [vmem:[#allocation2 + $0x68] sm:$0xff] %v2437
  %2544 = vst [vmem:[#allocation2 + $0x70] sm:$0xff] %v2442
  %2545 = vst [vmem:[#allocation2 + $0x78] sm:$0xff] %v2447
  %2546 = vst [vmem:[#allocation2 + $0x80] sm:$0xff] %v2452
  %2547 = vst [vmem:[#allocation2 + $0x88] sm:$0xff] %v2457
  %2548 = vst [vmem:[#allocation2 + $0x90] sm:$0xff] %v2462
  %2549 = vst [vmem:[#allocation2 + $0x98] sm:$0xff] %v2467
  %2550 = vst [vmem:[#allocation2 + $0xa0] sm:$0xff] %v2472
  %2551 = vst [vmem:[#allocation2 + $0xa8] sm:$0xff] %v2477
  %2552 = vst [vmem:[#allocation2 + $0xb0] sm:$0xff] %v2482
  %2553 = vst [vmem:[#allocation2 + $0xb8] sm:$0xff] %v2487
  %2554 = vst [vmem:[#allocation2 + $0xc0] sm:$0xff] %v2492
  %2555 = vst [vmem:[#allocation2 + $0xc8] sm:$0xff] %v2497
  %2556 = vst [vmem:[#allocation2 + $0xd0] sm:$0xff] %v2502
  %2557 = vst [vmem:[#allocation2 + $0xd8] sm:$0xff] %v2507
  %2558 = vst [vmem:[#allocation2 + $0xe0] sm:$0xff] %v2512
  %2559 = vst [vmem:[#allocation2 + $0xe8] sm:$0xff] %v2517
  %2560 = vst [vmem:[#allocation2 + $0xf0] sm:$0xff] %v2522
  %2561 = vst [vmem:[#allocation2 + $0xf8] sm:$0xff] %v2527
  %v2562 = vld [vmem:[%s5] sm:$0xff]
  %v2563 = vld [vmem:[%s5 + $0x8] sm:$0xff]
  %v2564 = vld [vmem:[%s5 + $0x10] sm:$0xff]
  %v2565 = vld [vmem:[%s5 + $0x18] sm:$0xff]
  %v2566 = vld [vmem:[#allocation2] sm:$0xff]
  %v2567 = vld [vmem:[#allocation2 + $0x8] sm:$0xff]
  %v2568 = vld [vmem:[#allocation2 + $0x10] sm:$0xff]
  %v2569 = vld [vmem:[#allocation2 + $0x18] sm:$0xff]
  %2570 = vmatprep.subr.mxu0 0.0
  %2571 = vmatpush1.msra.mxu0 %v2562
  %2572 = vmatprep.subr.mxu0 0.0
  %2573 = vmatpush1.msra.mxu0 %v2563
  %2574 = vmatprep.subr.mxu0 0.0
  %2575 = vmatpush1.msra.mxu0 %v2564
  %2576 = vmatprep.subr.mxu0 0.0
  %2577 = vmatpush1.msra.mxu0 %v2565
  %2578 = vmatprep.subr.mxu0 0.0
  %2579 = vmatpush1.msra.mxu0 0.0
  %2580 = vmatprep.subr.mxu0 0.0
  %2581 = vmatpush1.msra.mxu0 0.0
  %2582 = vmatprep.subr.mxu0 0.0
  %2583 = vmatpush1.msra.mxu0 0.0
  %2584 = vmatprep.subr.mxu0 0.0
  %2585 = vmatpush1.msra.mxu0 0.0
  %2586 = vmatprep.subr.mxu0 0.0
  %2587 = vmatpush1.msra.mxu0 0.0
  %2588 = vmatprep.subr.mxu0 0.0
  %2589 = vmatpush1.msra.mxu0 0.0
  %2590 = vmatprep.subr.mxu0 0.0
  %2591 = vmatpush1.msra.mxu0 0.0
  %2592 = vmatprep.subr.mxu0 0.0
  %2593 = vmatpush1.msra.mxu0 0.0
  %2594 = vmatprep.subr.mxu0 0.0
  %2595 = vmatpush1.msra.mxu0 0.0
  %2596 = vmatprep.subr.mxu0 0.0
  %2597 = vmatpush1.msra.mxu0 0.0
  %2598 = vmatprep.subr.mxu0 0.0
  %2599 = vmatpush1.msra.mxu0 0.0
  %2600 = vmatprep.subr.mxu0 0.0
  %2601 = vmatpush1.msra.mxu0 0.0
  %2602 = vmatprep.subr.mxu0 0.0
  %2603 = vmatpush1.msra.mxu0 0.0
  %2604 = vmatprep.subr.mxu0 0.0
  %2605 = vmatpush1.msra.mxu0 0.0
  %2606 = vmatprep.subr.mxu0 0.0
  %2607 = vmatpush1.msra.mxu0 0.0
  %2608 = vmatprep.subr.mxu0 0.0
  %2609 = vmatpush1.msra.mxu0 0.0
  %2610 = vmatprep.subr.mxu0 0.0
  %2611 = vmatpush1.msra.mxu0 0.0
  %2612 = vmatprep.subr.mxu0 0.0
  %2613 = vmatpush1.msra.mxu0 0.0
  %2614 = vmatprep.subr.mxu0 0.0
  %2615 = vmatpush1.msra.mxu0 0.0
  %2616 = vmatprep.subr.mxu0 0.0
  %2617 = vmatpush1.msra.mxu0 0.0
  %2618 = vmatprep.subr.mxu0 0.0
  %2619 = vmatpush1.msra.mxu0 0.0
  %2620 = vmatprep.subr.mxu0 0.0
  %2621 = vmatpush1.msra.mxu0 0.0
  %2622 = vmatprep.subr.mxu0 0.0
  %2623 = vmatpush1.msra.mxu0 0.0
  %2624 = vmatprep.subr.mxu0 0.0
  %2625 = vmatpush1.msra.mxu0 0.0
  %2626 = vmatprep.subr.mxu0 0.0
  %2627 = vmatpush1.msra.mxu0 0.0
  %2628 = vmatprep.subr.mxu0 0.0
  %2629 = vmatpush1.msra.mxu0 0.0
  %2630 = vmatprep.subr.mxu0 0.0
  %2631 = vmatpush1.msra.mxu0 0.0
  %2632 = vmatprep.subr.mxu0 0.0
  %2633 = vmatpush1.msra.mxu0 0.0
  %2634 = vmatprep.mubr.f32.mxu0 0.0
  %2635 = vmatmul.mubr.f32.gmra.mrb[0].mxu0 %v440
  %v2636 = vpop.f32.mrb[0].mxu0
  %v2637 = vadd.f32 0.0, %v2636
  %v2638 = vpop.f32.mrb[0].mxu0
  %2639 = vmatprep.mubr.f32.mxu0 0.0
  %2640 = vmatmul.mubr.f32.gmra.mrb[0].mxu0 %v440
  %v2641 = vpop.f32.mrb[0].mxu0
  %v2642 = vadd.f32 0.0, %v2641
  %v2643 = vpop.f32.mrb[0].mxu0
  %2644 = vmatprep.mubr.f32.mxu0 0.0
  %2645 = vmatmul.mubr.f32.gmra.mrb[0].mxu0 %v440
  %v2646 = vpop.f32.mrb[0].mxu0
  %v2647 = vadd.f32 0.0, %v2646
  %v2648 = vpop.f32.mrb[0].mxu0
  %2649 = vmatprep.mubr.f32.mxu0 0.0
  %2650 = vmatmul.mubr.f32.gmra.mrb[0].mxu0 %v440
  %v2651 = vpop.f32.mrb[0].mxu0
  %v2652 = vadd.f32 0.0, %v2651
  %v2653 = vpop.f32.mrb[0].mxu0
  %2654 = vdwg.mxu0
  %v2655 = vadd.f32 %v2566, %v2637
  %v2656 = vadd.f32 %v2567, %v2642
  %v2657 = vadd.f32 %v2568, %v2647
  %v2658 = vadd.f32 %v2569, %v2652
  %v2659 = vxor.u32 %v2655, 2147483648
  %v2660 = vxor.u32 %v2656, 2147483648
  %v2661 = vxor.u32 %v2657, 2147483648
  %v2662 = vxor.u32 %v2658, 2147483648
  %v2663 = vmul.f32 %v2659, 1.442695
  %v2664 = vpow.pop %v2663
  %v2665 = vmul.f32 %v2660, 1.442695
  %v2666 = vpow.pop %v2665
  %v2667 = vmul.f32 %v2661, 1.442695
  %v2668 = vpow.pop %v2667
  %v2669 = vmul.f32 %v2662, 1.442695
  %v2670 = vpow.pop %v2669
  %v2671 = vadd.f32 %v2664, 1.0
  %v2672 = vadd.f32 %v2666, 1.0
  %v2673 = vadd.f32 %v2668, 1.0
  %v2674 = vadd.f32 %v2670, 1.0
  %v2675 = vrcp.pop %v2671
  %v2676 = vmul.f32 1.0, %v2675
  %v2677 = vrcp.pop %v2672
  %v2678 = vmul.f32 1.0, %v2677
  %v2679 = vrcp.pop %v2673
  %v2680 = vmul.f32 1.0, %v2679
  %v2681 = vrcp.pop %v2674
  %v2682 = vmul.f32 1.0, %v2681
  %v2683 = vtanh.pop %v2655
  %v2684 = vtanh.pop %v2656
  %v2685 = vtanh.pop %v2657
  %v2686 = vtanh.pop %v2658
  %v2687 = vmul.f32 %v2676, 0.0
  %v2688 = vmul.f32 %v2678, 0.0
  %v2689 = vmul.f32 %v2680, 0.0
  %v2690 = vmul.f32 %v2682, 0.0
  %2695 = vrot.lane.b32.xlu0 %v2683, 64
  %v2696 = vpop.permute.xlu0 %2695
  %2697 = vrot.lane.b32.xlu0 %v2684, 64
  %v2698 = vpop.permute.xlu0 %2697
  %2699 = vrot.lane.b32.xlu0 %v2685, 64
  %v2700 = vpop.permute.xlu0 %2699
  %2701 = vrot.lane.b32.xlu0 %v2686, 64
  %v2702 = vpop.permute.xlu0 %2701
  %v2707 = vmul.f32 %v2676, %v2696
  %v2708 = vmul.f32 %v2678, %v2698
  %v2709 = vmul.f32 %v2680, %v2700
  %v2710 = vmul.f32 %v2682, %v2702
  %2715 = vrot.lane.b32.xlu0 %v2707, 32
  %v2716 = vpop.permute.xlu0 %2715
  %2717 = vrot.lane.b32.xlu0 %v2708, 32
  %v2718 = vpop.permute.xlu0 %2717
  %2719 = vrot.lane.b32.xlu0 %v2709, 32
  %v2720 = vpop.permute.xlu0 %2719
  %2721 = vrot.lane.b32.xlu0 %v2710, 32
  %v2722 = vpop.permute.xlu0 %2721
  %v2727 = vadd.f32 %v2687, %v2716
  %v2728 = vadd.f32 %v2688, %v2718
  %v2729 = vadd.f32 %v2689, %v2720
  %v2730 = vadd.f32 %v2690, %v2722
  %v2731 = vtanh.pop %v2727
  %v2732 = vtanh.pop %v2728
  %v2733 = vtanh.pop %v2729
  %v2734 = vtanh.pop %v2730
  %2739 = vrot.lane.b32.xlu0 %v2731, 64
  %v2740 = vpop.permute.xlu0 %2739
  %2741 = vrot.lane.b32.xlu0 %v2732, 64
  %v2742 = vpop.permute.xlu0 %2741
  %2743 = vrot.lane.b32.xlu0 %v2733, 64
  %v2744 = vpop.permute.xlu0 %2743
  %2745 = vrot.lane.b32.xlu0 %v2734, 64
  %v2746 = vpop.permute.xlu0 %2745
  %v2751 = vmul.f32 %v2676, %v2740
  %v2752 = vmul.f32 %v2678, %v2742
  %v2753 = vmul.f32 %v2680, %v2744
  %v2754 = vmul.f32 %v2682, %v2746
  %v2755 = vld [vmem:[#allocation2 + $0x20] sm:$0xff]
  %v2756 = vld [vmem:[#allocation2 + $0x28] sm:$0xff]
  %v2757 = vld [vmem:[#allocation2 + $0x30] sm:$0xff]
  %v2758 = vld [vmem:[#allocation2 + $0x38] sm:$0xff]
  %2763 = vrot.lane.b32.xlu0 %v2751, 32
  %v2764 = vpop.permute.xlu0 %2763
  %2765 = vrot.lane.b32.xlu0 %v2752, 32
  %v2766 = vpop.permute.xlu0 %2765
  %2767 = vrot.lane.b32.xlu0 %v2753, 32
  %v2768 = vpop.permute.xlu0 %2767
  %2769 = vrot.lane.b32.xlu0 %v2754, 32
  %v2770 = vpop.permute.xlu0 %2769
  %v2771 = vsel %vm438, %v2764, 0
  %v2773 = vsel %vm438, %v2766, 0
  %v2775 = vsel %vm438, %v2768, 0
  %v2777 = vsel %vm438, %v2770, 0
  %2779 = vmatprep.subr.mxu0 0.0
  %2780 = vmatpush1.msra.mxu0 %v2562
  %2781 = vmatprep.subr.mxu0 0.0
  %2782 = vmatpush1.msra.mxu0 %v2563
  %2783 = vmatprep.subr.mxu0 0.0
  %2784 = vmatpush1.msra.mxu0 %v2564
  %2785 = vmatprep.subr.mxu0 0.0
  %2786 = vmatpush1.msra.mxu0 %v2565
  %2787 = vmatprep.subr.mxu0 0.0
  %2788 = vmatpush1.msra.mxu0 0.0
  %2789 = vmatprep.subr.mxu0 0.0
  %2790 = vmatpush1.msra.mxu0 0.0
  %2791 = vmatprep.subr.mxu0 0.0
  %2792 = vmatpush1.msra.mxu0 0.0
  %2793 = vmatprep.subr.mxu0 0.0
  %2794 = vmatpush1.msra.mxu0 0.0
  %2795 = vmatprep.subr.mxu0 0.0
  %2796 = vmatpush1.msra.mxu0 0.0
  %2797 = vmatprep.subr.mxu0 0.0
  %2798 = vmatpush1.msra.mxu0 0.0
  %2799 = vmatprep.subr.mxu0 0.0
  %2800 = vmatpush1.msra.mxu0 0.0
  %2801 = vmatprep.subr.mxu0 0.0
  %2802 = vmatpush1.msra.mxu0 0.0
  %2803 = vmatprep.subr.mxu0 0.0
  %2804 = vmatpush1.msra.mxu0 0.0
  %2805 = vmatprep.subr.mxu0 0.0
  %2806 = vmatpush1.msra.mxu0 0.0
  %2807 = vmatprep.subr.mxu0 0.0
  %2808 = vmatpush1.msra.mxu0 0.0
  %2809 = vmatprep.subr.mxu0 0.0
  %2810 = vmatpush1.msra.mxu0 0.0
  %2811 = vmatprep.subr.mxu0 0.0
  %2812 = vmatpush1.msra.mxu0 0.0
  %2813 = vmatprep.subr.mxu0 0.0
  %2814 = vmatpush1.msra.mxu0 0.0
  %2815 = vmatprep.subr.mxu0 0.0
  %2816 = vmatpush1.msra.mxu0 0.0
  %2817 = vmatprep.subr.mxu0 0.0
  %2818 = vmatpush1.msra.mxu0 0.0
  %2819 = vmatprep.subr.mxu0 0.0
  %2820 = vmatpush1.msra.mxu0 0.0
  %2821 = vmatprep.subr.mxu0 0.0
  %2822 = vmatpush1.msra.mxu0 0.0
  %2823 = vmatprep.subr.mxu0 0.0
  %2824 = vmatpush1.msra.mxu0 0.0
  %2825 = vmatprep.subr.mxu0 0.0
  %2826 = vmatpush1.msra.mxu0 0.0
  %2827 = vmatprep.subr.mxu0 0.0
  %2828 = vmatpush1.msra.mxu0 0.0
  %2829 = vmatprep.subr.mxu0 0.0
  %2830 = vmatpush1.msra.mxu0 0.0
  %2831 = vmatprep.subr.mxu0 0.0
  %2832 = vmatpush1.msra.mxu0 0.0
  %2833 = vmatprep.subr.mxu0 0.0
  %2834 = vmatpush1.msra.mxu0 0.0
  %2835 = vmatprep.subr.mxu0 0.0
  %2836 = vmatpush1.msra.mxu0 0.0
  %2837 = vmatprep.subr.mxu0 0.0
  %2838 = vmatpush1.msra.mxu0 0.0
  %2839 = vmatprep.subr.mxu0 0.0
  %2840 = vmatpush1.msra.mxu0 0.0
  %2841 = vmatprep.subr.mxu0 0.0
  %2842 = vmatpush1.msra.mxu0 0.0
  %2843 = vmatprep.mubr.f32.mxu0 0.0
  %2844 = vmatmul.mubr.f32.gmra.mrb[0].mxu0 %v2771
  %v2845 = vpop.f32.mrb[0].mxu0
  %v2846 = vadd.f32 0.0, %v2845
  %v2847 = vpop.f32.mrb[0].mxu0
  %2848 = vmatprep.mubr.f32.mxu0 0.0
  %2849 = vmatmul.mubr.f32.gmra.mrb[0].mxu0 %v2773
  %v2850 = vpop.f32.mrb[0].mxu0
  %v2851 = vadd.f32 0.0, %v2850
  %v2852 = vpop.f32.mrb[0].mxu0
  %2853 = vmatprep.mubr.f32.mxu0 0.0
  %2854 = vmatmul.mubr.f32.gmra.mrb[0].mxu0 %v2775
  %v2855 = vpop.f32.mrb[0].mxu0
  %v2856 = vadd.f32 0.0, %v2855
  %v2857 = vpop.f32.mrb[0].mxu0
  %2858 = vmatprep.mubr.f32.mxu0 0.0
  %2859 = vmatmul.mubr.f32.gmra.mrb[0].mxu0 %v2777
  %v2860 = vpop.f32.mrb[0].mxu0
  %v2861 = vadd.f32 0.0, %v2860
  %v2862 = vpop.f32.mrb[0].mxu0
  %2863 = vdwg.mxu0
  %v2864 = vadd.f32 %v2755, %v2846
  %v2865 = vadd.f32 %v2756, %v2851
  %v2866 = vadd.f32 %v2757, %v2856
  %v2867 = vadd.f32 %v2758, %v2861
  %v2868 = vxor.u32 %v2864, 2147483648
  %v2869 = vxor.u32 %v2865, 2147483648
  %v2870 = vxor.u32 %v2866, 2147483648
  %v2871 = vxor.u32 %v2867, 2147483648
  %v2872 = vmul.f32 %v2868, 1.442695
  %v2873 = vpow.pop %v2872
  %v2874 = vmul.f32 %v2869, 1.442695
  %v2875 = vpow.pop %v2874
  %v2876 = vmul.f32 %v2870, 1.442695
  %v2877 = vpow.pop %v2876
  %v2878 = vmul.f32 %v2871, 1.442695
  %v2879 = vpow.pop %v2878
  %v2880 = vadd.f32 %v2873, 1.0
  %v2881 = vadd.f32 %v2875, 1.0
  %v2882 = vadd.f32 %v2877, 1.0
  %v2883 = vadd.f32 %v2879, 1.0
  %v2884 = vrcp.pop %v2880
  %v2885 = vmul.f32 1.0, %v2884
  %v2886 = vrcp.pop %v2881
  %v2887 = vmul.f32 1.0, %v2886
  %v2888 = vrcp.pop %v2882
  %v2889 = vmul.f32 1.0, %v2888
  %v2890 = vrcp.pop %v2883
  %v2891 = vmul.f32 1.0, %v2890
  %v2892 = vtanh.pop %v2864
  %v2893 = vtanh.pop %v2865
  %v2894 = vtanh.pop %v2866
  %v2895 = vtanh.pop %v2867
  %v2896 = vmul.f32 %v2885, %v2727
  %v2897 = vmul.f32 %v2887, %v2728
  %v2898 = vmul.f32 %v2889, %v2729
  %v2899 = vmul.f32 %v2891, %v2730
  %2904 = vrot.lane.b32.xlu0 %v2892, 64
  %v2905 = vpop.permute.xlu0 %2904
  %2906 = vrot.lane.b32.xlu0 %v2893, 64
  %v2907 = vpop.permute.xlu0 %2906
  %2908 = vrot.lane.b32.xlu0 %v2894, 64
  %v2909 = vpop.permute.xlu0 %2908
  %2910 = vrot.lane.b32.xlu0 %v2895, 64
  %v2911 = vpop.permute.xlu0 %2910
  %v2916 = vmul.f32 %v2885, %v2905
  %v2917 = vmul.f32 %v2887, %v2907
  %v2918 = vmul.f32 %v2889, %v2909
  %v2919 = vmul.f32 %v2891, %v2911
  %2924 = vrot.lane.b32.xlu0 %v2916, 32
  %v2925 = vpop.permute.xlu0 %2924
  %2926 = vrot.lane.b32.xlu0 %v2917, 32
  %v2927 = vpop.permute.xlu0 %2926
  %2928 = vrot.lane.b32.xlu0 %v2918, 32
  %v2929 = vpop.permute.xlu0 %2928
  %2930 = vrot.lane.b32.xlu0 %v2919, 32
  %v2931 = vpop.permute.xlu0 %2930
  %v2936 = vadd.f32 %v2896, %v2925
  %v2937 = vadd.f32 %v2897, %v2927
  %v2938 = vadd.f32 %v2898, %v2929
  %v2939 = vadd.f32 %v2899, %v2931
  %v2940 = vtanh.pop %v2936
  %v2941 = vtanh.pop %v2937
  %v2942 = vtanh.pop %v2938
  %v2943 = vtanh.pop %v2939
  %2948 = vrot.lane.b32.xlu0 %v2940, 64
  %v2949 = vpop.permute.xlu0 %2948
  %2950 = vrot.lane.b32.xlu0 %v2941, 64
  %v2951 = vpop.permute.xlu0 %2950
  %2952 = vrot.lane.b32.xlu0 %v2942, 64
  %v2953 = vpop.permute.xlu0 %2952
  %2954 = vrot.lane.b32.xlu0 %v2943, 64
  %v2955 = vpop.permute.xlu0 %2954
  %v2960 = vmul.f32 %v2885, %v2949
  %v2961 = vmul.f32 %v2887, %v2951
  %v2962 = vmul.f32 %v2889, %v2953
  %v2963 = vmul.f32 %v2891, %v2955
  %v2964 = vld [vmem:[#allocation2 + $0x40] sm:$0xff]
  %v2965 = vld [vmem:[#allocation2 + $0x48] sm:$0xff]
  %v2966 = vld [vmem:[#allocation2 + $0x50] sm:$0xff]
  %v2967 = vld [vmem:[#allocation2 + $0x58] sm:$0xff]
  %2972 = vrot.lane.b32.xlu0 %v2960, 32
  %v2973 = vpop.permute.xlu0 %2972
  %2974 = vrot.lane.b32.xlu0 %v2961, 32
  %v2975 = vpop.permute.xlu0 %2974
  %2976 = vrot.lane.b32.xlu0 %v2962, 32
  %v2977 = vpop.permute.xlu0 %2976
  %2978 = vrot.lane.b32.xlu0 %v2963, 32
  %v2979 = vpop.permute.xlu0 %2978
  %v2980 = vsel %vm438, %v2973, 0
  %v2982 = vsel %vm438, %v2975, 0
  %v2984 = vsel %vm438, %v2977, 0
  %v2986 = vsel %vm438, %v2979, 0
  %2988 = vmatprep.subr.mxu0 0.0
  %2989 = vmatpush1.msra.mxu0 %v2562
  %2990 = vmatprep.subr.mxu0 0.0
  %2991 = vmatpush1.msra.mxu0 %v2563
  %2992 = vmatprep.subr.mxu0 0.0
  %2993 = vmatpush1.msra.mxu0 %v2564
  %2994 = vmatprep.subr.mxu0 0.0
  %2995 = vmatpush1.msra.mxu0 %v2565
  %2996 = vmatprep.subr.mxu0 0.0
  %2997 = vmatpush1.msra.mxu0 0.0
  %2998 = vmatprep.subr.mxu0 0.0
  %2999 = vmatpush1.msra.mxu0 0.0
  %3000 = vmatprep.subr.mxu0 0.0
  %3001 = vmatpush1.msra.mxu0 0.0
  %3002 = vmatprep.subr.mxu0 0.0
  %3003 = vmatpush1.msra.mxu0 0.0
  %3004 = vmatprep.subr.mxu0 0.0
  %3005 = vmatpush1.msra.mxu0 0.0
  %3006 = vmatprep.subr.mxu0 0.0
  %3007 = vmatpush1.msra.mxu0 0.0
  %3008 = vmatprep.subr.mxu0 0.0
  %3009 = vmatpush1.msra.mxu0 0.0
  %3010 = vmatprep.subr.mxu0 0.0
  %3011 = vmatpush1.msra.mxu0 0.0
  %3012 = vmatprep.subr.mxu0 0.0
  %3013 = vmatpush1.msra.mxu0 0.0
  %3014 = vmatprep.subr.mxu0 0.0
  %3015 = vmatpush1.msra.mxu0 0.0
  %3016 = vmatprep.subr.mxu0 0.0
  %3017 = vmatpush1.msra.mxu0 0.0
  %3018 = vmatprep.subr.mxu0 0.0
  %3019 = vmatpush1.msra.mxu0 0.0
  %3020 = vmatprep.subr.mxu0 0.0
  %3021 = vmatpush1.msra.mxu0 0.0
  %3022 = vmatprep.subr.mxu0 0.0
  %3023 = vmatpush1.msra.mxu0 0.0
  %3024 = vmatprep.subr.mxu0 0.0
  %3025 = vmatpush1.msra.mxu0 0.0
  %3026 = vmatprep.subr.mxu0 0.0
  %3027 = vmatpush1.msra.mxu0 0.0
  %3028 = vmatprep.subr.mxu0 0.0
  %3029 = vmatpush1.msra.mxu0 0.0
  %3030 = vmatprep.subr.mxu0 0.0
  %3031 = vmatpush1.msra.mxu0 0.0
  %3032 = vmatprep.subr.mxu0 0.0
  %3033 = vmatpush1.msra.mxu0 0.0
  %3034 = vmatprep.subr.mxu0 0.0
  %3035 = vmatpush1.msra.mxu0 0.0
  %3036 = vmatprep.subr.mxu0 0.0
  %3037 = vmatpush1.msra.mxu0 0.0
  %3038 = vmatprep.subr.mxu0 0.0
  %3039 = vmatpush1.msra.mxu0 0.0
  %3040 = vmatprep.subr.mxu0 0.0
  %3041 = vmatpush1.msra.mxu0 0.0
  %3042 = vmatprep.subr.mxu0 0.0
  %3043 = vmatpush1.msra.mxu0 0.0
  %3044 = vmatprep.subr.mxu0 0.0
  %3045 = vmatpush1.msra.mxu0 0.0
  %3046 = vmatprep.subr.mxu0 0.0
  %3047 = vmatpush1.msra.mxu0 0.0
  %3048 = vmatprep.subr.mxu0 0.0
  %3049 = vmatpush1.msra.mxu0 0.0
  %3050 = vmatprep.subr.mxu0 0.0
  %3051 = vmatpush1.msra.mxu0 0.0
  %3052 = vmatprep.mubr.f32.mxu0 0.0
  %3053 = vmatmul.mubr.f32.gmra.mrb[0].mxu0 %v2980
  %v3054 = vpop.f32.mrb[0].mxu0
  %v3055 = vadd.f32 0.0, %v3054
  %v3056 = vpop.f32.mrb[0].mxu0
  %3057 = vmatprep.mubr.f32.mxu0 0.0
  %3058 = vmatmul.mubr.f32.gmra.mrb[0].mxu0 %v2982
  %v3059 = vpop.f32.mrb[0].mxu0
  %v3060 = vadd.f32 0.0, %v3059
  %v3061 = vpop.f32.mrb[0].mxu0
  %3062 = vmatprep.mubr.f32.mxu0 0.0
  %3063 = vmatmul.mubr.f32.gmra.mrb[0].mxu0 %v2984
  %v3064 = vpop.f32.mrb[0].mxu0
  %v3065 = vadd.f32 0.0, %v3064
  %v3066 = vpop.f32.mrb[0].mxu0
  %3067 = vmatprep.mubr.f32.mxu0 0.0
  %3068 = vmatmul.mubr.f32.gmra.mrb[0].mxu0 %v2986
  %v3069 = vpop.f32.mrb[0].mxu0
  %v3070 = vadd.f32 0.0, %v3069
  %v3071 = vpop.f32.mrb[0].mxu0
  %3072 = vdwg.mxu0
  %v3073 = vadd.f32 %v2964, %v3055
  %v3074 = vadd.f32 %v2965, %v3060
  %v3075 = vadd.f32 %v2966, %v3065
  %v3076 = vadd.f32 %v2967, %v3070
  %v3077 = vxor.u32 %v3073, 2147483648
  %v3078 = vxor.u32 %v3074, 2147483648
  %v3079 = vxor.u32 %v3075, 2147483648
  %v3080 = vxor.u32 %v3076, 2147483648
  %v3081 = vmul.f32 %v3077, 1.442695
  %v3082 = vpow.pop %v3081
  %v3083 = vmul.f32 %v3078, 1.442695
  %v3084 = vpow.pop %v3083
  %v3085 = vmul.f32 %v3079, 1.442695
  %v3086 = vpow.pop %v3085
  %v3087 = vmul.f32 %v3080, 1.442695
  %v3088 = vpow.pop %v3087
  %v3089 = vadd.f32 %v3082, 1.0
  %v3090 = vadd.f32 %v3084, 1.0
  %v3091 = vadd.f32 %v3086, 1.0
  %v3092 = vadd.f32 %v3088, 1.0
  %v3093 = vrcp.pop %v3089
  %v3094 = vmul.f32 1.0, %v3093
  %v3095 = vrcp.pop %v3090
  %v3096 = vmul.f32 1.0, %v3095
  %v3097 = vrcp.pop %v3091
  %v3098 = vmul.f32 1.0, %v3097
  %v3099 = vrcp.pop %v3092
  %v3100 = vmul.f32 1.0, %v3099
  %v3101 = vtanh.pop %v3073
  %v3102 = vtanh.pop %v3074
  %v3103 = vtanh.pop %v3075
  %v3104 = vtanh.pop %v3076
  %v3105 = vmul.f32 %v3094, %v2936
  %v3106 = vmul.f32 %v3096, %v2937
  %v3107 = vmul.f32 %v3098, %v2938
  %v3108 = vmul.f32 %v3100, %v2939
  %3113 = vrot.lane.b32.xlu0 %v3101, 64
  %v3114 = vpop.permute.xlu0 %3113
  %3115 = vrot.lane.b32.xlu0 %v3102, 64
  %v3116 = vpop.permute.xlu0 %3115
  %3117 = vrot.lane.b32.xlu0 %v3103, 64
  %v3118 = vpop.permute.xlu0 %3117
  %3119 = vrot.lane.b32.xlu0 %v3104, 64
  %v3120 = vpop.permute.xlu0 %3119
  %v3125 = vmul.f32 %v3094, %v3114
  %v3126 = vmul.f32 %v3096, %v3116
  %v3127 = vmul.f32 %v3098, %v3118
  %v3128 = vmul.f32 %v3100, %v3120
  %3133 = vrot.lane.b32.xlu0 %v3125, 32
  %v3134 = vpop.permute.xlu0 %3133
  %3135 = vrot.lane.b32.xlu0 %v3126, 32
  %v3136 = vpop.permute.xlu0 %3135
  %3137 = vrot.lane.b32.xlu0 %v3127, 32
  %v3138 = vpop.permute.xlu0 %3137
  %3139 = vrot.lane.b32.xlu0 %v3128, 32
  %v3140 = vpop.permute.xlu0 %3139
  %v3145 = vadd.f32 %v3105, %v3134
  %v3146 = vadd.f32 %v3106, %v3136
  %v3147 = vadd.f32 %v3107, %v3138
  %v3148 = vadd.f32 %v3108, %v3140
  %v3149 = vtanh.pop %v3145
  %v3150 = vtanh.pop %v3146
  %v3151 = vtanh.pop %v3147
  %v3152 = vtanh.pop %v3148
  %3157 = vrot.lane.b32.xlu0 %v3149, 64
  %v3158 = vpop.permute.xlu0 %3157
  %3159 = vrot.lane.b32.xlu0 %v3150, 64
  %v3160 = vpop.permute.xlu0 %3159
  %3161 = vrot.lane.b32.xlu0 %v3151, 64
  %v3162 = vpop.permute.xlu0 %3161
  %3163 = vrot.lane.b32.xlu0 %v3152, 64
  %v3164 = vpop.permute.xlu0 %3163
  %v3169 = vmul.f32 %v3094, %v3158
  %v3170 = vmul.f32 %v3096, %v3160
  %v3171 = vmul.f32 %v3098, %v3162
  %v3172 = vmul.f32 %v3100, %v3164
  %v3173 = vld [vmem:[#allocation2 + $0x60] sm:$0xff]
  %v3174 = vld [vmem:[#allocation2 + $0x68] sm:$0xff]
  %v3175 = vld [vmem:[#allocation2 + $0x70] sm:$0xff]
  %v3176 = vld [vmem:[#allocation2 + $0x78] sm:$0xff]
  %3181 = vrot.lane.b32.xlu0 %v3169, 32
  %v3182 = vpop.permute.xlu0 %3181
  %3183 = vrot.lane.b32.xlu0 %v3170, 32
  %v3184 = vpop.permute.xlu0 %3183
  %3185 = vrot.lane.b32.xlu0 %v3171, 32
  %v3186 = vpop.permute.xlu0 %3185
  %3187 = vrot.lane.b32.xlu0 %v3172, 32
  %v3188 = vpop.permute.xlu0 %3187
  %v3189 = vsel %vm438, %v3182, 0
  %v3191 = vsel %vm438, %v3184, 0
  %v3193 = vsel %vm438, %v3186, 0
  %v3195 = vsel %vm438, %v3188, 0
  %3197 = vmatprep.subr.mxu0 0.0
  %3198 = vmatpush1.msra.mxu0 %v2562
  %3199 = vmatprep.subr.mxu0 0.0
  %3200 = vmatpush1.msra.mxu0 %v2563
  %3201 = vmatprep.subr.mxu0 0.0
  %3202 = vmatpush1.msra.mxu0 %v2564
  %3203 = vmatprep.subr.mxu0 0.0
  %3204 = vmatpush1.msra.mxu0 %v2565
  %3205 = vmatprep.subr.mxu0 0.0
  %3206 = vmatpush1.msra.mxu0 0.0
  %3207 = vmatprep.subr.mxu0 0.0
  %3208 = vmatpush1.msra.mxu0 0.0
  %3209 = vmatprep.subr.mxu0 0.0
  %3210 = vmatpush1.msra.mxu0 0.0
  %3211 = vmatprep.subr.mxu0 0.0
  %3212 = vmatpush1.msra.mxu0 0.0
  %3213 = vmatprep.subr.mxu0 0.0
  %3214 = vmatpush1.msra.mxu0 0.0
  %3215 = vmatprep.subr.mxu0 0.0
  %3216 = vmatpush1.msra.mxu0 0.0
  %3217 = vmatprep.subr.mxu0 0.0
  %3218 = vmatpush1.msra.mxu0 0.0
  %3219 = vmatprep.subr.mxu0 0.0
  %3220 = vmatpush1.msra.mxu0 0.0
  %3221 = vmatprep.subr.mxu0 0.0
  %3222 = vmatpush1.msra.mxu0 0.0
  %3223 = vmatprep.subr.mxu0 0.0
  %3224 = vmatpush1.msra.mxu0 0.0
  %3225 = vmatprep.subr.mxu0 0.0
  %3226 = vmatpush1.msra.mxu0 0.0
  %3227 = vmatprep.subr.mxu0 0.0
  %3228 = vmatpush1.msra.mxu0 0.0
  %3229 = vmatprep.subr.mxu0 0.0
  %3230 = vmatpush1.msra.mxu0 0.0
  %3231 = vmatprep.subr.mxu0 0.0
  %3232 = vmatpush1.msra.mxu0 0.0
  %3233 = vmatprep.subr.mxu0 0.0
  %3234 = vmatpush1.msra.mxu0 0.0
  %3235 = vmatprep.subr.mxu0 0.0
  %3236 = vmatpush1.msra.mxu0 0.0
  %3237 = vmatprep.subr.mxu0 0.0
  %3238 = vmatpush1.msra.mxu0 0.0
  %3239 = vmatprep.subr.mxu0 0.0
  %3240 = vmatpush1.msra.mxu0 0.0
  %3241 = vmatprep.subr.mxu0 0.0
  %3242 = vmatpush1.msra.mxu0 0.0
  %3243 = vmatprep.subr.mxu0 0.0
  %3244 = vmatpush1.msra.mxu0 0.0
  %3245 = vmatprep.subr.mxu0 0.0
  %3246 = vmatpush1.msra.mxu0 0.0
  %3247 = vmatprep.subr.mxu0 0.0
  %3248 = vmatpush1.msra.mxu0 0.0
  %3249 = vmatprep.subr.mxu0 0.0
  %3250 = vmatpush1.msra.mxu0 0.0
  %3251 = vmatprep.subr.mxu0 0.0
  %3252 = vmatpush1.msra.mxu0 0.0
  %3253 = vmatprep.subr.mxu0 0.0
  %3254 = vmatpush1.msra.mxu0 0.0
  %3255 = vmatprep.subr.mxu0 0.0
  %3256 = vmatpush1.msra.mxu0 0.0
  %3257 = vmatprep.subr.mxu0 0.0
  %3258 = vmatpush1.msra.mxu0 0.0
  %3259 = vmatprep.subr.mxu0 0.0
  %3260 = vmatpush1.msra.mxu0 0.0
  %3261 = vmatprep.mubr.f32.mxu0 0.0
  %3262 = vmatmul.mubr.f32.gmra.mrb[0].mxu0 %v3189
  %v3263 = vpop.f32.mrb[0].mxu0
  %v3264 = vadd.f32 0.0, %v3263
  %v3265 = vpop.f32.mrb[0].mxu0
  %3266 = vmatprep.mubr.f32.mxu0 0.0
  %3267 = vmatmul.mubr.f32.gmra.mrb[0].mxu0 %v3191
  %v3268 = vpop.f32.mrb[0].mxu0
  %v3269 = vadd.f32 0.0, %v3268
  %v3270 = vpop.f32.mrb[0].mxu0
  %3271 = vmatprep.mubr.f32.mxu0 0.0
  %3272 = vmatmul.mubr.f32.gmra.mrb[0].mxu0 %v3193
  %v3273 = vpop.f32.mrb[0].mxu0
  %v3274 = vadd.f32 0.0, %v3273
  %v3275 = vpop.f32.mrb[0].mxu0
  %3276 = vmatprep.mubr.f32.mxu0 0.0
  %3277 = vmatmul.mubr.f32.gmra.mrb[0].mxu0 %v3195
  %v3278 = vpop.f32.mrb[0].mxu0
  %v3279 = vadd.f32 0.0, %v3278
  %v3280 = vpop.f32.mrb[0].mxu0
  %3281 = vdwg.mxu0
  %v3282 = vadd.f32 %v3173, %v3264
  %v3283 = vadd.f32 %v3174, %v3269
  %v3284 = vadd.f32 %v3175, %v3274
  %v3285 = vadd.f32 %v3176, %v3279
  %v3286 = vxor.u32 %v3282, 2147483648
  %v3287 = vxor.u32 %v3283, 2147483648
  %v3288 = vxor.u32 %v3284, 2147483648
  %v3289 = vxor.u32 %v3285, 2147483648
  %v3290 = vmul.f32 %v3286, 1.442695
  %v3291 = vpow.pop %v3290
  %v3292 = vmul.f32 %v3287, 1.442695
  %v3293 = vpow.pop %v3292
  %v3294 = vmul.f32 %v3288, 1.442695
  %v3295 = vpow.pop %v3294
  %v3296 = vmul.f32 %v3289, 1.442695
  %v3297 = vpow.pop %v3296
  %v3298 = vadd.f32 %v3291, 1.0
  %v3299 = vadd.f32 %v3293, 1.0
  %v3300 = vadd.f32 %v3295, 1.0
  %v3301 = vadd.f32 %v3297, 1.0
  %v3302 = vrcp.pop %v3298
  %v3303 = vmul.f32 1.0, %v3302
  %v3304 = vrcp.pop %v3299
  %v3305 = vmul.f32 1.0, %v3304
  %v3306 = vrcp.pop %v3300
  %v3307 = vmul.f32 1.0, %v3306
  %v3308 = vrcp.pop %v3301
  %v3309 = vmul.f32 1.0, %v3308
  %v3310 = vtanh.pop %v3282
  %v3311 = vtanh.pop %v3283
  %v3312 = vtanh.pop %v3284
  %v3313 = vtanh.pop %v3285
  %v3314 = vmul.f32 %v3303, %v3145
  %v3315 = vmul.f32 %v3305, %v3146
  %v3316 = vmul.f32 %v3307, %v3147
  %v3317 = vmul.f32 %v3309, %v3148
  %3322 = vrot.lane.b32.xlu0 %v3310, 64
  %v3323 = vpop.permute.xlu0 %3322
  %3324 = vrot.lane.b32.xlu0 %v3311, 64
  %v3325 = vpop.permute.xlu0 %3324
  %3326 = vrot.lane.b32.xlu0 %v3312, 64
  %v3327 = vpop.permute.xlu0 %3326
  %3328 = vrot.lane.b32.xlu0 %v3313, 64
  %v3329 = vpop.permute.xlu0 %3328
  %v3334 = vmul.f32 %v3303, %v3323
  %v3335 = vmul.f32 %v3305, %v3325
  %v3336 = vmul.f32 %v3307, %v3327
  %v3337 = vmul.f32 %v3309, %v3329
  %3342 = vrot.lane.b32.xlu0 %v3334, 32
  %v3343 = vpop.permute.xlu0 %3342
  %3344 = vrot.lane.b32.xlu0 %v3335, 32
  %v3345 = vpop.permute.xlu0 %3344
  %3346 = vrot.lane.b32.xlu0 %v3336, 32
  %v3347 = vpop.permute.xlu0 %3346
  %3348 = vrot.lane.b32.xlu0 %v3337, 32
  %v3349 = vpop.permute.xlu0 %3348
  %v3354 = vadd.f32 %v3314, %v3343
  %v3355 = vadd.f32 %v3315, %v3345
  %v3356 = vadd.f32 %v3316, %v3347
  %v3357 = vadd.f32 %v3317, %v3349
  %v3358 = vtanh.pop %v3354
  %v3359 = vtanh.pop %v3355
  %v3360 = vtanh.pop %v3356
  %v3361 = vtanh.pop %v3357
  %3366 = vrot.lane.b32.xlu0 %v3358, 64
  %v3367 = vpop.permute.xlu0 %3366
  %3368 = vrot.lane.b32.xlu0 %v3359, 64
  %v3369 = vpop.permute.xlu0 %3368
  %3370 = vrot.lane.b32.xlu0 %v3360, 64
  %v3371 = vpop.permute.xlu0 %3370
  %3372 = vrot.lane.b32.xlu0 %v3361, 64
  %v3373 = vpop.permute.xlu0 %3372
  %v3378 = vmul.f32 %v3303, %v3367
  %v3379 = vmul.f32 %v3305, %v3369
  %v3380 = vmul.f32 %v3307, %v3371
  %v3381 = vmul.f32 %v3309, %v3373
  %v3382 = vld [vmem:[#allocation2 + $0x80] sm:$0xff]
  %v3383 = vld [vmem:[#allocation2 + $0x88] sm:$0xff]
  %v3384 = vld [vmem:[#allocation2 + $0x90] sm:$0xff]
  %v3385 = vld [vmem:[#allocation2 + $0x98] sm:$0xff]
  %3390 = vrot.lane.b32.xlu0 %v3378, 32
  %v3391 = vpop.permute.xlu0 %3390
  %3392 = vrot.lane.b32.xlu0 %v3379, 32
  %v3393 = vpop.permute.xlu0 %3392
  %3394 = vrot.lane.b32.xlu0 %v3380, 32
  %v3395 = vpop.permute.xlu0 %3394
  %3396 = vrot.lane.b32.xlu0 %v3381, 32
  %v3397 = vpop.permute.xlu0 %3396
  %v3398 = vsel %vm438, %v3391, 0
  %v3400 = vsel %vm438, %v3393, 0
  %v3402 = vsel %vm438, %v3395, 0
  %v3404 = vsel %vm438, %v3397, 0
  %3406 = vmatprep.subr.mxu0 0.0
  %3407 = vmatpush1.msra.mxu0 %v2562
  %3408 = vmatprep.subr.mxu0 0.0
  %3409 = vmatpush1.msra.mxu0 %v2563
  %3410 = vmatprep.subr.mxu0 0.0
  %3411 = vmatpush1.msra.mxu0 %v2564
  %3412 = vmatprep.subr.mxu0 0.0
  %3413 = vmatpush1.msra.mxu0 %v2565
  %3414 = vmatprep.subr.mxu0 0.0
  %3415 = vmatpush1.msra.mxu0 0.0
  %3416 = vmatprep.subr.mxu0 0.0
  %3417 = vmatpush1.msra.mxu0 0.0
  %3418 = vmatprep.subr.mxu0 0.0
  %3419 = vmatpush1.msra.mxu0 0.0
  %3420 = vmatprep.subr.mxu0 0.0
  %3421 = vmatpush1.msra.mxu0 0.0
  %3422 = vmatprep.subr.mxu0 0.0
  %3423 = vmatpush1.msra.mxu0 0.0
  %3424 = vmatprep.subr.mxu0 0.0
  %3425 = vmatpush1.msra.mxu0 0.0
  %3426 = vmatprep.subr.mxu0 0.0
  %3427 = vmatpush1.msra.mxu0 0.0
  %3428 = vmatprep.subr.mxu0 0.0
  %3429 = vmatpush1.msra.mxu0 0.0
  %3430 = vmatprep.subr.mxu0 0.0
  %3431 = vmatpush1.msra.mxu0 0.0
  %3432 = vmatprep.subr.mxu0 0.0
  %3433 = vmatpush1.msra.mxu0 0.0
  %3434 = vmatprep.subr.mxu0 0.0
  %3435 = vmatpush1.msra.mxu0 0.0
  %3436 = vmatprep.subr.mxu0 0.0
  %3437 = vmatpush1.msra.mxu0 0.0
  %3438 = vmatprep.subr.mxu0 0.0
  %3439 = vmatpush1.msra.mxu0 0.0
  %3440 = vmatprep.subr.mxu0 0.0
  %3441 = vmatpush1.msra.mxu0 0.0
  %3442 = vmatprep.subr.mxu0 0.0
  %3443 = vmatpush1.msra.mxu0 0.0
  %3444 = vmatprep.subr.mxu0 0.0
  %3445 = vmatpush1.msra.mxu0 0.0
  %3446 = vmatprep.subr.mxu0 0.0
  %3447 = vmatpush1.msra.mxu0 0.0
  %3448 = vmatprep.subr.mxu0 0.0
  %3449 = vmatpush1.msra.mxu0 0.0
  %3450 = vmatprep.subr.mxu0 0.0
  %3451 = vmatpush1.msra.mxu0 0.0
  %3452 = vmatprep.subr.mxu0 0.0
  %3453 = vmatpush1.msra.mxu0 0.0
  %3454 = vmatprep.subr.mxu0 0.0
  %3455 = vmatpush1.msra.mxu0 0.0
  %3456 = vmatprep.subr.mxu0 0.0
  %3457 = vmatpush1.msra.mxu0 0.0
  %3458 = vmatprep.subr.mxu0 0.0
  %3459 = vmatpush1.msra.mxu0 0.0
  %3460 = vmatprep.subr.mxu0 0.0
  %3461 = vmatpush1.msra.mxu0 0.0
  %3462 = vmatprep.subr.mxu0 0.0
  %3463 = vmatpush1.msra.mxu0 0.0
  %3464 = vmatprep.subr.mxu0 0.0
  %3465 = vmatpush1.msra.mxu0 0.0
  %3466 = vmatprep.subr.mxu0 0.0
  %3467 = vmatpush1.msra.mxu0 0.0
  %3468 = vmatprep.subr.mxu0 0.0
  %3469 = vmatpush1.msra.mxu0 0.0
  %3470 = vmatprep.mubr.f32.mxu0 0.0
  %3471 = vmatmul.mubr.f32.gmra.mrb[0].mxu0 %v3398
  %v3472 = vpop.f32.mrb[0].mxu0
  %v3473 = vadd.f32 0.0, %v3472
  %v3474 = vpop.f32.mrb[0].mxu0
  %3475 = vmatprep.mubr.f32.mxu0 0.0
  %3476 = vmatmul.mubr.f32.gmra.mrb[0].mxu0 %v3400
  %v3477 = vpop.f32.mrb[0].mxu0
  %v3478 = vadd.f32 0.0, %v3477
  %v3479 = vpop.f32.mrb[0].mxu0
  %3480 = vmatprep.mubr.f32.mxu0 0.0
  %3481 = vmatmul.mubr.f32.gmra.mrb[0].mxu0 %v3402
  %v3482 = vpop.f32.mrb[0].mxu0
  %v3483 = vadd.f32 0.0, %v3482
  %v3484 = vpop.f32.mrb[0].mxu0
  %3485 = vmatprep.mubr.f32.mxu0 0.0
  %3486 = vmatmul.mubr.f32.gmra.mrb[0].mxu0 %v3404
  %v3487 = vpop.f32.mrb[0].mxu0
  %v3488 = vadd.f32 0.0, %v3487
  %v3489 = vpop.f32.mrb[0].mxu0
  %3490 = vdwg.mxu0
  %v3491 = vadd.f32 %v3382, %v3473
  %v3492 = vadd.f32 %v3383, %v3478
  %v3493 = vadd.f32 %v3384, %v3483
  %v3494 = vadd.f32 %v3385, %v3488
  %v3495 = vxor.u32 %v3491, 2147483648
  %v3496 = vxor.u32 %v3492, 2147483648
  %v3497 = vxor.u32 %v3493, 2147483648
  %v3498 = vxor.u32 %v3494, 2147483648
  %v3499 = vmul.f32 %v3495, 1.442695
  %v3500 = vpow.pop %v3499
  %v3501 = vmul.f32 %v3496, 1.442695
  %v3502 = vpow.pop %v3501
  %v3503 = vmul.f32 %v3497, 1.442695
  %v3504 = vpow.pop %v3503
  %v3505 = vmul.f32 %v3498, 1.442695
  %v3506 = vpow.pop %v3505
  %v3507 = vadd.f32 %v3500, 1.0
  %v3508 = vadd.f32 %v3502, 1.0
  %v3509 = vadd.f32 %v3504, 1.0
  %v3510 = vadd.f32 %v3506, 1.0
  %v3511 = vrcp.pop %v3507
  %v3512 = vmul.f32 1.0, %v3511
  %v3513 = vrcp.pop %v3508
  %v3514 = vmul.f32 1.0, %v3513
  %v3515 = vrcp.pop %v3509
  %v3516 = vmul.f32 1.0, %v3515
  %v3517 = vrcp.pop %v3510
  %v3518 = vmul.f32 1.0, %v3517
  %v3519 = vtanh.pop %v3491
  %v3520 = vtanh.pop %v3492
  %v3521 = vtanh.pop %v3493
  %v3522 = vtanh.pop %v3494
  %v3523 = vmul.f32 %v3512, %v3354
  %v3524 = vmul.f32 %v3514, %v3355
  %v3525 = vmul.f32 %v3516, %v3356
  %v3526 = vmul.f32 %v3518, %v3357
  %3531 = vrot.lane.b32.xlu0 %v3519, 64
  %v3532 = vpop.permute.xlu0 %3531
  %3533 = vrot.lane.b32.xlu0 %v3520, 64
  %v3534 = vpop.permute.xlu0 %3533
  %3535 = vrot.lane.b32.xlu0 %v3521, 64
  %v3536 = vpop.permute.xlu0 %3535
  %3537 = vrot.lane.b32.xlu0 %v3522, 64
  %v3538 = vpop.permute.xlu0 %3537
  %v3543 = vmul.f32 %v3512, %v3532
  %v3544 = vmul.f32 %v3514, %v3534
  %v3545 = vmul.f32 %v3516, %v3536
  %v3546 = vmul.f32 %v3518, %v3538
  %3551 = vrot.lane.b32.xlu0 %v3543, 32
  %v3552 = vpop.permute.xlu0 %3551
  %3553 = vrot.lane.b32.xlu0 %v3544, 32
  %v3554 = vpop.permute.xlu0 %3553
  %3555 = vrot.lane.b32.xlu0 %v3545, 32
  %v3556 = vpop.permute.xlu0 %3555
  %3557 = vrot.lane.b32.xlu0 %v3546, 32
  %v3558 = vpop.permute.xlu0 %3557
  %v3563 = vadd.f32 %v3523, %v3552
  %v3564 = vadd.f32 %v3524, %v3554
  %v3565 = vadd.f32 %v3525, %v3556
  %v3566 = vadd.f32 %v3526, %v3558
  %v3567 = vtanh.pop %v3563
  %v3568 = vtanh.pop %v3564
  %v3569 = vtanh.pop %v3565
  %v3570 = vtanh.pop %v3566
  %3575 = vrot.lane.b32.xlu0 %v3567, 64
  %v3576 = vpop.permute.xlu0 %3575
  %3577 = vrot.lane.b32.xlu0 %v3568, 64
  %v3578 = vpop.permute.xlu0 %3577
  %3579 = vrot.lane.b32.xlu0 %v3569, 64
  %v3580 = vpop.permute.xlu0 %3579
  %3581 = vrot.lane.b32.xlu0 %v3570, 64
  %v3582 = vpop.permute.xlu0 %3581
  %v3587 = vmul.f32 %v3512, %v3576
  %v3588 = vmul.f32 %v3514, %v3578
  %v3589 = vmul.f32 %v3516, %v3580
  %v3590 = vmul.f32 %v3518, %v3582
  %v3591 = vld [vmem:[#allocation2 + $0xa0] sm:$0xff]
  %v3592 = vld [vmem:[#allocation2 + $0xa8] sm:$0xff]
  %v3593 = vld [vmem:[#allocation2 + $0xb0] sm:$0xff]
  %v3594 = vld [vmem:[#allocation2 + $0xb8] sm:$0xff]
  %3599 = vrot.lane.b32.xlu0 %v3587, 32
  %v3600 = vpop.permute.xlu0 %3599
  %3601 = vrot.lane.b32.xlu0 %v3588, 32
  %v3602 = vpop.permute.xlu0 %3601
  %3603 = vrot.lane.b32.xlu0 %v3589, 32
  %v3604 = vpop.permute.xlu0 %3603
  %3605 = vrot.lane.b32.xlu0 %v3590, 32
  %v3606 = vpop.permute.xlu0 %3605
  %v3607 = vsel %vm438, %v3600, 0
  %v3609 = vsel %vm438, %v3602, 0
  %v3611 = vsel %vm438, %v3604, 0
  %v3613 = vsel %vm438, %v3606, 0
  %3615 = vmatprep.subr.mxu0 0.0
  %3616 = vmatpush1.msra.mxu0 %v2562
  %3617 = vmatprep.subr.mxu0 0.0
  %3618 = vmatpush1.msra.mxu0 %v2563
  %3619 = vmatprep.subr.mxu0 0.0
  %3620 = vmatpush1.msra.mxu0 %v2564
  %3621 = vmatprep.subr.mxu0 0.0
  %3622 = vmatpush1.msra.mxu0 %v2565
  %3623 = vmatprep.subr.mxu0 0.0
  %3624 = vmatpush1.msra.mxu0 0.0
  %3625 = vmatprep.subr.mxu0 0.0
  %3626 = vmatpush1.msra.mxu0 0.0
  %3627 = vmatprep.subr.mxu0 0.0
  %3628 = vmatpush1.msra.mxu0 0.0
  %3629 = vmatprep.subr.mxu0 0.0
  %3630 = vmatpush1.msra.mxu0 0.0
  %3631 = vmatprep.subr.mxu0 0.0
  %3632 = vmatpush1.msra.mxu0 0.0
  %3633 = vmatprep.subr.mxu0 0.0
  %3634 = vmatpush1.msra.mxu0 0.0
  %3635 = vmatprep.subr.mxu0 0.0
  %3636 = vmatpush1.msra.mxu0 0.0
  %3637 = vmatprep.subr.mxu0 0.0
  %3638 = vmatpush1.msra.mxu0 0.0
  %3639 = vmatprep.subr.mxu0 0.0
  %3640 = vmatpush1.msra.mxu0 0.0
  %3641 = vmatprep.subr.mxu0 0.0
  %3642 = vmatpush1.msra.mxu0 0.0
  %3643 = vmatprep.subr.mxu0 0.0
  %3644 = vmatpush1.msra.mxu0 0.0
  %3645 = vmatprep.subr.mxu0 0.0
  %3646 = vmatpush1.msra.mxu0 0.0
  %3647 = vmatprep.subr.mxu0 0.0
  %3648 = vmatpush1.msra.mxu0 0.0
  %3649 = vmatprep.subr.mxu0 0.0
  %3650 = vmatpush1.msra.mxu0 0.0
  %3651 = vmatprep.subr.mxu0 0.0
  %3652 = vmatpush1.msra.mxu0 0.0
  %3653 = vmatprep.subr.mxu0 0.0
  %3654 = vmatpush1.msra.mxu0 0.0
  %3655 = vmatprep.subr.mxu0 0.0
  %3656 = vmatpush1.msra.mxu0 0.0
  %3657 = vmatprep.subr.mxu0 0.0
  %3658 = vmatpush1.msra.mxu0 0.0
  %3659 = vmatprep.subr.mxu0 0.0
  %3660 = vmatpush1.msra.mxu0 0.0
  %3661 = vmatprep.subr.mxu0 0.0
  %3662 = vmatpush1.msra.mxu0 0.0
  %3663 = vmatprep.subr.mxu0 0.0
  %3664 = vmatpush1.msra.mxu0 0.0
  %3665 = vmatprep.subr.mxu0 0.0
  %3666 = vmatpush1.msra.mxu0 0.0
  %3667 = vmatprep.subr.mxu0 0.0
  %3668 = vmatpush1.msra.mxu0 0.0
  %3669 = vmatprep.subr.mxu0 0.0
  %3670 = vmatpush1.msra.mxu0 0.0
  %3671 = vmatprep.subr.mxu0 0.0
  %3672 = vmatpush1.msra.mxu0 0.0
  %3673 = vmatprep.subr.mxu0 0.0
  %3674 = vmatpush1.msra.mxu0 0.0
  %3675 = vmatprep.subr.mxu0 0.0
  %3676 = vmatpush1.msra.mxu0 0.0
  %3677 = vmatprep.subr.mxu0 0.0
  %3678 = vmatpush1.msra.mxu0 0.0
  %3679 = vmatprep.mubr.f32.mxu0 0.0
  %3680 = vmatmul.mubr.f32.gmra.mrb[0].mxu0 %v3607
  %v3681 = vpop.f32.mrb[0].mxu0
  %v3682 = vadd.f32 0.0, %v3681
  %v3683 = vpop.f32.mrb[0].mxu0
  %3684 = vmatprep.mubr.f32.mxu0 0.0
  %3685 = vmatmul.mubr.f32.gmra.mrb[0].mxu0 %v3609
  %v3686 = vpop.f32.mrb[0].mxu0
  %v3687 = vadd.f32 0.0, %v3686
  %v3688 = vpop.f32.mrb[0].mxu0
  %3689 = vmatprep.mubr.f32.mxu0 0.0
  %3690 = vmatmul.mubr.f32.gmra.mrb[0].mxu0 %v3611
  %v3691 = vpop.f32.mrb[0].mxu0
  %v3692 = vadd.f32 0.0, %v3691
  %v3693 = vpop.f32.mrb[0].mxu0
  %3694 = vmatprep.mubr.f32.mxu0 0.0
  %3695 = vmatmul.mubr.f32.gmra.mrb[0].mxu0 %v3613
  %v3696 = vpop.f32.mrb[0].mxu0
  %v3697 = vadd.f32 0.0, %v3696
  %v3698 = vpop.f32.mrb[0].mxu0
  %3699 = vdwg.mxu0
  %v3700 = vadd.f32 %v3591, %v3682
  %v3701 = vadd.f32 %v3592, %v3687
  %v3702 = vadd.f32 %v3593, %v3692
  %v3703 = vadd.f32 %v3594, %v3697
  %v3704 = vxor.u32 %v3700, 2147483648
  %v3705 = vxor.u32 %v3701, 2147483648
  %v3706 = vxor.u32 %v3702, 2147483648
  %v3707 = vxor.u32 %v3703, 2147483648
  %v3708 = vmul.f32 %v3704, 1.442695
  %v3709 = vpow.pop %v3708
  %v3710 = vmul.f32 %v3705, 1.442695
  %v3711 = vpow.pop %v3710
  %v3712 = vmul.f32 %v3706, 1.442695
  %v3713 = vpow.pop %v3712
  %v3714 = vmul.f32 %v3707, 1.442695
  %v3715 = vpow.pop %v3714
  %v3716 = vadd.f32 %v3709, 1.0
  %v3717 = vadd.f32 %v3711, 1.0
  %v3718 = vadd.f32 %v3713, 1.0
  %v3719 = vadd.f32 %v3715, 1.0
  %v3720 = vrcp.pop %v3716
  %v3721 = vmul.f32 1.0, %v3720
  %v3722 = vrcp.pop %v3717
  %v3723 = vmul.f32 1.0, %v3722
  %v3724 = vrcp.pop %v3718
  %v3725 = vmul.f32 1.0, %v3724
  %v3726 = vrcp.pop %v3719
  %v3727 = vmul.f32 1.0, %v3726
  %v3728 = vtanh.pop %v3700
  %v3729 = vtanh.pop %v3701
  %v3730 = vtanh.pop %v3702
  %v3731 = vtanh.pop %v3703
  %v3732 = vmul.f32 %v3721, %v3563
  %v3733 = vmul.f32 %v3723, %v3564
  %v3734 = vmul.f32 %v3725, %v3565
  %v3735 = vmul.f32 %v3727, %v3566
  %3740 = vrot.lane.b32.xlu0 %v3728, 64
  %v3741 = vpop.permute.xlu0 %3740
  %3742 = vrot.lane.b32.xlu0 %v3729, 64
  %v3743 = vpop.permute.xlu0 %3742
  %3744 = vrot.lane.b32.xlu0 %v3730, 64
  %v3745 = vpop.permute.xlu0 %3744
  %3746 = vrot.lane.b32.xlu0 %v3731, 64
  %v3747 = vpop.permute.xlu0 %3746
  %v3752 = vmul.f32 %v3721, %v3741
  %v3753 = vmul.f32 %v3723, %v3743
  %v3754 = vmul.f32 %v3725, %v3745
  %v3755 = vmul.f32 %v3727, %v3747
  %3760 = vrot.lane.b32.xlu0 %v3752, 32
  %v3761 = vpop.permute.xlu0 %3760
  %3762 = vrot.lane.b32.xlu0 %v3753, 32
  %v3763 = vpop.permute.xlu0 %3762
  %3764 = vrot.lane.b32.xlu0 %v3754, 32
  %v3765 = vpop.permute.xlu0 %3764
  %3766 = vrot.lane.b32.xlu0 %v3755, 32
  %v3767 = vpop.permute.xlu0 %3766
  %v3772 = vadd.f32 %v3732, %v3761
  %v3773 = vadd.f32 %v3733, %v3763
  %v3774 = vadd.f32 %v3734, %v3765
  %v3775 = vadd.f32 %v3735, %v3767
  %v3776 = vtanh.pop %v3772
  %v3777 = vtanh.pop %v3773
  %v3778 = vtanh.pop %v3774
  %v3779 = vtanh.pop %v3775
  %3784 = vrot.lane.b32.xlu0 %v3776, 64
  %v3785 = vpop.permute.xlu0 %3784
  %3786 = vrot.lane.b32.xlu0 %v3777, 64
  %v3787 = vpop.permute.xlu0 %3786
  %3788 = vrot.lane.b32.xlu0 %v3778, 64
  %v3789 = vpop.permute.xlu0 %3788
  %3790 = vrot.lane.b32.xlu0 %v3779, 64
  %v3791 = vpop.permute.xlu0 %3790
  %v3796 = vmul.f32 %v3721, %v3785
  %v3797 = vmul.f32 %v3723, %v3787
  %v3798 = vmul.f32 %v3725, %v3789
  %v3799 = vmul.f32 %v3727, %v3791
  %v3800 = vld [vmem:[#allocation2 + $0xc0] sm:$0xff]
  %v3801 = vld [vmem:[#allocation2 + $0xc8] sm:$0xff]
  %v3802 = vld [vmem:[#allocation2 + $0xd0] sm:$0xff]
  %v3803 = vld [vmem:[#allocation2 + $0xd8] sm:$0xff]
  %3808 = vrot.lane.b32.xlu0 %v3796, 32
  %v3809 = vpop.permute.xlu0 %3808
  %3810 = vrot.lane.b32.xlu0 %v3797, 32
  %v3811 = vpop.permute.xlu0 %3810
  %3812 = vrot.lane.b32.xlu0 %v3798, 32
  %v3813 = vpop.permute.xlu0 %3812
  %3814 = vrot.lane.b32.xlu0 %v3799, 32
  %v3815 = vpop.permute.xlu0 %3814
  %v3816 = vsel %vm438, %v3809, 0
  %v3818 = vsel %vm438, %v3811, 0
  %v3820 = vsel %vm438, %v3813, 0
  %v3822 = vsel %vm438, %v3815, 0
  %3824 = vmatprep.subr.mxu0 0.0
  %3825 = vmatpush1.msra.mxu0 %v2562
  %3826 = vmatprep.subr.mxu0 0.0
  %3827 = vmatpush1.msra.mxu0 %v2563
  %3828 = vmatprep.subr.mxu0 0.0
  %3829 = vmatpush1.msra.mxu0 %v2564
  %3830 = vmatprep.subr.mxu0 0.0
  %3831 = vmatpush1.msra.mxu0 %v2565
  %3832 = vmatprep.subr.mxu0 0.0
  %3833 = vmatpush1.msra.mxu0 0.0
  %3834 = vmatprep.subr.mxu0 0.0
  %3835 = vmatpush1.msra.mxu0 0.0
  %3836 = vmatprep.subr.mxu0 0.0
  %3837 = vmatpush1.msra.mxu0 0.0
  %3838 = vmatprep.subr.mxu0 0.0
  %3839 = vmatpush1.msra.mxu0 0.0
  %3840 = vmatprep.subr.mxu0 0.0
  %3841 = vmatpush1.msra.mxu0 0.0
  %3842 = vmatprep.subr.mxu0 0.0
  %3843 = vmatpush1.msra.mxu0 0.0
  %3844 = vmatprep.subr.mxu0 0.0
  %3845 = vmatpush1.msra.mxu0 0.0
  %3846 = vmatprep.subr.mxu0 0.0
  %3847 = vmatpush1.msra.mxu0 0.0
  %3848 = vmatprep.subr.mxu0 0.0
  %3849 = vmatpush1.msra.mxu0 0.0
  %3850 = vmatprep.subr.mxu0 0.0
  %3851 = vmatpush1.msra.mxu0 0.0
  %3852 = vmatprep.subr.mxu0 0.0
  %3853 = vmatpush1.msra.mxu0 0.0
  %3854 = vmatprep.subr.mxu0 0.0
  %3855 = vmatpush1.msra.mxu0 0.0
  %3856 = vmatprep.subr.mxu0 0.0
  %3857 = vmatpush1.msra.mxu0 0.0
  %3858 = vmatprep.subr.mxu0 0.0
  %3859 = vmatpush1.msra.mxu0 0.0
  %3860 = vmatprep.subr.mxu0 0.0
  %3861 = vmatpush1.msra.mxu0 0.0
  %3862 = vmatprep.subr.mxu0 0.0
  %3863 = vmatpush1.msra.mxu0 0.0
  %3864 = vmatprep.subr.mxu0 0.0
  %3865 = vmatpush1.msra.mxu0 0.0
  %3866 = vmatprep.subr.mxu0 0.0
  %3867 = vmatpush1.msra.mxu0 0.0
  %3868 = vmatprep.subr.mxu0 0.0
  %3869 = vmatpush1.msra.mxu0 0.0
  %3870 = vmatprep.subr.mxu0 0.0
  %3871 = vmatpush1.msra.mxu0 0.0
  %3872 = vmatprep.subr.mxu0 0.0
  %3873 = vmatpush1.msra.mxu0 0.0
  %3874 = vmatprep.subr.mxu0 0.0
  %3875 = vmatpush1.msra.mxu0 0.0
  %3876 = vmatprep.subr.mxu0 0.0
  %3877 = vmatpush1.msra.mxu0 0.0
  %3878 = vmatprep.subr.mxu0 0.0
  %3879 = vmatpush1.msra.mxu0 0.0
  %3880 = vmatprep.subr.mxu0 0.0
  %3881 = vmatpush1.msra.mxu0 0.0
  %3882 = vmatprep.subr.mxu0 0.0
  %3883 = vmatpush1.msra.mxu0 0.0
  %3884 = vmatprep.subr.mxu0 0.0
  %3885 = vmatpush1.msra.mxu0 0.0
  %3886 = vmatprep.subr.mxu0 0.0
  %3887 = vmatpush1.msra.mxu0 0.0
  %3888 = vmatprep.mubr.f32.mxu0 0.0
  %3889 = vmatmul.mubr.f32.gmra.mrb[0].mxu0 %v3816
  %v3890 = vpop.f32.mrb[0].mxu0
  %v3891 = vadd.f32 0.0, %v3890
  %v3892 = vpop.f32.mrb[0].mxu0
  %3893 = vmatprep.mubr.f32.mxu0 0.0
  %3894 = vmatmul.mubr.f32.gmra.mrb[0].mxu0 %v3818
  %v3895 = vpop.f32.mrb[0].mxu0
  %v3896 = vadd.f32 0.0, %v3895
  %v3897 = vpop.f32.mrb[0].mxu0
  %3898 = vmatprep.mubr.f32.mxu0 0.0
  %3899 = vmatmul.mubr.f32.gmra.mrb[0].mxu0 %v3820
  %v3900 = vpop.f32.mrb[0].mxu0
  %v3901 = vadd.f32 0.0, %v3900
  %v3902 = vpop.f32.mrb[0].mxu0
  %3903 = vmatprep.mubr.f32.mxu0 0.0
  %3904 = vmatmul.mubr.f32.gmra.mrb[0].mxu0 %v3822
  %v3905 = vpop.f32.mrb[0].mxu0
  %v3906 = vadd.f32 0.0, %v3905
  %v3907 = vpop.f32.mrb[0].mxu0
  %3908 = vdwg.mxu0
  %v3909 = vadd.f32 %v3800, %v3891
  %v3910 = vadd.f32 %v3801, %v3896
  %v3911 = vadd.f32 %v3802, %v3901
  %v3912 = vadd.f32 %v3803, %v3906
  %v3913 = vxor.u32 %v3909, 2147483648
  %v3914 = vxor.u32 %v3910, 2147483648
  %v3915 = vxor.u32 %v3911, 2147483648
  %v3916 = vxor.u32 %v3912, 2147483648
  %v3917 = vmul.f32 %v3913, 1.442695
  %v3918 = vpow.pop %v3917
  %v3919 = vmul.f32 %v3914, 1.442695
  %v3920 = vpow.pop %v3919
  %v3921 = vmul.f32 %v3915, 1.442695
  %v3922 = vpow.pop %v3921
  %v3923 = vmul.f32 %v3916, 1.442695
  %v3924 = vpow.pop %v3923
  %v3925 = vadd.f32 %v3918, 1.0
  %v3926 = vadd.f32 %v3920, 1.0
  %v3927 = vadd.f32 %v3922, 1.0
  %v3928 = vadd.f32 %v3924, 1.0
  %v3929 = vrcp.pop %v3925
  %v3930 = vmul.f32 1.0, %v3929
  %v3931 = vrcp.pop %v3926
  %v3932 = vmul.f32 1.0, %v3931
  %v3933 = vrcp.pop %v3927
  %v3934 = vmul.f32 1.0, %v3933
  %v3935 = vrcp.pop %v3928
  %v3936 = vmul.f32 1.0, %v3935
  %v3937 = vtanh.pop %v3909
  %v3938 = vtanh.pop %v3910
  %v3939 = vtanh.pop %v3911
  %v3940 = vtanh.pop %v3912
  %v3941 = vmul.f32 %v3930, %v3772
  %v3942 = vmul.f32 %v3932, %v3773
  %v3943 = vmul.f32 %v3934, %v3774
  %v3944 = vmul.f32 %v3936, %v3775
  %3949 = vrot.lane.b32.xlu0 %v3937, 64
  %v3950 = vpop.permute.xlu0 %3949
  %3951 = vrot.lane.b32.xlu0 %v3938, 64
  %v3952 = vpop.permute.xlu0 %3951
  %3953 = vrot.lane.b32.xlu0 %v3939, 64
  %v3954 = vpop.permute.xlu0 %3953
  %3955 = vrot.lane.b32.xlu0 %v3940, 64
  %v3956 = vpop.permute.xlu0 %3955
  %v3961 = vmul.f32 %v3930, %v3950
  %v3962 = vmul.f32 %v3932, %v3952
  %v3963 = vmul.f32 %v3934, %v3954
  %v3964 = vmul.f32 %v3936, %v3956
  %3969 = vrot.lane.b32.xlu0 %v3961, 32
  %v3970 = vpop.permute.xlu0 %3969
  %3971 = vrot.lane.b32.xlu0 %v3962, 32
  %v3972 = vpop.permute.xlu0 %3971
  %3973 = vrot.lane.b32.xlu0 %v3963, 32
  %v3974 = vpop.permute.xlu0 %3973
  %3975 = vrot.lane.b32.xlu0 %v3964, 32
  %v3976 = vpop.permute.xlu0 %3975
  %v3981 = vadd.f32 %v3941, %v3970
  %v3982 = vadd.f32 %v3942, %v3972
  %v3983 = vadd.f32 %v3943, %v3974
  %v3984 = vadd.f32 %v3944, %v3976
  %v3985 = vtanh.pop %v3981
  %v3986 = vtanh.pop %v3982
  %v3987 = vtanh.pop %v3983
  %v3988 = vtanh.pop %v3984
  %3993 = vrot.lane.b32.xlu0 %v3985, 64
  %v3994 = vpop.permute.xlu0 %3993
  %3995 = vrot.lane.b32.xlu0 %v3986, 64
  %v3996 = vpop.permute.xlu0 %3995
  %3997 = vrot.lane.b32.xlu0 %v3987, 64
  %v3998 = vpop.permute.xlu0 %3997
  %3999 = vrot.lane.b32.xlu0 %v3988, 64
  %v4000 = vpop.permute.xlu0 %3999
  %v4005 = vmul.f32 %v3930, %v3994
  %v4006 = vmul.f32 %v3932, %v3996
  %v4007 = vmul.f32 %v3934, %v3998
  %v4008 = vmul.f32 %v3936, %v4000
  %v4009 = vld [vmem:[#allocation2 + $0xe0] sm:$0xff]
  %v4010 = vld [vmem:[#allocation2 + $0xe8] sm:$0xff]
  %v4011 = vld [vmem:[#allocation2 + $0xf0] sm:$0xff]
  %v4012 = vld [vmem:[#allocation2 + $0xf8] sm:$0xff]
  %4017 = vrot.lane.b32.xlu0 %v4005, 32
  %v4018 = vpop.permute.xlu0 %4017
  %4019 = vrot.lane.b32.xlu0 %v4006, 32
  %v4020 = vpop.permute.xlu0 %4019
  %4021 = vrot.lane.b32.xlu0 %v4007, 32
  %v4022 = vpop.permute.xlu0 %4021
  %4023 = vrot.lane.b32.xlu0 %v4008, 32
  %v4024 = vpop.permute.xlu0 %4023
  %v4025 = vsel %vm438, %v4018, 0
  %v4027 = vsel %vm438, %v4020, 0
  %v4029 = vsel %vm438, %v4022, 0
  %v4031 = vsel %vm438, %v4024, 0
  %4033 = vmatprep.subr.mxu0 0.0
  %4034 = vmatpush1.msra.mxu0 %v2562
  %4035 = vmatprep.subr.mxu0 0.0
  %4036 = vmatpush1.msra.mxu0 %v2563
  %4037 = vmatprep.subr.mxu0 0.0
  %4038 = vmatpush1.msra.mxu0 %v2564
  %4039 = vmatprep.subr.mxu0 0.0
  %4040 = vmatpush1.msra.mxu0 %v2565
  %4041 = vmatprep.subr.mxu0 0.0
  %4042 = vmatpush1.msra.mxu0 0.0
  %4043 = vmatprep.subr.mxu0 0.0
  %4044 = vmatpush1.msra.mxu0 0.0
  %4045 = vmatprep.subr.mxu0 0.0
  %4046 = vmatpush1.msra.mxu0 0.0
  %4047 = vmatprep.subr.mxu0 0.0
  %4048 = vmatpush1.msra.mxu0 0.0
  %4049 = vmatprep.subr.mxu0 0.0
  %4050 = vmatpush1.msra.mxu0 0.0
  %4051 = vmatprep.subr.mxu0 0.0
  %4052 = vmatpush1.msra.mxu0 0.0
  %4053 = vmatprep.subr.mxu0 0.0
  %4054 = vmatpush1.msra.mxu0 0.0
  %4055 = vmatprep.subr.mxu0 0.0
  %4056 = vmatpush1.msra.mxu0 0.0
  %4057 = vmatprep.subr.mxu0 0.0
  %4058 = vmatpush1.msra.mxu0 0.0
  %4059 = vmatprep.subr.mxu0 0.0
  %4060 = vmatpush1.msra.mxu0 0.0
  %4061 = vmatprep.subr.mxu0 0.0
  %4062 = vmatpush1.msra.mxu0 0.0
  %4063 = vmatprep.subr.mxu0 0.0
  %4064 = vmatpush1.msra.mxu0 0.0
  %4065 = vmatprep.subr.mxu0 0.0
  %4066 = vmatpush1.msra.mxu0 0.0
  %4067 = vmatprep.subr.mxu0 0.0
  %4068 = vmatpush1.msra.mxu0 0.0
  %4069 = vmatprep.subr.mxu0 0.0
  %4070 = vmatpush1.msra.mxu0 0.0
  %4071 = vmatprep.subr.mxu0 0.0
  %4072 = vmatpush1.msra.mxu0 0.0
  %4073 = vmatprep.subr.mxu0 0.0
  %4074 = vmatpush1.msra.mxu0 0.0
  %4075 = vmatprep.subr.mxu0 0.0
  %4076 = vmatpush1.msra.mxu0 0.0
  %4077 = vmatprep.subr.mxu0 0.0
  %4078 = vmatpush1.msra.mxu0 0.0
  %4079 = vmatprep.subr.mxu0 0.0
  %4080 = vmatpush1.msra.mxu0 0.0
  %4081 = vmatprep.subr.mxu0 0.0
  %4082 = vmatpush1.msra.mxu0 0.0
  %4083 = vmatprep.subr.mxu0 0.0
  %4084 = vmatpush1.msra.mxu0 0.0
  %4085 = vmatprep.subr.mxu0 0.0
  %4086 = vmatpush1.msra.mxu0 0.0
  %4087 = vmatprep.subr.mxu0 0.0
  %4088 = vmatpush1.msra.mxu0 0.0
  %4089 = vmatprep.subr.mxu0 0.0
  %4090 = vmatpush1.msra.mxu0 0.0
  %4091 = vmatprep.subr.mxu0 0.0
  %4092 = vmatpush1.msra.mxu0 0.0
  %4093 = vmatprep.subr.mxu0 0.0
  %4094 = vmatpush1.msra.mxu0 0.0
  %4095 = vmatprep.subr.mxu0 0.0
  %4096 = vmatpush1.msra.mxu0 0.0
  %4097 = vmatprep.mubr.f32.mxu0 0.0
  %4098 = vmatmul.mubr.f32.gmra.mrb[0].mxu0 %v4025
  %v4099 = vpop.f32.mrb[0].mxu0
  %v4100 = vadd.f32 0.0, %v4099
  %v4101 = vpop.f32.mrb[0].mxu0
  %4102 = vmatprep.mubr.f32.mxu0 0.0
  %4103 = vmatmul.mubr.f32.gmra.mrb[0].mxu0 %v4027
  %v4104 = vpop.f32.mrb[0].mxu0
  %v4105 = vadd.f32 0.0, %v4104
  %v4106 = vpop.f32.mrb[0].mxu0
  %4107 = vmatprep.mubr.f32.mxu0 0.0
  %4108 = vmatmul.mubr.f32.gmra.mrb[0].mxu0 %v4029
  %v4109 = vpop.f32.mrb[0].mxu0
  %v4110 = vadd.f32 0.0, %v4109
  %v4111 = vpop.f32.mrb[0].mxu0
  %4112 = vmatprep.mubr.f32.mxu0 0.0
  %4113 = vmatmul.mubr.f32.gmra.mrb[0].mxu0 %v4031
  %v4114 = vpop.f32.mrb[0].mxu0
  %v4115 = vadd.f32 0.0, %v4114
  %v4116 = vpop.f32.mrb[0].mxu0
  %4117 = vdwg.mxu0
  %v4118 = vadd.f32 %v4009, %v4100
  %v4119 = vadd.f32 %v4010, %v4105
  %v4120 = vadd.f32 %v4011, %v4110
  %v4121 = vadd.f32 %v4012, %v4115
  %v4122 = vxor.u32 %v4118, 2147483648
  %v4123 = vxor.u32 %v4119, 2147483648
  %v4124 = vxor.u32 %v4120, 2147483648
  %v4125 = vxor.u32 %v4121, 2147483648
  %v4126 = vmul.f32 %v4122, 1.442695
  %v4127 = vpow.pop %v4126
  %v4128 = vmul.f32 %v4123, 1.442695
  %v4129 = vpow.pop %v4128
  %v4130 = vmul.f32 %v4124, 1.442695
  %v4131 = vpow.pop %v4130
  %v4132 = vmul.f32 %v4125, 1.442695
  %v4133 = vpow.pop %v4132
  %v4134 = vadd.f32 %v4127, 1.0
  %v4135 = vadd.f32 %v4129, 1.0
  %v4136 = vadd.f32 %v4131, 1.0
  %v4137 = vadd.f32 %v4133, 1.0
  %v4138 = vrcp.pop %v4134
  %v4139 = vmul.f32 1.0, %v4138
  %v4140 = vrcp.pop %v4135
  %v4141 = vmul.f32 1.0, %v4140
  %v4142 = vrcp.pop %v4136
  %v4143 = vmul.f32 1.0, %v4142
  %v4144 = vrcp.pop %v4137
  %v4145 = vmul.f32 1.0, %v4144
  %v4146 = vtanh.pop %v4118
  %v4147 = vtanh.pop %v4119
  %v4148 = vtanh.pop %v4120
  %v4149 = vtanh.pop %v4121
  %v4150 = vmul.f32 %v4139, %v3981
  %v4151 = vmul.f32 %v4141, %v3982
  %v4152 = vmul.f32 %v4143, %v3983
  %v4153 = vmul.f32 %v4145, %v3984
  %4158 = vrot.lane.b32.xlu0 %v4146, 64
  %v4159 = vpop.permute.xlu0 %4158
  %4160 = vrot.lane.b32.xlu0 %v4147, 64
  %v4161 = vpop.permute.xlu0 %4160
  %4162 = vrot.lane.b32.xlu0 %v4148, 64
  %v4163 = vpop.permute.xlu0 %4162
  %4164 = vrot.lane.b32.xlu0 %v4149, 64
  %v4165 = vpop.permute.xlu0 %4164
  %v4170 = vmul.f32 %v4139, %v4159
  %v4171 = vmul.f32 %v4141, %v4161
  %v4172 = vmul.f32 %v4143, %v4163
  %v4173 = vmul.f32 %v4145, %v4165
  %4178 = vrot.lane.b32.xlu0 %v4170, 32
  %v4179 = vpop.permute.xlu0 %4178
  %4180 = vrot.lane.b32.xlu0 %v4171, 32
  %v4181 = vpop.permute.xlu0 %4180
  %4182 = vrot.lane.b32.xlu0 %v4172, 32
  %v4183 = vpop.permute.xlu0 %4182
  %4184 = vrot.lane.b32.xlu0 %v4173, 32
  %v4185 = vpop.permute.xlu0 %4184
  %v4190 = vadd.f32 %v4150, %v4179
  %v4191 = vadd.f32 %v4151, %v4181
  %v4192 = vadd.f32 %v4152, %v4183
  %v4193 = vadd.f32 %v4153, %v4185
  %v4194 = vtanh.pop %v4190
  %v4195 = vtanh.pop %v4191
  %v4196 = vtanh.pop %v4192
  %v4197 = vtanh.pop %v4193
  %4202 = vrot.lane.b32.xlu0 %v4194, 64
  %v4203 = vpop.permute.xlu0 %4202
  %4204 = vrot.lane.b32.xlu0 %v4195, 64
  %v4205 = vpop.permute.xlu0 %4204
  %4206 = vrot.lane.b32.xlu0 %v4196, 64
  %v4207 = vpop.permute.xlu0 %4206
  %4208 = vrot.lane.b32.xlu0 %v4197, 64
  %v4209 = vpop.permute.xlu0 %4208
  %v4214 = vmul.f32 %v4139, %v4203
  %v4215 = vmul.f32 %v4141, %v4205
  %v4216 = vmul.f32 %v4143, %v4207
  %v4217 = vmul.f32 %v4145, %v4209
  %v4218 = vld [vmem:[%s7] sm:$0xff]
  %v4219 = vld [vmem:[%s7 + $0x8] sm:$0xff]
  %v4220 = vld [vmem:[%s7 + $0x10] sm:$0xff]
  %v4221 = vld [vmem:[%s7 + $0x18] sm:$0xff]
  %v4222 = vld [vmem:[%s8] sm:$0x1]
  %v4224 = vlaneseq
  %v4225 = vshrl.u32 %v4224, 7
  %v4226 = vsub.s32 0, %v4225
  %v4227 = vrot.slane %v4222, %v4226
  %4233 = vrot.lane.b32.xlu0 %v4214, 32
  %v4234 = vpop.permute.xlu0 %4233
  %4235 = vrot.lane.b32.xlu0 %v4215, 32
  %v4236 = vpop.permute.xlu0 %4235
  %4237 = vrot.lane.b32.xlu0 %v4216, 32
  %v4238 = vpop.permute.xlu0 %4237
  %4239 = vrot.lane.b32.xlu0 %v4217, 32
  %v4240 = vpop.permute.xlu0 %4239
  %v4241 = vsel %vm438, %v4234, 0
  %v4243 = vsel %vm438, %v4236, 0
  %v4245 = vsel %vm438, %v4238, 0
  %v4247 = vsel %vm438, %v4240, 0
  %4249 = vmatprep.subr.mxu0 0.0
  %4250 = vmatpush1.msra.mxu0 %v4218
  %4251 = vmatprep.subr.mxu0 0.0
  %4252 = vmatpush1.msra.mxu0 %v4219
  %4253 = vmatprep.subr.mxu0 0.0
  %4254 = vmatpush1.msra.mxu0 %v4220
  %4255 = vmatprep.subr.mxu0 0.0
  %4256 = vmatpush1.msra.mxu0 %v4221
  %4257 = vmatprep.subr.mxu0 0.0
  %4258 = vmatpush1.msra.mxu0 0.0
  %4259 = vmatprep.subr.mxu0 0.0
  %4260 = vmatpush1.msra.mxu0 0.0
  %4261 = vmatprep.subr.mxu0 0.0
  %4262 = vmatpush1.msra.mxu0 0.0
  %4263 = vmatprep.subr.mxu0 0.0
  %4264 = vmatpush1.msra.mxu0 0.0
  %4265 = vmatprep.subr.mxu0 0.0
  %4266 = vmatpush1.msra.mxu0 0.0
  %4267 = vmatprep.subr.mxu0 0.0
  %4268 = vmatpush1.msra.mxu0 0.0
  %4269 = vmatprep.subr.mxu0 0.0
  %4270 = vmatpush1.msra.mxu0 0.0
  %4271 = vmatprep.subr.mxu0 0.0
  %4272 = vmatpush1.msra.mxu0 0.0
  %4273 = vmatprep.subr.mxu0 0.0
  %4274 = vmatpush1.msra.mxu0 0.0
  %4275 = vmatprep.subr.mxu0 0.0
  %4276 = vmatpush1.msra.mxu0 0.0
  %4277 = vmatprep.subr.mxu0 0.0
  %4278 = vmatpush1.msra.mxu0 0.0
  %4279 = vmatprep.subr.mxu0 0.0
  %4280 = vmatpush1.msra.mxu0 0.0
  %4281 = vmatprep.subr.mxu0 0.0
  %4282 = vmatpush1.msra.mxu0 0.0
  %4283 = vmatprep.subr.mxu0 0.0
  %4284 = vmatpush1.msra.mxu0 0.0
  %4285 = vmatprep.subr.mxu0 0.0
  %4286 = vmatpush1.msra.mxu0 0.0
  %4287 = vmatprep.subr.mxu0 0.0
  %4288 = vmatpush1.msra.mxu0 0.0
  %4289 = vmatprep.subr.mxu0 0.0
  %4290 = vmatpush1.msra.mxu0 0.0
  %4291 = vmatprep.subr.mxu0 0.0
  %4292 = vmatpush1.msra.mxu0 0.0
  %4293 = vmatprep.subr.mxu0 0.0
  %4294 = vmatpush1.msra.mxu0 0.0
  %4295 = vmatprep.subr.mxu0 0.0
  %4296 = vmatpush1.msra.mxu0 0.0
  %4297 = vmatprep.subr.mxu0 0.0
  %4298 = vmatpush1.msra.mxu0 0.0
  %4299 = vmatprep.subr.mxu0 0.0
  %4300 = vmatpush1.msra.mxu0 0.0
  %4301 = vmatprep.subr.mxu0 0.0
  %4302 = vmatpush1.msra.mxu0 0.0
  %4303 = vmatprep.subr.mxu0 0.0
  %4304 = vmatpush1.msra.mxu0 0.0
  %4305 = vmatprep.subr.mxu0 0.0
  %4306 = vmatpush1.msra.mxu0 0.0
  %4307 = vmatprep.subr.mxu0 0.0
  %4308 = vmatpush1.msra.mxu0 0.0
  %4309 = vmatprep.subr.mxu0 0.0
  %4310 = vmatpush1.msra.mxu0 0.0
  %4311 = vmatprep.subr.mxu0 0.0
  %4312 = vmatpush1.msra.mxu0 0.0
  %4313 = vmatprep.mubr.f32.mxu0 0.0
  %4314 = vmatmul.mubr.f32.gmra.mrb[0].mxu0 %v4241
  %v4315 = vpop.f32.mrb[0].mxu0
  %v4316 = vadd.f32 %v4227, %v4315
  %v4317 = vpop.f32.mrb[0].mxu0
  %4318 = vmatprep.mubr.f32.mxu0 0.0
  %4319 = vmatmul.mubr.f32.gmra.mrb[0].mxu0 %v4243
  %v4320 = vpop.f32.mrb[0].mxu0
  %v4321 = vadd.f32 %v4227, %v4320
  %v4322 = vpop.f32.mrb[0].mxu0
  %4323 = vmatprep.mubr.f32.mxu0 0.0
  %4324 = vmatmul.mubr.f32.gmra.mrb[0].mxu0 %v4245
  %v4325 = vpop.f32.mrb[0].mxu0
  %v4326 = vadd.f32 %v4227, %v4325
  %v4327 = vpop.f32.mrb[0].mxu0
  %4328 = vmatprep.mubr.f32.mxu0 0.0
  %4329 = vmatmul.mubr.f32.gmra.mrb[0].mxu0 %v4247
  %v4330 = vpop.f32.mrb[0].mxu0
  %v4331 = vadd.f32 %v4227, %v4330
  %v4332 = vpop.f32.mrb[0].mxu0
  %4333 = vdwg.mxu0
  %vm4334 = vcmask 130048
  %4335 = vst.msk [vmem:[%s9] sm:$0xff] %vm4334, %v4316
  %4336 = vst.msk [vmem:[%s9 + $0x8] sm:$0xff] %vm4334, %v4321
  %4337 = vst.msk [vmem:[%s9 + $0x10] sm:$0xff] %vm4334, %v4326
  %4338 = vst.msk [vmem:[%s9 + $0x18] sm:$0xff] %vm4334, %v4331
  // Predicated region
  $region38: #{tpu_custom_call.1} parent=0 // pred_check
    _
  $region39: #{tpu_custom_call.1} parent=0 // pred_check_branch
    %4340 = sbr.rel (0) target = $region41
  $region40: #{tpu_custom_call.1} parent=0 // pred_region
    _
  $region41: #{tpu_custom_call.1} parent=0 // pred_fallthru
    _
  // Predicated region
  $region42: #{tpu_custom_call.1} parent=0 // pred_check
    _
  $region43: #{tpu_custom_call.1} parent=0 // pred_check_branch
    %4342 = sbr.rel (0) target = $region45
  $region44: #{tpu_custom_call.1} parent=0 // pred_region
    _
  $region45: #{tpu_custom_call.1} parent=0 // pred_fallthru
    _

</llo_original>
